<compile_context>
chip_gen: v5e
topology: v5e:2x2
jax: 0.10.0
libtpu: 0.0.40
codegen_flags: <defaults>
</compile_context>

<pallas_src>
import jax
import jax.numpy as jnp
from jax.experimental import pallas as pl
from jax.experimental.pallas import tpu as pltpu

HIDDEN = 500       # hard-coded in PtModel.__init__
HIDDEN_PAD = 512   # lane/MXU friendly padding (exact: padded units are identically 0)


def _round_up(a, m):
    return (a + m - 1) // m * m


def _swish(v):
    return v * jax.nn.sigmoid(v)


def ensemble_mlp_kernel(x_ref, mu_ref, inv_sigma_ref,
                        w0_ref, b0_ref, w1_ref, b1_ref,
                        w2_ref, b2_ref, w3_ref, b3_ref,
                        maxlv_ref, minlv_ref,
                        out_ref):
    # x_ref block: (1, TB, Din) for the current (ensemble member, batch tile).
    x = (x_ref[0] - mu_ref[...]) * inv_sigma_ref[...]      # f32, (TB, Din)

    def layer(h, w_ref, b_ref):
        # bf16 MXU matmul with f32 accumulation; bias add in f32.
        return jnp.dot(h.astype(jnp.bfloat16), w_ref[0],
                       preferred_element_type=jnp.float32) + b_ref[0]

    h = _swish(layer(x, w0_ref, b0_ref))                   # (TB, 512) f32
    h = _swish(layer(h, w1_ref, b1_ref))
    h = _swish(layer(h, w2_ref, b2_ref))
    out = layer(h, w3_ref, b3_ref)                         # (TB, Dout) f32

    half = maxlv_ref.shape[-1]
    mean = out[:, :half]
    logvar = out[:, half:]

    max_lv = maxlv_ref[...]                                # (1, half), broadcasts over TB
    min_lv = minlv_ref[...]
    logvar = max_lv - jax.nn.softplus(max_lv - logvar)
    logvar = min_lv + jax.nn.softplus(logvar - min_lv)

    # Single combined, lane-denser store: [mean | exp(logvar)] -> (TB, Dout).
    out_ref[0] = jnp.concatenate([mean, jnp.exp(logvar)], axis=-1)


def prepare_kernel_params(params):
    """Pad hidden dims 500->512 (exact zeros) and cast weights to bf16.

    Call once and reuse across forward calls (do not redo per step)."""
    pad_h = HIDDEN_PAD - HIDDEN

    def pad_cast(w, pad_rows, pad_cols):
        return jnp.pad(w, ((0, 0), (0, pad_rows), (0, pad_cols))).astype(jnp.bfloat16)

    kp = dict(
        w0=pad_cast(params["w0"], 0, pad_h),
        w1=pad_cast(params["w1"], pad_h, pad_h),
        w2=pad_cast(params["w2"], pad_h, pad_h),
        w3=pad_cast(params["w3"], pad_h, 0),
        b0=jnp.pad(params["b0"], ((0, 0), (0, 0), (0, pad_h))),
        b1=jnp.pad(params["b1"], ((0, 0), (0, 0), (0, pad_h))),
        b2=jnp.pad(params["b2"], ((0, 0), (0, 0), (0, pad_h))),
        b3=params["b3"],
        mu=params["mu"],
        inv_sigma=1.0 / params["sigma"],                   # reciprocal precomputed outside
        max_logvar=params["max_logvar"],
        min_logvar=params["min_logvar"],
    )
    return kp


def ensemble_forward(x, kparams):
    """x: (E, B, Din) f32.  kparams: output of prepare_kernel_params.

    Returns (mean, var), each (E, B, Dout//2) f32 -- PtModel.forward(ret_logvar=False)."""
    E, B, Din = x.shape
    Dout = kparams["w3"].shape[-1]
    half = Dout // 2
    H = HIDDEN_PAD

    # Batch tiling: weights stay VMEM-resident while batch tiles stream.
    TB = min(256, _round_up(B, 8))
    B_pad = _round_up(B, TB)
    if B_pad != B:
        x = jnp.pad(x, ((0, 0), (0, B_pad - B), (0, 0)))
    n_bt = B_pad // TB

    shared = lambda shape: pl.BlockSpec(shape, lambda e, b: (0,) * len(shape))
    per_e = lambda shape: pl.BlockSpec((1,) + shape, lambda e, b: (e,) + (0,) * len(shape))

    in_specs = [
        pl.BlockSpec((1, TB, Din), lambda e, b: (e, b, 0)),   # x
        shared((1, Din)),                                      # inputs_mu
        shared((1, Din)),                                      # 1 / inputs_sigma
        per_e((Din, H)),                                       # lin0_w (bf16)
        per_e((1, H)),                                         # lin0_b
        per_e((H, H)),                                         # lin1_w (bf16)
        per_e((1, H)),                                         # lin1_b
        per_e((H, H)),                                         # lin2_w (bf16)
        per_e((1, H)),                                         # lin2_b
        per_e((H, Dout)),                                      # lin3_w (bf16)
        per_e((1, Dout)),                                      # lin3_b
        shared((1, half)),                                     # max_logvar
        shared((1, half)),                                     # min_logvar
    ]
    out_specs = pl.BlockSpec((1, TB, Dout), lambda e, b: (e, b, 0))
    out_shape = jax.ShapeDtypeStruct((E, B_pad, Dout), jnp.float32)

    fn = pl.pallas_call(
        ensemble_mlp_kernel,
        out_shape=out_shape,
        grid=(E, n_bt),
        in_specs=in_specs,
        out_specs=out_specs,
        compiler_params=pltpu.CompilerParams(
            dimension_semantics=("parallel", "arbitrary"),
            vmem_limit_bytes=16 << 20,
        ),
    )
    out = fn(
        x, kparams["mu"], kparams["inv_sigma"],
        kparams["w0"], kparams["b0"], kparams["w1"], kparams["b1"],
        kparams["w2"], kparams["b2"], kparams["w3"], kparams["b3"],
        kparams["max_logvar"], kparams["min_logvar"],
    )
    mean = out[:, :B, :half]
    var = out[:, :B, half:]
    return mean, var


def init_params(key, ensemble_size, in_features, out_features):
    """Deterministic synthetic parameters matching PtModel.__init__ shapes (HIDDEN=500)."""
    ks = jax.random.split(key, 8)

    def affine(kw, fan_in, fan_out):
        # get_affine_params: ~ truncated-normal(std=1/(2*sqrt(fan_in))) weights, zero bias
        w = jax.random.truncated_normal(
            kw, -2.0, 2.0, (ensemble_size, fan_in, fan_out), jnp.float32
        ) / (2.0 * jnp.sqrt(jnp.float32(fan_in)))
        b = jnp.zeros((ensemble_size, 1, fan_out), jnp.float32)
        return w, b

    w0, b0 = affine(ks[0], in_features, HIDDEN)
    w1, b1 = affine(ks[1], HIDDEN, HIDDEN)
    w2, b2 = affine(ks[2], HIDDEN, HIDDEN)
    w3, b3 = affine(ks[3], HIDDEN, out_features)

    params = dict(
        w0=w0, b0=b0, w1=w1, b1=b1, w2=w2, b2=b2, w3=w3, b3=b3,
        # Module inits sigma to zeros but fit_input_stats() replaces it before use;
        # we use sigma=1 (identity normalization) to keep the forward finite.
        mu=jnp.zeros((1, in_features), jnp.float32),
        sigma=jnp.ones((1, in_features), jnp.float32),
        max_logvar=jnp.ones((1, out_features // 2), jnp.float32) / 2.0,
        min_logvar=-jnp.ones((1, out_features // 2), jnp.float32) * 10.0,
    )
    return params


def _bound_logvar(out, p):
    half = out.shape[-1] // 2
    mean, logvar = out[..., :half], out[..., half:]
    logvar = p["max_logvar"] - jax.nn.softplus(p["max_logvar"] - logvar)
    logvar = p["min_logvar"] + jax.nn.softplus(logvar - p["min_logvar"])
    return mean, jnp.exp(logvar)


def reference_forward_f32(x, p):
    """Pure-JAX reference mirroring PtModel.forward exactly (f32 everywhere)."""
    sw = lambda v: v * jax.nn.sigmoid(v)
    h = (x - p["mu"][0]) / p["sigma"][0]
    h = sw(jnp.einsum("ebi,eio->ebo", h, p["w0"]) + p["b0"])
    h = sw(jnp.einsum("ebi,eio->ebo", h, p["w1"]) + p["b1"])
    h = sw(jnp.einsum("ebi,eio->ebo", h, p["w2"]) + p["b2"])
    out = jnp.einsum("ebi,eio->ebo", h, p["w3"]) + p["b3"]
    return _bound_logvar(out, p)


def reference_forward_bf16(x, p):
    """Pure-JAX reference mirroring the kernel's bf16-matmul / f32-accumulate scheme."""
    sw = lambda v: v * jax.nn.sigmoid(v)

    def layer(h, w, b):
        return jnp.einsum("ebi,eio->ebo",
                          h.astype(jnp.bfloat16), w.astype(jnp.bfloat16),
                          preferred_element_type=jnp.float32) + b

    h = (x - p["mu"][0]) / p["sigma"][0]
    h = sw(layer(h, p["w0"], p["b0"]))
    h = sw(layer(h, p["w1"], p["b1"]))
    h = sw(layer(h, p["w2"], p["b2"]))
    out = layer(h, p["w3"], p["b3"])
    return _bound_logvar(out, p)


if __name__ == "__main__":
    # Small cartpole-like shapes: ensemble=2, batch=32, in=6 (obs+act), out=8 (2*obs_dim).
    E, B, Din, Dout = 2, 32, 6, 8
    key = jax.random.PRNGKey(0)
    k_param, k_x = jax.random.split(key)

    params = init_params(k_param, E, Din, Dout)
    kparams = prepare_kernel_params(params)   # pad 500->512, cast weights to bf16 (do once)
    x = jax.random.normal(k_x, (E, B, Din), jnp.float32)

    mean, var = ensemble_forward(x, kparams)
    jax.block_until_ready((mean, var))

    assert mean.shape == (E, B, Dout // 2) and var.shape == (E, B, Dout // 2)

    # Strict check against a reference that uses the same bf16 matmul inputs.
    bm, bv = reference_forward_bf16(x, params)
    assert jnp.allclose(mean, bm, atol=1e-3, rtol=1e-3)
    assert jnp.allclose(var, bv, atol=1e-3, rtol=1e-3)

    # Looser check against the exact-f32 PtModel semantics (bf16 weight quantization noise).
    fm, fv = reference_forward_f32(x, params)
    assert jnp.allclose(mean, fm, atol=3e-2, rtol=3e-2)
    assert jnp.allclose(var, fv, atol=3e-2, rtol=3e-2)

    print("KERNEL_OK")
</pallas_src>

<mosaic_0001>
module attributes {stable_mosaic.version = 11 : i64} {
  func.func @ensemble_mlp_kernel(%arg0: i32, %arg1: i32, %arg2: memref<1x32x6xf32, #tpu.memory_space<vmem>>, %arg3: memref<1x6xf32, #tpu.memory_space<vmem>>, %arg4: memref<1x6xf32, #tpu.memory_space<vmem>>, %arg5: memref<1x6x512xbf16, #tpu.memory_space<vmem>>, %arg6: memref<1x1x512xf32, #tpu.memory_space<vmem>>, %arg7: memref<1x512x512xbf16, #tpu.memory_space<vmem>>, %arg8: memref<1x1x512xf32, #tpu.memory_space<vmem>>, %arg9: memref<1x512x512xbf16, #tpu.memory_space<vmem>>, %arg10: memref<1x1x512xf32, #tpu.memory_space<vmem>>, %arg11: memref<1x512x8xbf16, #tpu.memory_space<vmem>>, %arg12: memref<1x1x8xf32, #tpu.memory_space<vmem>>, %arg13: memref<1x4xf32, #tpu.memory_space<vmem>>, %arg14: memref<1x4xf32, #tpu.memory_space<vmem>>, %arg15: memref<1x32x8xf32, #tpu.memory_space<vmem>>) attributes {dimension_semantics = [#tpu.dimension_semantics<parallel>, #tpu.dimension_semantics<arbitrary>], iteration_bounds = array<i64: 2, 1>, scalar_prefetch = 0 : i64, scratch_operands = 0 : i64, tpu.core_type = #tpu.core_type<tc>, window_params = [{transform_indices = @transform_0, window_bounds = array<i64: 1, 32, 6>}, {pipeline_mode = #tpu.pipeline_mode<synchronous>, transform_indices = @transform_1, window_bounds = array<i64: 1, 6>}, {pipeline_mode = #tpu.pipeline_mode<synchronous>, transform_indices = @transform_2, window_bounds = array<i64: 1, 6>}, {transform_indices = @transform_3, window_bounds = array<i64: 1, 6, 512>}, {transform_indices = @transform_4, window_bounds = array<i64: 1, 1, 512>}, {transform_indices = @transform_5, window_bounds = array<i64: 1, 512, 512>}, {transform_indices = @transform_6, window_bounds = array<i64: 1, 1, 512>}, {transform_indices = @transform_7, window_bounds = array<i64: 1, 512, 512>}, {transform_indices = @transform_8, window_bounds = array<i64: 1, 1, 512>}, {transform_indices = @transform_9, window_bounds = array<i64: 1, 512, 8>}, {transform_indices = @transform_10, window_bounds = array<i64: 1, 1, 8>}, {pipeline_mode = #tpu.pipeline_mode<synchronous>, transform_indices = @transform_11, window_bounds = array<i64: 1, 4>}, {pipeline_mode = #tpu.pipeline_mode<synchronous>, transform_indices = @transform_12, window_bounds = array<i64: 1, 4>}, {transform_indices = @transform_13, window_bounds = array<i64: 1, 32, 8>}]} {
    %c0 = arith.constant 0 : index
    %c0_0 = arith.constant 0 : index
    %c0_1 = arith.constant 0 : index
    %0 = vector.load %arg2[%c0, %c0_0, %c0_1] : memref<1x32x6xf32, #tpu.memory_space<vmem>>, vector<1x32x6xf32>
    %1 = vector.shape_cast %0 : vector<1x32x6xf32> to vector<32x6xf32>
    %c0_2 = arith.constant 0 : index
    %c0_3 = arith.constant 0 : index
    %2 = vector.load %arg3[%c0_2, %c0_3] : memref<1x6xf32, #tpu.memory_space<vmem>>, vector<1x6xf32>
    %3 = vector.broadcast %2 : vector<1x6xf32> to vector<32x6xf32>
    %4 = arith.subf %1, %3 : vector<32x6xf32>
    %c0_4 = arith.constant 0 : index
    %c0_5 = arith.constant 0 : index
    %5 = vector.load %arg4[%c0_4, %c0_5] : memref<1x6xf32, #tpu.memory_space<vmem>>, vector<1x6xf32>
    %6 = vector.broadcast %5 : vector<1x6xf32> to vector<32x6xf32>
    %7 = arith.mulf %4, %6 : vector<32x6xf32>
    %8 = arith.truncf %7 : vector<32x6xf32> to vector<32x6xbf16>
    %c0_6 = arith.constant 0 : index
    %c0_7 = arith.constant 0 : index
    %c0_8 = arith.constant 0 : index
    %9 = vector.load %arg5[%c0_6, %c0_7, %c0_8] : memref<1x6x512xbf16, #tpu.memory_space<vmem>>, vector<1x6x512xbf16>
    %10 = vector.shape_cast %9 : vector<1x6x512xbf16> to vector<6x512xbf16>
    %cst = arith.constant dense<0.000000e+00> : vector<32x512xf32>
    %11 = tpu.matmul %8, %10, %cst {dimension_numbers = #tpu.dot_dimension_numbers<[1], [0], [0], [1], [0, 0, 1, 1], [], []>} : vector<32x6xbf16>, vector<6x512xbf16>, vector<32x512xf32> -> vector<32x512xf32>
    %c0_9 = arith.constant 0 : index
    %c0_10 = arith.constant 0 : index
    %c0_11 = arith.constant 0 : index
    %12 = vector.load %arg6[%c0_9, %c0_10, %c0_11] : memref<1x1x512xf32, #tpu.memory_space<vmem>>, vector<1x1x512xf32>
    %13 = vector.shape_cast %12 : vector<1x1x512xf32> to vector<1x512xf32>
    %14 = vector.broadcast %13 : vector<1x512xf32> to vector<32x512xf32>
    %15 = arith.addf %11, %14 : vector<32x512xf32>
    %16 = arith.negf %15 : vector<32x512xf32>
    %17 = math.exp %16 : vector<32x512xf32>
    %cst_12 = arith.constant 1.000000e+00 : f32
    %18 = vector.broadcast %cst_12 : f32 to vector<32x512xf32>
    %19 = arith.addf %18, %17 : vector<32x512xf32>
    %20 = arith.divf %18, %19 : vector<32x512xf32>
    %21 = arith.mulf %15, %20 : vector<32x512xf32>
    %22 = arith.truncf %21 : vector<32x512xf32> to vector<32x512xbf16>
    %c0_13 = arith.constant 0 : index
    %c0_14 = arith.constant 0 : index
    %c0_15 = arith.constant 0 : index
    %23 = vector.load %arg7[%c0_13, %c0_14, %c0_15] : memref<1x512x512xbf16, #tpu.memory_space<vmem>>, vector<1x512x512xbf16>
    %24 = vector.shape_cast %23 : vector<1x512x512xbf16> to vector<512x512xbf16>
    %cst_16 = arith.constant dense<0.000000e+00> : vector<32x512xf32>
    %25 = tpu.matmul %22, %24, %cst_16 {dimension_numbers = #tpu.dot_dimension_numbers<[1], [0], [0], [1], [0, 0, 1, 1], [], []>} : vector<32x512xbf16>, vector<512x512xbf16>, vector<32x512xf32> -> vector<32x512xf32>
    %c0_17 = arith.constant 0 : index
    %c0_18 = arith.constant 0 : index
    %c0_19 = arith.constant 0 : index
    %26 = vector.load %arg8[%c0_17, %c0_18, %c0_19] : memref<1x1x512xf32, #tpu.memory_space<vmem>>, vector<1x1x512xf32>
    %27 = vector.shape_cast %26 : vector<1x1x512xf32> to vector<1x512xf32>
    %28 = vector.broadcast %27 : vector<1x512xf32> to vector<32x512xf32>
    %29 = arith.addf %25, %28 : vector<32x512xf32>
    %30 = arith.negf %29 : vector<32x512xf32>
    %31 = math.exp %30 : vector<32x512xf32>
    %cst_20 = arith.constant 1.000000e+00 : f32
    %32 = vector.broadcast %cst_20 : f32 to vector<32x512xf32>
    %33 = arith.addf %32, %31 : vector<32x512xf32>
    %34 = arith.divf %32, %33 : vector<32x512xf32>
    %35 = arith.mulf %29, %34 : vector<32x512xf32>
    %36 = arith.truncf %35 : vector<32x512xf32> to vector<32x512xbf16>
    %c0_21 = arith.constant 0 : index
    %c0_22 = arith.constant 0 : index
    %c0_23 = arith.constant 0 : index
    %37 = vector.load %arg9[%c0_21, %c0_22, %c0_23] : memref<1x512x512xbf16, #tpu.memory_space<vmem>>, vector<1x512x512xbf16>
    %38 = vector.shape_cast %37 : vector<1x512x512xbf16> to vector<512x512xbf16>
    %cst_24 = arith.constant dense<0.000000e+00> : vector<32x512xf32>
    %39 = tpu.matmul %36, %38, %cst_24 {dimension_numbers = #tpu.dot_dimension_numbers<[1], [0], [0], [1], [0, 0, 1, 1], [], []>} : vector<32x512xbf16>, vector<512x512xbf16>, vector<32x512xf32> -> vector<32x512xf32>
    %c0_25 = arith.constant 0 : index
    %c0_26 = arith.constant 0 : index
    %c0_27 = arith.constant 0 : index
    %40 = vector.load %arg10[%c0_25, %c0_26, %c0_27] : memref<1x1x512xf32, #tpu.memory_space<vmem>>, vector<1x1x512xf32>
    %41 = vector.shape_cast %40 : vector<1x1x512xf32> to vector<1x512xf32>
    %42 = vector.broadcast %41 : vector<1x512xf32> to vector<32x512xf32>
    %43 = arith.addf %39, %42 : vector<32x512xf32>
    %44 = arith.negf %43 : vector<32x512xf32>
    %45 = math.exp %44 : vector<32x512xf32>
    %cst_28 = arith.constant 1.000000e+00 : f32
    %46 = vector.broadcast %cst_28 : f32 to vector<32x512xf32>
    %47 = arith.addf %46, %45 : vector<32x512xf32>
    %48 = arith.divf %46, %47 : vector<32x512xf32>
    %49 = arith.mulf %43, %48 : vector<32x512xf32>
    %50 = arith.truncf %49 : vector<32x512xf32> to vector<32x512xbf16>
    %c0_29 = arith.constant 0 : index
    %c0_30 = arith.constant 0 : index
    %c0_31 = arith.constant 0 : index
    %51 = vector.load %arg11[%c0_29, %c0_30, %c0_31] : memref<1x512x8xbf16, #tpu.memory_space<vmem>>, vector<1x512x8xbf16>
    %52 = vector.shape_cast %51 : vector<1x512x8xbf16> to vector<512x8xbf16>
    %cst_32 = arith.constant dense<0.000000e+00> : vector<32x8xf32>
    %53 = tpu.matmul %50, %52, %cst_32 {dimension_numbers = #tpu.dot_dimension_numbers<[1], [0], [0], [1], [0, 0, 1, 1], [], []>} : vector<32x512xbf16>, vector<512x8xbf16>, vector<32x8xf32> -> vector<32x8xf32>
    %c0_33 = arith.constant 0 : index
    %c0_34 = arith.constant 0 : index
    %c0_35 = arith.constant 0 : index
    %54 = vector.load %arg12[%c0_33, %c0_34, %c0_35] : memref<1x1x8xf32, #tpu.memory_space<vmem>>, vector<1x1x8xf32>
    %55 = vector.shape_cast %54 : vector<1x1x8xf32> to vector<1x8xf32>
    %56 = vector.broadcast %55 : vector<1x8xf32> to vector<32x8xf32>
    %57 = arith.addf %53, %56 : vector<32x8xf32>
    %58 = vector.extract_strided_slice %57 {offsets = [0, 0], sizes = [32, 4], strides = [1, 1]} : vector<32x8xf32> to vector<32x4xf32>
    %59 = vector.extract_strided_slice %57 {offsets = [0, 4], sizes = [32, 4], strides = [1, 1]} : vector<32x8xf32> to vector<32x4xf32>
    %c0_36 = arith.constant 0 : index
    %c0_37 = arith.constant 0 : index
    %60 = vector.load %arg13[%c0_36, %c0_37] : memref<1x4xf32, #tpu.memory_space<vmem>>, vector<1x4xf32>
    %c0_38 = arith.constant 0 : index
    %c0_39 = arith.constant 0 : index
    %61 = vector.load %arg14[%c0_38, %c0_39] : memref<1x4xf32, #tpu.memory_space<vmem>>, vector<1x4xf32>
    %62 = vector.broadcast %60 : vector<1x4xf32> to vector<32x4xf32>
    %63 = arith.subf %62, %59 : vector<32x4xf32>
    %cst_40 = arith.constant 0.000000e+00 : f32
    %64 = vector.broadcast %cst_40 : f32 to vector<32x4xf32>
    %65 = arith.maximumf %63, %64 : vector<32x4xf32>
    %66 = vector.broadcast %cst_40 : f32 to vector<32x4xf32>
    %67 = arith.subf %63, %66 : vector<32x4xf32>
    %68 = arith.cmpf one, %67, %67 : vector<32x4xf32>
    %69 = vector.broadcast %cst_40 : f32 to vector<32x4xf32>
    %70 = arith.addf %63, %69 : vector<32x4xf32>
    %71 = math.absf %67 : vector<32x4xf32>
    %cst_41 = arith.constant 0.000000e+00 : f32
    %72 = vector.broadcast %cst_41 : f32 to vector<32x4xf32>
    %73 = arith.subf %72, %71 : vector<32x4xf32>
    %74 = math.exp %73 : vector<32x4xf32>
    %75 = math.log1p %74 : vector<32x4xf32>
    %76 = arith.addf %65, %75 : vector<32x4xf32>
    %77 = arith.select %68, %70, %76 : vector<32x4xi1>, vector<32x4xf32>
    %78 = vector.broadcast %60 : vector<1x4xf32> to vector<32x4xf32>
    %79 = arith.subf %78, %77 : vector<32x4xf32>
    %80 = vector.broadcast %61 : vector<1x4xf32> to vector<32x4xf32>
    %81 = arith.subf %79, %80 : vector<32x4xf32>
    %cst_42 = arith.constant 0.000000e+00 : f32
    %82 = vector.broadcast %cst_42 : f32 to vector<32x4xf32>
    %83 = arith.maximumf %81, %82 : vector<32x4xf32>
    %84 = vector.broadcast %cst_42 : f32 to vector<32x4xf32>
    %85 = arith.subf %81, %84 : vector<32x4xf32>
    %86 = arith.cmpf one, %85, %85 : vector<32x4xf32>
    %87 = vector.broadcast %cst_42 : f32 to vector<32x4xf32>
    %88 = arith.addf %81, %87 : vector<32x4xf32>
    %89 = math.absf %85 : vector<32x4xf32>
    %cst_43 = arith.constant 0.000000e+00 : f32
    %90 = vector.broadcast %cst_43 : f32 to vector<32x4xf32>
    %91 = arith.subf %90, %89 : vector<32x4xf32>
    %92 = math.exp %91 : vector<32x4xf32>
    %93 = math.log1p %92 : vector<32x4xf32>
    %94 = arith.addf %83, %93 : vector<32x4xf32>
    %95 = arith.select %86, %88, %94 : vector<32x4xi1>, vector<32x4xf32>
    %96 = vector.broadcast %61 : vector<1x4xf32> to vector<32x4xf32>
    %97 = arith.addf %96, %95 : vector<32x4xf32>
    %98 = math.exp %97 : vector<32x4xf32>
    %99 = tpu.concatenate %58, %98 in 1 : vector<32x4xf32>, vector<32x4xf32> -> vector<32x8xf32>
    %c0_44 = arith.constant 0 : index
    %c0_45 = arith.constant 0 : index
    %c0_46 = arith.constant 0 : index
    %100 = vector.load %arg15[%c0_44, %c0_45, %c0_46] : memref<1x32x8xf32, #tpu.memory_space<vmem>>, vector<1x32x8xf32>
    %101 = vector.shape_cast %100 : vector<1x32x8xf32> to vector<32x8xf32>
    %102 = vector.shape_cast %99 : vector<32x8xf32> to vector<1x32x8xf32>
    tpu.vector_store %arg15[%c0_44, %c0_45, %c0_46], %102 {strides = array<i32>} : memref<1x32x8xf32, #tpu.memory_space<vmem>>, vector<1x32x8xf32>,
    return
  }
  func.func @transform_0(%arg0: i32, %arg1: i32) -> (i32, i32, i32) {
    %c0_i32 = arith.constant 0 : i32
    %c0_i32_0 = arith.constant 0 : i32
    return %arg0, %arg1, %c0_i32 : i32, i32, i32
  }
  func.func @transform_1(%arg0: i32, %arg1: i32) -> (i32, i32) {
    %c0_i32 = arith.constant 0 : i32
    %c0_i32_0 = arith.constant 0 : i32
    %c0_i32_1 = arith.constant 0 : i32
    return %c0_i32, %c0_i32_0 : i32, i32
  }
  func.func @transform_2(%arg0: i32, %arg1: i32) -> (i32, i32) {
    %c0_i32 = arith.constant 0 : i32
    %c0_i32_0 = arith.constant 0 : i32
    %c0_i32_1 = arith.constant 0 : i32
    return %c0_i32, %c0_i32_0 : i32, i32
  }
  func.func @transform_3(%arg0: i32, %arg1: i32) -> (i32, i32, i32) {
    %c0_i32 = arith.constant 0 : i32
    %c0_i32_0 = arith.constant 0 : i32
    %c0_i32_1 = arith.constant 0 : i32
    return %arg0, %c0_i32, %c0_i32_0 : i32, i32, i32
  }
  func.func @transform_4(%arg0: i32, %arg1: i32) -> (i32, i32, i32) {
    %c0_i32 = arith.constant 0 : i32
    %c0_i32_0 = arith.constant 0 : i32
    %c0_i32_1 = arith.constant 0 : i32
    return %arg0, %c0_i32, %c0_i32_0 : i32, i32, i32
  }
  func.func @transform_5(%arg0: i32, %arg1: i32) -> (i32, i32, i32) {
    %c0_i32 = arith.constant 0 : i32
    %c0_i32_0 = arith.constant 0 : i32
    %c0_i32_1 = arith.constant 0 : i32
    return %arg0, %c0_i32, %c0_i32_0 : i32, i32, i32
  }
  func.func @transform_6(%arg0: i32, %arg1: i32) -> (i32, i32, i32) {
    %c0_i32 = arith.constant 0 : i32
    %c0_i32_0 = arith.constant 0 : i32
    %c0_i32_1 = arith.constant 0 : i32
    return %arg0, %c0_i32, %c0_i32_0 : i32, i32, i32
  }
  func.func @transform_7(%arg0: i32, %arg1: i32) -> (i32, i32, i32) {
    %c0_i32 = arith.constant 0 : i32
    %c0_i32_0 = arith.constant 0 : i32
    %c0_i32_1 = arith.constant 0 : i32
    return %arg0, %c0_i32, %c0_i32_0 : i32, i32, i32
  }
  func.func @transform_8(%arg0: i32, %arg1: i32) -> (i32, i32, i32) {
    %c0_i32 = arith.constant 0 : i32
    %c0_i32_0 = arith.constant 0 : i32
    %c0_i32_1 = arith.constant 0 : i32
    return %arg0, %c0_i32, %c0_i32_0 : i32, i32, i32
  }
  func.func @transform_9(%arg0: i32, %arg1: i32) -> (i32, i32, i32) {
    %c0_i32 = arith.constant 0 : i32
    %c0_i32_0 = arith.constant 0 : i32
    %c0_i32_1 = arith.constant 0 : i32
    return %arg0, %c0_i32, %c0_i32_0 : i32, i32, i32
  }
  func.func @transform_10(%arg0: i32, %arg1: i32) -> (i32, i32, i32) {
    %c0_i32 = arith.constant 0 : i32
    %c0_i32_0 = arith.constant 0 : i32
    %c0_i32_1 = arith.constant 0 : i32
    return %arg0, %c0_i32, %c0_i32_0 : i32, i32, i32
  }
  func.func @transform_11(%arg0: i32, %arg1: i32) -> (i32, i32) {
    %c0_i32 = arith.constant 0 : i32
    %c0_i32_0 = arith.constant 0 : i32
    %c0_i32_1 = arith.constant 0 : i32
    return %c0_i32, %c0_i32_0 : i32, i32
  }
  func.func @transform_12(%arg0: i32, %arg1: i32) -> (i32, i32) {
    %c0_i32 = arith.constant 0 : i32
    %c0_i32_0 = arith.constant 0 : i32
    %c0_i32_1 = arith.constant 0 : i32
    return %c0_i32, %c0_i32_0 : i32, i32
  }
  func.func @transform_13(%arg0: i32, %arg1: i32) -> (i32, i32, i32) {
    %c0_i32 = arith.constant 0 : i32
    %c0_i32_0 = arith.constant 0 : i32
    return %arg0, %arg1, %c0_i32 : i32, i32, i32
  }
}

</mosaic_0001>

<llo_original>
// kernel: tpu_custom_call.1
$region0: #{tpu_custom_call.1}
  #allocation0 [shape = 'u32[]', space=smem, size = 0x4, offset = 0x4, fixed_abs, tag = 'smem constant byte address 0x4 - core index']
  #allocation1 [shape = 'u32[72,128]{1,0:T(1,128)}', space=vmem, size = 0x9000, scoped, tag = 'internal scratch']
  %s0 = inlined_call_operand.vmem [shape: f32[2,32,6], index: 0, kind: input, shape index: {}]
  %s1 = inlined_call_operand.vmem [shape: f32[1,6], index: 1, kind: input, shape index: {}]
  %s2 = inlined_call_operand.vmem [shape: f32[1,6], index: 2, kind: input, shape index: {}]
  %s3 = inlined_call_operand.vmem [shape: bf16[2,6,512], index: 3, kind: input, shape index: {}]
  %s4 = inlined_call_operand.vmem [shape: f32[2,1,512], index: 4, kind: input, shape index: {}]
  %s5 = inlined_call_operand.hbm [shape: bf16[2,512,512], index: 5, kind: input, shape index: {}]
  %s6 = inlined_call_operand.vmem [shape: f32[2,1,512], index: 6, kind: input, shape index: {}]
  %s7 = inlined_call_operand.hbm [shape: bf16[2,512,512], index: 7, kind: input, shape index: {}]
  %s8 = inlined_call_operand.vmem [shape: f32[2,1,512], index: 8, kind: input, shape index: {}]
  %s9 = inlined_call_operand.vmem [shape: bf16[2,512,8], index: 9, kind: input, shape index: {}]
  %s10 = inlined_call_operand.vmem [shape: f32[2,1,8], index: 10, kind: input, shape index: {}]
  %s11 = inlined_call_operand.vmem [shape: f32[1,4], index: 11, kind: input, shape index: {}]
  %s12 = inlined_call_operand.vmem [shape: f32[1,4], index: 12, kind: input, shape index: {}]
  %s13 = inlined_call_operand.vmem [shape: f32[2,32,8], index: 13, kind: output, shape index: {}]
  %s14 = sld [smem:[#allocation0]]
  $region93: #{tpu_custom_call.1} parent=0
    _
  %s16 = ssub.s32 1, %s14
  %s17 = scalar_select 0, %s16, %s14
  $region1: #{tpu_custom_call.1} parent=0
    #allocation2 [shape = 'u8[1048576]{0}', space=vmem, size = 0x100000, scoped, tag = 'input window, operand 5']
    #allocation3 [shape = 's32[2]{0}', space=sflag, size = 0x8, scoped, tag = 'scoped memory for tpu_custom_call.1']
    #allocation4 [shape = 'u8[1048576]{0}', space=vmem, size = 0x100000, scoped, tag = 'input window, operand 7']
    #allocation5 [shape = 's32[2]{0}', space=sflag, size = 0x8, scoped, tag = 'scoped memory for tpu_custom_call.1']
    %18 = vsyncpa [#allocation3], 0
    %s19 = scalar_lea.sflag [#allocation3], 1
    %20 = vsyncpa %s19, 0
    %21 = vsyncpa [#allocation5], 0
    %s22 = scalar_lea.sflag [#allocation5], 1
    %23 = vsyncpa %s22, 0
    loop: start=0, step=1, limit=4
    $region2: #{tpu_custom_call.1} parent=1 // loop_pre_header
      _
    $region3: #{tpu_custom_call.1} parent=1 // loop_header
      %s25 = sphi 0, %s29
      %p26 = scmp.ge.s32.totalorder %s25, 4
      %s32 = sphi 0, %s44
      %s33 = sphi 0, %s40
      %s34 = sphi 0, %s32
      %s35 = sphi 0, %s33
      %s36 = sphi 0, %s34
      %s37 = sphi 0, %s35
      %s49 = sphi 0, %s51
      %s52 = sphi 0, %s49
      %s53 = sphi 0, %s52
      %s69 = sphi 0, %s53
      %s73 = sphi 0, %s73
      %s75 = sphi 0, %s73
      %s76 = sphi 0, %s75
      %s90 = sphi 0, %s76
      %s94 = sphi 0, %s94
      %s96 = sphi 0, %s94
      %s97 = sphi 0, %s96
      %s111 = sphi 0, %s97
      %s117 = sphi 0, %s119
      %s120 = sphi 0, %s117
      %s121 = sphi 0, %s120
      %s137 = sphi 0, %s121
      %s143 = sphi 0, %s145
      %s146 = sphi 0, %s143
      %s147 = sphi 0, %s146
      %s163 = sphi 0, %s147
      %s169 = sphi 0, %s171
      %s172 = sphi 0, %s169
      %s173 = sphi 0, %s172
      %s189 = sphi 0, %s173
      %s195 = sphi 0, %s197
      %s198 = sphi 0, %s195
      %s199 = sphi 0, %s198
      %s215 = sphi 0, %s199
      %s221 = sphi 0, %s223
      %s224 = sphi 0, %s221
      %s225 = sphi 0, %s224
      %s241 = sphi 0, %s225
      %s247 = sphi 0, %s249
      %s250 = sphi 0, %s247
      %s251 = sphi 0, %s250
      %s267 = sphi 0, %s251
      %s273 = sphi 0, %s275
      %s276 = sphi 0, %s273
      %s277 = sphi 0, %s276
      %s293 = sphi 0, %s277
      %s299 = sphi 0, %s301
      %s302 = sphi 0, %s299
      %s303 = sphi 0, %s302
      %s319 = sphi 0, %s303
      %s323 = sphi 0, %s323
      %s325 = sphi 0, %s323
      %s326 = sphi 0, %s325
      %s340 = sphi 0, %s326
      %s344 = sphi 0, %s344
      %s346 = sphi 0, %s344
      %s347 = sphi 0, %s346
      %s361 = sphi 0, %s347
      %s369 = sphi 0, %s371
      %s372 = sphi 0, %s369
      %s373 = sphi 0, %s372
      %s389 = sphi 0, %s373
    $region4: #{tpu_custom_call.1} parent=1 // loop_header_branch
      %28 = sbr.rel (%p26) target = $region8
    $region5: #{tpu_custom_call.1} parent=1 // loop_body
      %s30 = ssub.s32 %s25, 1
      %s31 = ssub.s32 %s25, 2
      %s38 = sadd.s32 1, %s33
      %p39 = scmp.ge.s32.totalorder %s38, 1
      %s40 = scalar_select %p39, 0, %s38
      %s41 = sadd.s32 1, %s32
      %s42 = scalar_select %p39, %s41, %s32
      %p43 = scmp.ge.s32.totalorder %s42, 2
      %s44 = scalar_select %p43, 0, %s42
      %s45 = ssub.s32 %s32, %s44
      %s46 = ssub.s32 %s33, %s40
      %s47 = sor.u32 %s45, %s46
      %p48 = scmp.eq.s32.totalorder %s47, 0
      %s50 = sadd.s32 %s49, 1
      %s51 = scalar_select %p48, %s49, %s50
      %p54 = pneg %p48
      %p55 = scmp.eq.s32.totalorder %s25, 1
      %p56 = por %p54, %p55
      %p57 = scmp.ne.s32.totalorder %s49, %s52
      %p58 = scmp.eq.s32.totalorder %s25, 0
      %p59 = por %p57, %p58
      %p60 = scmp.ne.s32.totalorder %s49, %s52
      %p61 = scmp.eq.s32.totalorder %s30, 1
      %p62 = por %p60, %p61
      %p63 = scmp.ne.s32.totalorder %s52, %s53
      %p64 = scmp.eq.s32.totalorder %s30, 0
      %p65 = por %p63, %p64
      %p66 = scmp.ne.s32.totalorder %s52, %s53
      %p67 = scmp.eq.s32.totalorder %s31, 1
      %p68 = por %p66, %p67
      %p70 = scmp.ne.s32.totalorder %s53, %s69
      %p71 = scmp.eq.s32.totalorder %s31, 0
      %p72 = por %p70, %p71
      %s74 = sadd.s32 %s73, 1
      %p77 = scmp.eq.s32.totalorder %s25, 1
      %p78 = scmp.ne.s32.totalorder %s73, %s75
      %p79 = scmp.eq.s32.totalorder %s25, 0
      %p80 = por %p78, %p79
      %p81 = scmp.ne.s32.totalorder %s73, %s75
      %p82 = scmp.eq.s32.totalorder %s30, 1
      %p83 = por %p81, %p82
      %p84 = scmp.ne.s32.totalorder %s75, %s76
      %p85 = scmp.eq.s32.totalorder %s30, 0
      %p86 = por %p84, %p85
      %p87 = scmp.ne.s32.totalorder %s75, %s76
      %p88 = scmp.eq.s32.totalorder %s31, 1
      %p89 = por %p87, %p88
      %p91 = scmp.ne.s32.totalorder %s76, %s90
      %p92 = scmp.eq.s32.totalorder %s31, 0
      %p93 = por %p91, %p92
      %s95 = sadd.s32 %s94, 1
      %p98 = scmp.eq.s32.totalorder %s25, 1
      %p99 = scmp.ne.s32.totalorder %s94, %s96
      %p100 = scmp.eq.s32.totalorder %s25, 0
      %p101 = por %p99, %p100
      %p102 = scmp.ne.s32.totalorder %s94, %s96
      %p103 = scmp.eq.s32.totalorder %s30, 1
      %p104 = por %p102, %p103
      %p105 = scmp.ne.s32.totalorder %s96, %s97
      %p106 = scmp.eq.s32.totalorder %s30, 0
      %p107 = por %p105, %p106
      %p108 = scmp.ne.s32.totalorder %s96, %s97
      %p109 = scmp.eq.s32.totalorder %s31, 1
      %p110 = por %p108, %p109
      %p112 = scmp.ne.s32.totalorder %s97, %s111
      %p113 = scmp.eq.s32.totalorder %s31, 0
      %p114 = por %p112, %p113
      %s115 = ssub.s32 %s32, %s44
      %p116 = scmp.eq.s32.totalorder %s115, 0
      %s118 = sadd.s32 %s117, 1
      %s119 = scalar_select %p116, %s117, %s118
      %p122 = pneg %p116
      %p123 = scmp.eq.s32.totalorder %s25, 1
      %p124 = por %p122, %p123
      %p125 = scmp.ne.s32.totalorder %s117, %s120
      %p126 = scmp.eq.s32.totalorder %s25, 0
      %p127 = por %p125, %p126
      %p128 = scmp.ne.s32.totalorder %s117, %s120
      %p129 = scmp.eq.s32.totalorder %s30, 1
      %p130 = por %p128, %p129
      %p131 = scmp.ne.s32.totalorder %s120, %s121
      %p132 = scmp.eq.s32.totalorder %s30, 0
      %p133 = por %p131, %p132
      %p134 = scmp.ne.s32.totalorder %s120, %s121
      %p135 = scmp.eq.s32.totalorder %s31, 1
      %p136 = por %p134, %p135
      %p138 = scmp.ne.s32.totalorder %s121, %s137
      %p139 = scmp.eq.s32.totalorder %s31, 0
      %p140 = por %p138, %p139
      %s141 = ssub.s32 %s32, %s44
      %p142 = scmp.eq.s32.totalorder %s141, 0
      %s144 = sadd.s32 %s143, 1
      %s145 = scalar_select %p142, %s143, %s144
      %p148 = pneg %p142
      %p149 = scmp.eq.s32.totalorder %s25, 1
      %p150 = por %p148, %p149
      %p151 = scmp.ne.s32.totalorder %s143, %s146
      %p152 = scmp.eq.s32.totalorder %s25, 0
      %p153 = por %p151, %p152
      %p154 = scmp.ne.s32.totalorder %s143, %s146
      %p155 = scmp.eq.s32.totalorder %s30, 1
      %p156 = por %p154, %p155
      %p157 = scmp.ne.s32.totalorder %s146, %s147
      %p158 = scmp.eq.s32.totalorder %s30, 0
      %p159 = por %p157, %p158
      %p160 = scmp.ne.s32.totalorder %s146, %s147
      %p161 = scmp.eq.s32.totalorder %s31, 1
      %p162 = por %p160, %p161
      %p164 = scmp.ne.s32.totalorder %s147, %s163
      %p165 = scmp.eq.s32.totalorder %s31, 0
      %p166 = por %p164, %p165
      %s167 = ssub.s32 %s32, %s44
      %p168 = scmp.eq.s32.totalorder %s167, 0
      %s170 = sadd.s32 %s169, 1
      %s171 = scalar_select %p168, %s169, %s170
      %p174 = pneg %p168
      %p175 = scmp.eq.s32.totalorder %s25, 1
      %p176 = por %p174, %p175
      %p177 = scmp.ne.s32.totalorder %s169, %s172
      %p178 = scmp.eq.s32.totalorder %s25, 0
      %p179 = por %p177, %p178
      %p180 = scmp.ne.s32.totalorder %s169, %s172
      %p181 = scmp.eq.s32.totalorder %s30, 1
      %p182 = por %p180, %p181
      %p183 = scmp.ne.s32.totalorder %s172, %s173
      %p184 = scmp.eq.s32.totalorder %s30, 0
      %p185 = por %p183, %p184
      %p186 = scmp.ne.s32.totalorder %s172, %s173
      %p187 = scmp.eq.s32.totalorder %s31, 1
      %p188 = por %p186, %p187
      %p190 = scmp.ne.s32.totalorder %s173, %s189
      %p191 = scmp.eq.s32.totalorder %s31, 0
      %p192 = por %p190, %p191
      %s193 = ssub.s32 %s32, %s44
      %p194 = scmp.eq.s32.totalorder %s193, 0
      %s196 = sadd.s32 %s195, 1
      %s197 = scalar_select %p194, %s195, %s196
      %p200 = pneg %p194
      %p201 = scmp.eq.s32.totalorder %s25, 1
      %p202 = por %p200, %p201
      %p203 = scmp.ne.s32.totalorder %s195, %s198
      %p204 = scmp.eq.s32.totalorder %s25, 0
      %p205 = por %p203, %p204
      %p206 = scmp.ne.s32.totalorder %s195, %s198
      %p207 = scmp.eq.s32.totalorder %s30, 1
      %p208 = por %p206, %p207
      %p209 = scmp.ne.s32.totalorder %s198, %s199
      %p210 = scmp.eq.s32.totalorder %s30, 0
      %p211 = por %p209, %p210
      %p212 = scmp.ne.s32.totalorder %s198, %s199
      %p213 = scmp.eq.s32.totalorder %s31, 1
      %p214 = por %p212, %p213
      %p216 = scmp.ne.s32.totalorder %s199, %s215
      %p217 = scmp.eq.s32.totalorder %s31, 0
      %p218 = por %p216, %p217
      %s219 = ssub.s32 %s32, %s44
      %p220 = scmp.eq.s32.totalorder %s219, 0
      %s222 = sadd.s32 %s221, 1
      %s223 = scalar_select %p220, %s221, %s222
      %p226 = pneg %p220
      %p227 = scmp.eq.s32.totalorder %s25, 1
      %p228 = por %p226, %p227
      %p229 = scmp.ne.s32.totalorder %s221, %s224
      %p230 = scmp.eq.s32.totalorder %s25, 0
      %p231 = por %p229, %p230
      %p232 = scmp.ne.s32.totalorder %s221, %s224
      %p233 = scmp.eq.s32.totalorder %s30, 1
      %p234 = por %p232, %p233
      %p235 = scmp.ne.s32.totalorder %s224, %s225
      %p236 = scmp.eq.s32.totalorder %s30, 0
      %p237 = por %p235, %p236
      %p238 = scmp.ne.s32.totalorder %s224, %s225
      %p239 = scmp.eq.s32.totalorder %s31, 1
      %p240 = por %p238, %p239
      %p242 = scmp.ne.s32.totalorder %s225, %s241
      %p243 = scmp.eq.s32.totalorder %s31, 0
      %p244 = por %p242, %p243
      %s245 = ssub.s32 %s32, %s44
      %p246 = scmp.eq.s32.totalorder %s245, 0
      %s248 = sadd.s32 %s247, 1
      %s249 = scalar_select %p246, %s247, %s248
      %p252 = pneg %p246
      %p253 = scmp.eq.s32.totalorder %s25, 1
      %p254 = por %p252, %p253
      %p255 = scmp.ne.s32.totalorder %s247, %s250
      %p256 = scmp.eq.s32.totalorder %s25, 0
      %p257 = por %p255, %p256
      %p258 = scmp.ne.s32.totalorder %s247, %s250
      %p259 = scmp.eq.s32.totalorder %s30, 1
      %p260 = por %p258, %p259
      %p261 = scmp.ne.s32.totalorder %s250, %s251
      %p262 = scmp.eq.s32.totalorder %s30, 0
      %p263 = por %p261, %p262
      %p264 = scmp.ne.s32.totalorder %s250, %s251
      %p265 = scmp.eq.s32.totalorder %s31, 1
      %p266 = por %p264, %p265
      %p268 = scmp.ne.s32.totalorder %s251, %s267
      %p269 = scmp.eq.s32.totalorder %s31, 0
      %p270 = por %p268, %p269
      %s271 = ssub.s32 %s32, %s44
      %p272 = scmp.eq.s32.totalorder %s271, 0
      %s274 = sadd.s32 %s273, 1
      %s275 = scalar_select %p272, %s273, %s274
      %p278 = pneg %p272
      %p279 = scmp.eq.s32.totalorder %s25, 1
      %p280 = por %p278, %p279
      %p281 = scmp.ne.s32.totalorder %s273, %s276
      %p282 = scmp.eq.s32.totalorder %s25, 0
      %p283 = por %p281, %p282
      %p284 = scmp.ne.s32.totalorder %s273, %s276
      %p285 = scmp.eq.s32.totalorder %s30, 1
      %p286 = por %p284, %p285
      %p287 = scmp.ne.s32.totalorder %s276, %s277
      %p288 = scmp.eq.s32.totalorder %s30, 0
      %p289 = por %p287, %p288
      %p290 = scmp.ne.s32.totalorder %s276, %s277
      %p291 = scmp.eq.s32.totalorder %s31, 1
      %p292 = por %p290, %p291
      %p294 = scmp.ne.s32.totalorder %s277, %s293
      %p295 = scmp.eq.s32.totalorder %s31, 0
      %p296 = por %p294, %p295
      %s297 = ssub.s32 %s32, %s44
      %p298 = scmp.eq.s32.totalorder %s297, 0
      %s300 = sadd.s32 %s299, 1
      %s301 = scalar_select %p298, %s299, %s300
      %p304 = pneg %p298
      %p305 = scmp.eq.s32.totalorder %s25, 1
      %p306 = por %p304, %p305
      %p307 = scmp.ne.s32.totalorder %s299, %s302
      %p308 = scmp.eq.s32.totalorder %s25, 0
      %p309 = por %p307, %p308
      %p310 = scmp.ne.s32.totalorder %s299, %s302
      %p311 = scmp.eq.s32.totalorder %s30, 1
      %p312 = por %p310, %p311
      %p313 = scmp.ne.s32.totalorder %s302, %s303
      %p314 = scmp.eq.s32.totalorder %s30, 0
      %p315 = por %p313, %p314
      %p316 = scmp.ne.s32.totalorder %s302, %s303
      %p317 = scmp.eq.s32.totalorder %s31, 1
      %p318 = por %p316, %p317
      %p320 = scmp.ne.s32.totalorder %s303, %s319
      %p321 = scmp.eq.s32.totalorder %s31, 0
      %p322 = por %p320, %p321
      %s324 = sadd.s32 %s323, 1
      %p327 = scmp.eq.s32.totalorder %s25, 1
      %p328 = scmp.ne.s32.totalorder %s323, %s325
      %p329 = scmp.eq.s32.totalorder %s25, 0
      %p330 = por %p328, %p329
      %p331 = scmp.ne.s32.totalorder %s323, %s325
      %p332 = scmp.eq.s32.totalorder %s30, 1
      %p333 = por %p331, %p332
      %p334 = scmp.ne.s32.totalorder %s325, %s326
      %p335 = scmp.eq.s32.totalorder %s30, 0
      %p336 = por %p334, %p335
      %p337 = scmp.ne.s32.totalorder %s325, %s326
      %p338 = scmp.eq.s32.totalorder %s31, 1
      %p339 = por %p337, %p338
      %p341 = scmp.ne.s32.totalorder %s326, %s340
      %p342 = scmp.eq.s32.totalorder %s31, 0
      %p343 = por %p341, %p342
      %s345 = sadd.s32 %s344, 1
      %p348 = scmp.eq.s32.totalorder %s25, 1
      %p349 = scmp.ne.s32.totalorder %s344, %s346
      %p350 = scmp.eq.s32.totalorder %s25, 0
      %p351 = por %p349, %p350
      %p352 = scmp.ne.s32.totalorder %s344, %s346
      %p353 = scmp.eq.s32.totalorder %s30, 1
      %p354 = por %p352, %p353
      %p355 = scmp.ne.s32.totalorder %s346, %s347
      %p356 = scmp.eq.s32.totalorder %s30, 0
      %p357 = por %p355, %p356
      %p358 = scmp.ne.s32.totalorder %s346, %s347
      %p359 = scmp.eq.s32.totalorder %s31, 1
      %p360 = por %p358, %p359
      %p362 = scmp.ne.s32.totalorder %s347, %s361
      %p363 = scmp.eq.s32.totalorder %s31, 0
      %p364 = por %p362, %p363
      %s365 = ssub.s32 %s32, %s44
      %s366 = ssub.s32 %s33, %s40
      %s367 = sor.u32 %s365, %s366
      %p368 = scmp.eq.s32.totalorder %s367, 0
      %s370 = sadd.s32 %s369, 1
      %s371 = scalar_select %p368, %s369, %s370
      %p374 = pneg %p368
      %p375 = scmp.eq.s32.totalorder %s25, 1
      %p376 = por %p374, %p375
      %p377 = scmp.ne.s32.totalorder %s369, %s372
      %p378 = scmp.eq.s32.totalorder %s25, 0
      %p379 = por %p377, %p378
      %p380 = scmp.ne.s32.totalorder %s369, %s372
      %p381 = scmp.eq.s32.totalorder %s30, 1
      %p382 = por %p380, %p381
      %p383 = scmp.ne.s32.totalorder %s372, %s373
      %p384 = scmp.eq.s32.totalorder %s30, 0
      %p385 = por %p383, %p384
      %p386 = scmp.ne.s32.totalorder %s372, %s373
      %p387 = scmp.eq.s32.totalorder %s31, 1
      %p388 = por %p386, %p387
      %p390 = scmp.ne.s32.totalorder %s373, %s389
      %p391 = scmp.eq.s32.totalorder %s31, 0
      %p392 = por %p390, %p391
      %p393 = scmp.le.s32.totalorder 1, %s25
      %p394 = scmp.lt.s32.totalorder %s25, 3
      %p395 = pnand %p393, %p394
      %p396 = pneg %p395
      // Predicated region
      $region9: #{tpu_custom_call.1} parent=5 // pred_check
        _
      $region10: #{tpu_custom_call.1} parent=5 // pred_check_branch
        %398 = sbr.rel (%p395) target = $region12
      $region11: #{tpu_custom_call.1} parent=5 // pred_region
        %s399 = ssub.s32 %s25, 1
        // Predicated region
        $region13: #{tpu_custom_call.1} parent=11 // pred_check
          %p400 = pneg %p86
        $region14: #{tpu_custom_call.1} parent=11 // pred_check_branch
          %402 = sbr.rel (%p400) target = $region16
        $region15: #{tpu_custom_call.1} parent=11 // pred_region
          _
        $region16: #{tpu_custom_call.1} parent=11 // pred_fallthru
          _
        // Predicated region
        $region17: #{tpu_custom_call.1} parent=11 // pred_check
          %p403 = pneg %p107
        $region18: #{tpu_custom_call.1} parent=11 // pred_check_branch
          %405 = sbr.rel (%p403) target = $region20
        $region19: #{tpu_custom_call.1} parent=11 // pred_region
          _
        $region20: #{tpu_custom_call.1} parent=11 // pred_fallthru
          _
        // Predicated region
        $region21: #{tpu_custom_call.1} parent=11 // pred_check
          %p406 = pneg %p336
        $region22: #{tpu_custom_call.1} parent=11 // pred_check_branch
          %408 = sbr.rel (%p406) target = $region24
        $region23: #{tpu_custom_call.1} parent=11 // pred_region
          _
        $region24: #{tpu_custom_call.1} parent=11 // pred_fallthru
          _
        // Predicated region
        $region25: #{tpu_custom_call.1} parent=11 // pred_check
          %p409 = pneg %p357
        $region26: #{tpu_custom_call.1} parent=11 // pred_check_branch
          %411 = sbr.rel (%p409) target = $region28
        $region27: #{tpu_custom_call.1} parent=11 // pred_region
          _
        $region28: #{tpu_custom_call.1} parent=11 // pred_fallthru
          _
      $region12: #{tpu_custom_call.1} parent=5 // pred_fallthru
        _
      %p412 = scmp.lt.s32.totalorder %s25, 2
      // Predicated region
      $region29: #{tpu_custom_call.1} parent=5 // pred_check
        %p413 = pneg %p412
      $region30: #{tpu_custom_call.1} parent=5 // pred_check_branch
        %415 = sbr.rel (%p413) target = $region32
      $region31: #{tpu_custom_call.1} parent=5 // pred_region
        // Predicated region
        $region33: #{tpu_custom_call.1} parent=31 // pred_check
          %p416 = pneg %p59
        $region34: #{tpu_custom_call.1} parent=31 // pred_check_branch
          %418 = sbr.rel (%p416) target = $region36
        $region35: #{tpu_custom_call.1} parent=31 // pred_region
          %s419 = smul.u32 4, %s33
          %p420 = scmp.lt.s32.totalorder %s32, 1
          %s421 = scalar_select %p420, %s32, 1
          %p422 = scmp.lt.s32.totalorder %s419, 3
          %s423 = scalar_select %p422, %s419, 3
          %s424 = smul.addr %s421, 4
          %s425 = sadd.s32 %s423, %s424
          %s426 = smul.addr %s425, 8
          %s427 = scalar_lea.vmem %s0, %s426
          %s428 = smul.u32 4, %s33
        $region36: #{tpu_custom_call.1} parent=31 // pred_fallthru
          _
        // Predicated region
        $region37: #{tpu_custom_call.1} parent=31 // pred_check
          %p429 = pneg %p127
        $region38: #{tpu_custom_call.1} parent=31 // pred_check_branch
          %431 = sbr.rel (%p429) target = $region40
        $region39: #{tpu_custom_call.1} parent=31 // pred_region
          %p432 = scmp.lt.s32.totalorder %s32, 1
          %s433 = scalar_select %p432, %s32, 1
          %s434 = smul.addr %s433, 4
          %s435 = smul.addr %s434, 4
          %s436 = scalar_lea.vmem %s3, %s435
        $region40: #{tpu_custom_call.1} parent=31 // pred_fallthru
          _
        // Predicated region
        $region41: #{tpu_custom_call.1} parent=31 // pred_check
          %p437 = pneg %p153
        $region42: #{tpu_custom_call.1} parent=31 // pred_check_branch
          %439 = sbr.rel (%p437) target = $region44
        $region43: #{tpu_custom_call.1} parent=31 // pred_region
          %p440 = scmp.lt.s32.totalorder %s32, 1
          %s441 = scalar_select %p440, %s32, 1
          %s442 = smul.addr %s441, 4
          %s443 = scalar_lea.vmem %s4, %s442
        $region44: #{tpu_custom_call.1} parent=31 // pred_fallthru
          _
        // Predicated region
        $region45: #{tpu_custom_call.1} parent=31 // pred_check
          %p444 = pneg %p179
        $region46: #{tpu_custom_call.1} parent=31 // pred_check_branch
          %446 = sbr.rel (%p444) target = $region48
        $region47: #{tpu_custom_call.1} parent=31 // pred_region
          %s447 = sand.u32 %s169, 1
          %s448 = scalar_lea.sflag [#allocation3], %s447
          %s449 = sand.u32 %s169, 1
          %s450 = smul.addr %s449, 1024
          %s451 = scalar_lea.vmem [#allocation2], %s450
          %453 = vsyncadd %s448, 0
          %s454 = smul.addr %s32, 256
          %s455 = smul.addr %s454, 4
          %s456 = scalar_lea.hbm %s5, %s455
          %s457 = sshll.u32 %s456, 4
          %s458 = int_to_ptr.hbm [resolvable:$true] %s457
          %s459 = sshll.u32 %s451, 4
          %s460 = int_to_ptr.vmem [resolvable:$true] %s459
          %465 = dma.hbm_to_vmem [thread:$0]  %s458, 16384, %s460, %s448, 256, 256, 16
        $region48: #{tpu_custom_call.1} parent=31 // pred_fallthru
          _
        // Predicated region
        $region49: #{tpu_custom_call.1} parent=31 // pred_check
          %p466 = pneg %p205
        $region50: #{tpu_custom_call.1} parent=31 // pred_check_branch
          %468 = sbr.rel (%p466) target = $region52
        $region51: #{tpu_custom_call.1} parent=31 // pred_region
          %p469 = scmp.lt.s32.totalorder %s32, 1
          %s470 = scalar_select %p469, %s32, 1
          %s471 = smul.addr %s470, 4
          %s472 = scalar_lea.vmem %s6, %s471
        $region52: #{tpu_custom_call.1} parent=31 // pred_fallthru
          _
        // Predicated region
        $region53: #{tpu_custom_call.1} parent=31 // pred_check
          %p473 = pneg %p231
        $region54: #{tpu_custom_call.1} parent=31 // pred_check_branch
          %475 = sbr.rel (%p473) target = $region56
        $region55: #{tpu_custom_call.1} parent=31 // pred_region
          %s476 = sand.u32 %s221, 1
          %s477 = scalar_lea.sflag [#allocation5], %s476
          %s478 = sand.u32 %s221, 1
          %s479 = smul.addr %s478, 1024
          %s480 = scalar_lea.vmem [#allocation4], %s479
          %482 = vsyncadd %s477, 0
          %s483 = smul.addr %s32, 256
          %s484 = smul.addr %s483, 4
          %s485 = scalar_lea.hbm %s7, %s484
          %s486 = sshll.u32 %s485, 4
          %s487 = int_to_ptr.hbm [resolvable:$true] %s486
          %s488 = sshll.u32 %s480, 4
          %s489 = int_to_ptr.vmem [resolvable:$true] %s488
          %494 = dma.hbm_to_vmem [thread:$0]  %s487, 16384, %s489, %s477, 256, 256, 16
        $region56: #{tpu_custom_call.1} parent=31 // pred_fallthru
          _
        // Predicated region
        $region57: #{tpu_custom_call.1} parent=31 // pred_check
          %p495 = pneg %p257
        $region58: #{tpu_custom_call.1} parent=31 // pred_check_branch
          %497 = sbr.rel (%p495) target = $region60
        $region59: #{tpu_custom_call.1} parent=31 // pred_region
          %p498 = scmp.lt.s32.totalorder %s32, 1
          %s499 = scalar_select %p498, %s32, 1
          %s500 = smul.addr %s499, 4
          %s501 = scalar_lea.vmem %s8, %s500
        $region60: #{tpu_custom_call.1} parent=31 // pred_fallthru
          _
        // Predicated region
        $region61: #{tpu_custom_call.1} parent=31 // pred_check
          %p502 = pneg %p283
        $region62: #{tpu_custom_call.1} parent=31 // pred_check_branch
          %504 = sbr.rel (%p502) target = $region64
        $region63: #{tpu_custom_call.1} parent=31 // pred_region
          %p505 = scmp.lt.s32.totalorder %s32, 1
          %s506 = scalar_select %p505, %s32, 1
          %s507 = smul.addr %s506, 64
          %s508 = smul.addr %s507, 4
          %s509 = scalar_lea.vmem %s9, %s508
        $region64: #{tpu_custom_call.1} parent=31 // pred_fallthru
          _
        // Predicated region
        $region65: #{tpu_custom_call.1} parent=31 // pred_check
          %p510 = pneg %p309
        $region66: #{tpu_custom_call.1} parent=31 // pred_check_branch
          %512 = sbr.rel (%p510) target = $region68
        $region67: #{tpu_custom_call.1} parent=31 // pred_region
          %p513 = scmp.lt.s32.totalorder %s32, 1
          %s514 = scalar_select %p513, %s32, 1
          %s515 = scalar_lea.vmem %s10, %s514
        $region68: #{tpu_custom_call.1} parent=31 // pred_fallthru
          _
      $region32: #{tpu_custom_call.1} parent=5 // pred_fallthru
        _
      %p516 = scmp.le.s32.totalorder 1, %s25
      %p517 = scmp.lt.s32.totalorder %s25, 3
      %p518 = pnand %p516, %p517
      %p519 = pneg %p518
      // Predicated region
      $region69: #{tpu_custom_call.1} parent=5 // pred_check
        _
      $region70: #{tpu_custom_call.1} parent=5 // pred_check_branch
        %521 = sbr.rel (%p518) target = $region72
      $region71: #{tpu_custom_call.1} parent=5 // pred_region
        %s522 = ssub.s32 %s25, 1
        %s523 = sand.u32 %s172, 1
        %s524 = scalar_lea.sflag [#allocation3], %s523
        %s525 = sand.u32 %s172, 1
        %s526 = smul.addr %s525, 1024
        %s527 = scalar_lea.vmem [#allocation2], %s526
        // Predicated region
        $region73: #{tpu_custom_call.1} parent=71 // pred_check
          %p528 = pneg %p185
        $region74: #{tpu_custom_call.1} parent=71 // pred_check_branch
          %530 = sbr.rel (%p528) target = $region76
        $region75: #{tpu_custom_call.1} parent=71 // pred_region
          %532 = dma.done %s524, 16384
        $region76: #{tpu_custom_call.1} parent=71 // pred_fallthru
          _
        %s533 = sand.u32 %s224, 1
        %s534 = scalar_lea.sflag [#allocation5], %s533
        %s535 = sand.u32 %s224, 1
        %s536 = smul.addr %s535, 1024
        %s537 = scalar_lea.vmem [#allocation4], %s536
        // Predicated region
        $region77: #{tpu_custom_call.1} parent=71 // pred_check
          %p538 = pneg %p237
        $region78: #{tpu_custom_call.1} parent=71 // pred_check_branch
          %540 = sbr.rel (%p538) target = $region80
        $region79: #{tpu_custom_call.1} parent=71 // pred_region
          %542 = dma.done %s534, 16384
        $region80: #{tpu_custom_call.1} parent=71 // pred_fallthru
          _
        %s543 = smul.u32 4, %s35
        %p544 = scmp.lt.s32.totalorder %s34, 1
        %s545 = scalar_select %p544, %s34, 1
        %p546 = scmp.lt.s32.totalorder %s543, 3
        %s547 = scalar_select %p546, %s543, 3
        %s548 = smul.addr %s545, 4
        %s549 = sadd.s32 %s547, %s548
        %s550 = smul.addr %s549, 8
        %s551 = scalar_lea.vmem %s0, %s550
        %p552 = pneg %p65
        %p553 = pneg %p62
        %p554 = pneg %p86
        %p555 = pneg %p83
        %p556 = pneg %p107
        %p557 = pneg %p104
        %p558 = scmp.lt.s32.totalorder %s34, 1
        %s559 = scalar_select %p558, %s34, 1
        %s560 = smul.addr %s559, 4
        %s561 = smul.addr %s560, 4
        %s562 = scalar_lea.vmem %s3, %s561
        %p563 = pneg %p133
        %p564 = pneg %p130
        %p565 = scmp.lt.s32.totalorder %s34, 1
        %s566 = scalar_select %p565, %s34, 1
        %s567 = smul.addr %s566, 4
        %s568 = scalar_lea.vmem %s4, %s567
        %p569 = pneg %p159
        %p570 = pneg %p156
        %s571 = sand.u32 %s172, 1
        %s572 = scalar_lea.sflag [#allocation3], %s571
        %s573 = sand.u32 %s172, 1
        %s574 = smul.addr %s573, 1024
        %s575 = scalar_lea.vmem [#allocation2], %s574
        %p576 = pneg %p185
        %p577 = pneg %p182
        %p578 = scmp.lt.s32.totalorder %s34, 1
        %s579 = scalar_select %p578, %s34, 1
        %s580 = smul.addr %s579, 4
        %s581 = scalar_lea.vmem %s6, %s580
        %p582 = pneg %p211
        %p583 = pneg %p208
        %s584 = sand.u32 %s224, 1
        %s585 = scalar_lea.sflag [#allocation5], %s584
        %s586 = sand.u32 %s224, 1
        %s587 = smul.addr %s586, 1024
        %s588 = scalar_lea.vmem [#allocation4], %s587
        %p589 = pneg %p237
        %p590 = pneg %p234
        %p591 = scmp.lt.s32.totalorder %s34, 1
        %s592 = scalar_select %p591, %s34, 1
        %s593 = smul.addr %s592, 4
        %s594 = scalar_lea.vmem %s8, %s593
        %p595 = pneg %p263
        %p596 = pneg %p260
        %p597 = scmp.lt.s32.totalorder %s34, 1
        %s598 = scalar_select %p597, %s34, 1
        %s599 = smul.addr %s598, 64
        %s600 = smul.addr %s599, 4
        %s601 = scalar_lea.vmem %s9, %s600
        %p602 = pneg %p289
        %p603 = pneg %p286
        %p604 = scmp.lt.s32.totalorder %s34, 1
        %s605 = scalar_select %p604, %s34, 1
        %s606 = scalar_lea.vmem %s10, %s605
        %p607 = pneg %p315
        %p608 = pneg %p312
        %p609 = pneg %p336
        %p610 = pneg %p333
        %p611 = pneg %p357
        %p612 = pneg %p354
        %p613 = pneg %p385
        %p614 = pneg %p382
        %s615 = smul.u32 4, %s35
        %p616 = scmp.lt.s32.totalorder %s34, 1
        %s617 = scalar_select %p616, %s34, 1
        %p618 = scmp.lt.s32.totalorder %s615, 3
        %s619 = scalar_select %p618, %s615, 3
        %s620 = smul.addr %s617, 4
        %s621 = sadd.s32 %s619, %s620
        %s622 = smul.addr %s621, 8
        %s623 = scalar_lea.vmem %s13, %s622
        %s624 = smul.u32 4, %s35
        %p625 = scmp.lt.s32.totalorder %s34, 1
        %s626 = scalar_select %p625, %s34, 1
        %p627 = scmp.lt.s32.totalorder %s624, 3
        %s628 = scalar_select %p627, %s624, 3
        %s629 = smul.addr %s626, 4
        %s630 = sadd.s32 %s628, %s629
        %s631 = smul.addr %s630, 8
        %s632 = scalar_lea.vmem %s0, %s631
        %s633 = smul.u32 4, %s35
        %p634 = scmp.lt.s32.totalorder %s34, 1
        %s635 = scalar_select %p634, %s34, 1
        %s636 = smul.addr %s635, 4
        %s637 = smul.addr %s636, 4
        %s638 = scalar_lea.vmem %s3, %s637
        %p639 = scmp.lt.s32.totalorder %s34, 1
        %s640 = scalar_select %p639, %s34, 1
        %s641 = smul.addr %s640, 4
        %s642 = scalar_lea.vmem %s4, %s641
        %p643 = scmp.lt.s32.totalorder %s34, 1
        %s644 = scalar_select %p643, %s34, 1
        %s645 = smul.addr %s644, 4
        %s646 = scalar_lea.vmem %s6, %s645
        %p647 = scmp.lt.s32.totalorder %s34, 1
        %s648 = scalar_select %p647, %s34, 1
        %s649 = smul.addr %s648, 4
        %s650 = scalar_lea.vmem %s8, %s649
        %p651 = scmp.lt.s32.totalorder %s34, 1
        %s652 = scalar_select %p651, %s34, 1
        %s653 = smul.addr %s652, 64
        %s654 = smul.addr %s653, 4
        %s655 = scalar_lea.vmem %s9, %s654
        %p656 = scmp.lt.s32.totalorder %s34, 1
        %s657 = scalar_select %p656, %s34, 1
        %s658 = scalar_lea.vmem %s10, %s657
        %s659 = smul.u32 4, %s35
        %p660 = scmp.lt.s32.totalorder %s34, 1
        %s661 = scalar_select %p660, %s34, 1
        %p662 = scmp.lt.s32.totalorder %s659, 3
        %s663 = scalar_select %p662, %s659, 3
        %s664 = smul.addr %s661, 4
        %s665 = sadd.s32 %s663, %s664
        %s666 = smul.addr %s665, 8
        %s667 = scalar_lea.vmem %s13, %s666
        %s668 = smul.u32 4, %s35
        %v670 = vld [vmem:[%s632] sm:$0xff]
        %v671 = vld [vmem:[%s632 + $0x8] sm:$0xff]
        %v672 = vld [vmem:[%s632 + $0x10] sm:$0xff]
        %v673 = vld [vmem:[%s632 + $0x18] sm:$0xff]
        %v674 = vld [vmem:[%s1] sm:$0x1]
        %v676 = vperm.slane %v674, 0
        %v678 = vsub.f32 %v670, %v676
        %v679 = vsub.f32 %v671, %v676
        %v680 = vsub.f32 %v672, %v676
        %v681 = vsub.f32 %v673, %v676
        %v682 = vld [vmem:[%s2] sm:$0x1]
        %v684 = vperm.slane %v682, 0
        %v686 = vmul.f32 %v678, %v684
        %v687 = vmul.f32 %v679, %v684
        %v688 = vmul.f32 %v680, %v684
        %v689 = vmul.f32 %v681, %v684
        %v690 = vpack.c.bf16 %v687, %v686
        %v691 = vpack.c.bf16 %v689, %v688
        %v692 = vld [vmem:[%s638] sm:$0x77]
        %v693 = vld [vmem:[%s638 + $0x8] sm:$0x77]
        %v694 = vld [vmem:[%s642] sm:$0xf]
        %v696 = vperm.slane %v694, 0
        %v697 = vperm.slane %v694, 1
        %v698 = vperm.slane %v694, 2
        %v699 = vperm.slane %v694, 3
        %v706 = vunpack.c.l.b16 %v692
        %v707 = vunpack.c.h.b16 %v692
        %v708 = vunpack.c.l.b16 %v693
        %v709 = vunpack.c.h.b16 %v693
        %v710 = vpack.c.b16 %v706, %v706
        %v711 = vpack.c.b16 %v707, %v707
        %v712 = vpack.c.b16 %v708, %v708
        %v713 = vpack.c.b16 %v709, %v709
        %vm714 = vcmask 48128
        %v716 = vsel %vm714, %v690, 0
        %v719 = vsel %vm714, %v691, 0
        %vm721 = vcmask 1042432
        %v723 = vsel %vm721, %v710, 0
        %v726 = vsel %vm721, %v711, 0
        %v729 = vsel %vm721, %v712, 0
        %v732 = vsel %vm721, %v713, 0
        %734 = vmatpush.bf16.msra.mxu0 0
        %735 = vmatpush.bf16.msra.mxu0 0
        %736 = vmatpush.bf16.msra.mxu0 0
        %737 = vmatpush.bf16.msra.mxu0 0
        %738 = vmatpush.bf16.msra.mxu0 0
        %739 = vmatpush.bf16.msra.mxu0 0
        %740 = vmatpush.bf16.msra.mxu0 0
        %741 = vmatpush.bf16.msra.mxu0 %v723
        %742 = vmatmul.bf16.gmra.mxu0 %v716
        %v743 = vpop.f32.mrf.mxu0
        %v744 = vadd.f32 %v696, %v743
        %v745 = vpop.f32.mrf.mxu0
        %v746 = vadd.f32 %v696, %v745
        %747 = vmatmul.bf16.gmra.mxu0 %v719
        %v748 = vpop.f32.mrf.mxu0
        %v749 = vadd.f32 %v696, %v748
        %v750 = vpop.f32.mrf.mxu0
        %v751 = vadd.f32 %v696, %v750
        %752 = vdwg.mxu0
        %753 = vmatpush.bf16.msra.mxu0 0
        %754 = vmatpush.bf16.msra.mxu0 0
        %755 = vmatpush.bf16.msra.mxu0 0
        %756 = vmatpush.bf16.msra.mxu0 0
        %757 = vmatpush.bf16.msra.mxu0 0
        %758 = vmatpush.bf16.msra.mxu0 0
        %759 = vmatpush.bf16.msra.mxu0 0
        %760 = vmatpush.bf16.msra.mxu0 %v726
        %761 = vmatmul.bf16.gmra.mxu0 %v716
        %v762 = vpop.f32.mrf.mxu0
        %v763 = vadd.f32 %v697, %v762
        %v764 = vpop.f32.mrf.mxu0
        %v765 = vadd.f32 %v697, %v764
        %766 = vmatmul.bf16.gmra.mxu0 %v719
        %v767 = vpop.f32.mrf.mxu0
        %v768 = vadd.f32 %v697, %v767
        %v769 = vpop.f32.mrf.mxu0
        %v770 = vadd.f32 %v697, %v769
        %771 = vdwg.mxu0
        %772 = vmatpush.bf16.msra.mxu0 0
        %773 = vmatpush.bf16.msra.mxu0 0
        %774 = vmatpush.bf16.msra.mxu0 0
        %775 = vmatpush.bf16.msra.mxu0 0
        %776 = vmatpush.bf16.msra.mxu0 0
        %777 = vmatpush.bf16.msra.mxu0 0
        %778 = vmatpush.bf16.msra.mxu0 0
        %779 = vmatpush.bf16.msra.mxu0 %v729
        %780 = vmatmul.bf16.gmra.mxu0 %v716
        %v781 = vpop.f32.mrf.mxu0
        %v782 = vadd.f32 %v698, %v781
        %v783 = vpop.f32.mrf.mxu0
        %v784 = vadd.f32 %v698, %v783
        %785 = vmatmul.bf16.gmra.mxu0 %v719
        %v786 = vpop.f32.mrf.mxu0
        %v787 = vadd.f32 %v698, %v786
        %v788 = vpop.f32.mrf.mxu0
        %v789 = vadd.f32 %v698, %v788
        %790 = vdwg.mxu0
        %791 = vmatpush.bf16.msra.mxu0 0
        %792 = vmatpush.bf16.msra.mxu0 0
        %793 = vmatpush.bf16.msra.mxu0 0
        %794 = vmatpush.bf16.msra.mxu0 0
        %795 = vmatpush.bf16.msra.mxu0 0
        %796 = vmatpush.bf16.msra.mxu0 0
        %797 = vmatpush.bf16.msra.mxu0 0
        %798 = vmatpush.bf16.msra.mxu0 %v732
        %799 = vmatmul.bf16.gmra.mxu0 %v716
        %v800 = vpop.f32.mrf.mxu0
        %v801 = vadd.f32 %v699, %v800
        %v802 = vpop.f32.mrf.mxu0
        %v803 = vadd.f32 %v699, %v802
        %804 = vmatmul.bf16.gmra.mxu0 %v719
        %v805 = vpop.f32.mrf.mxu0
        %v806 = vadd.f32 %v699, %v805
        %v807 = vpop.f32.mrf.mxu0
        %v808 = vadd.f32 %v699, %v807
        %809 = vdwg.mxu0
        %v810 = vxor.u32 %v744, 2147483648
        %v811 = vxor.u32 %v763, 2147483648
        %v812 = vxor.u32 %v782, 2147483648
        %v813 = vxor.u32 %v801, 2147483648
        %v814 = vxor.u32 %v746, 2147483648
        %v815 = vxor.u32 %v765, 2147483648
        %v816 = vxor.u32 %v784, 2147483648
        %v817 = vxor.u32 %v803, 2147483648
        %v818 = vxor.u32 %v749, 2147483648
        %v819 = vxor.u32 %v768, 2147483648
        %v820 = vxor.u32 %v787, 2147483648
        %v821 = vxor.u32 %v806, 2147483648
        %v822 = vxor.u32 %v751, 2147483648
        %v823 = vxor.u32 %v770, 2147483648
        %v824 = vxor.u32 %v789, 2147483648
        %v825 = vxor.u32 %v808, 2147483648
        %v826 = vmul.f32 %v810, 1.442695
        %v827 = vpow.pop %v826
        %v828 = vmul.f32 %v811, 1.442695
        %v829 = vpow.pop %v828
        %v830 = vmul.f32 %v812, 1.442695
        %v831 = vpow.pop %v830
        %v832 = vmul.f32 %v813, 1.442695
        %v833 = vpow.pop %v832
        %v834 = vmul.f32 %v814, 1.442695
        %v835 = vpow.pop %v834
        %v836 = vmul.f32 %v815, 1.442695
        %v837 = vpow.pop %v836
        %v838 = vmul.f32 %v816, 1.442695
        %v839 = vpow.pop %v838
        %v840 = vmul.f32 %v817, 1.442695
        %v841 = vpow.pop %v840
        %v842 = vmul.f32 %v818, 1.442695
        %v843 = vpow.pop %v842
        %v844 = vmul.f32 %v819, 1.442695
        %v845 = vpow.pop %v844
        %v846 = vmul.f32 %v820, 1.442695
        %v847 = vpow.pop %v846
        %v848 = vmul.f32 %v821, 1.442695
        %v849 = vpow.pop %v848
        %v850 = vmul.f32 %v822, 1.442695
        %v851 = vpow.pop %v850
        %v852 = vmul.f32 %v823, 1.442695
        %v853 = vpow.pop %v852
        %v854 = vmul.f32 %v824, 1.442695
        %v855 = vpow.pop %v854
        %v856 = vmul.f32 %v825, 1.442695
        %v857 = vpow.pop %v856
        %v858 = vadd.f32 %v827, 1.0
        %v859 = vadd.f32 %v829, 1.0
        %v860 = vadd.f32 %v831, 1.0
        %v861 = vadd.f32 %v833, 1.0
        %v862 = vadd.f32 %v835, 1.0
        %v863 = vadd.f32 %v837, 1.0
        %v864 = vadd.f32 %v839, 1.0
        %v865 = vadd.f32 %v841, 1.0
        %v866 = vadd.f32 %v843, 1.0
        %v867 = vadd.f32 %v845, 1.0
        %v868 = vadd.f32 %v847, 1.0
        %v869 = vadd.f32 %v849, 1.0
        %v870 = vadd.f32 %v851, 1.0
        %v871 = vadd.f32 %v853, 1.0
        %v872 = vadd.f32 %v855, 1.0
        %v873 = vadd.f32 %v857, 1.0
        %v874 = vrcp.pop %v858
        %v875 = vmul.f32 %v858, %v874
        %v876 = vsub.f32 1.0, %v875
        %v877 = vmul.f32 %v874, %v876
        %v878 = vadd.f32 %v874, %v877
        %vm879 = vweird.f32 %v858
        %vm880 = vweird.f32 %v874
        %vm881 = vmor %vm879, %vm880
        %v882 = vsel %vm881, %v874, %v878
        %v883 = vand.u32 2147483647, %v858
        %vm884 = vcmp.eq.f32.partialorder %v883, 8.507059e+37
        %v885 = vand.u32 %v858, 2147483648
        %v886 = vor.u32 1.1754944e-38, %v885
        %v887 = vsel %vm884, %v886, %v882
        %v888 = vmul.f32 1.0, %v887
        %v889 = vrcp.pop %v859
        %v890 = vmul.f32 %v859, %v889
        %v891 = vsub.f32 1.0, %v890
        %v892 = vmul.f32 %v889, %v891
        %v893 = vadd.f32 %v889, %v892
        %vm894 = vweird.f32 %v859
        %vm895 = vweird.f32 %v889
        %vm896 = vmor %vm894, %vm895
        %v897 = vsel %vm896, %v889, %v893
        %v898 = vand.u32 2147483647, %v859
        %vm899 = vcmp.eq.f32.partialorder %v898, 8.507059e+37
        %v900 = vand.u32 %v859, 2147483648
        %v901 = vor.u32 1.1754944e-38, %v900
        %v902 = vsel %vm899, %v901, %v897
        %v903 = vmul.f32 1.0, %v902
        %v904 = vrcp.pop %v860
        %v905 = vmul.f32 %v860, %v904
        %v906 = vsub.f32 1.0, %v905
        %v907 = vmul.f32 %v904, %v906
        %v908 = vadd.f32 %v904, %v907
        %vm909 = vweird.f32 %v860
        %vm910 = vweird.f32 %v904
        %vm911 = vmor %vm909, %vm910
        %v912 = vsel %vm911, %v904, %v908
        %v913 = vand.u32 2147483647, %v860
        %vm914 = vcmp.eq.f32.partialorder %v913, 8.507059e+37
        %v915 = vand.u32 %v860, 2147483648
        %v916 = vor.u32 1.1754944e-38, %v915
        %v917 = vsel %vm914, %v916, %v912
        %v918 = vmul.f32 1.0, %v917
        %v919 = vrcp.pop %v861
        %v920 = vmul.f32 %v861, %v919
        %v921 = vsub.f32 1.0, %v920
        %v922 = vmul.f32 %v919, %v921
        %v923 = vadd.f32 %v919, %v922
        %vm924 = vweird.f32 %v861
        %vm925 = vweird.f32 %v919
        %vm926 = vmor %vm924, %vm925
        %v927 = vsel %vm926, %v919, %v923
        %v928 = vand.u32 2147483647, %v861
        %vm929 = vcmp.eq.f32.partialorder %v928, 8.507059e+37
        %v930 = vand.u32 %v861, 2147483648
        %v931 = vor.u32 1.1754944e-38, %v930
        %v932 = vsel %vm929, %v931, %v927
        %v933 = vmul.f32 1.0, %v932
        %v934 = vrcp.pop %v862
        %v935 = vmul.f32 %v862, %v934
        %v936 = vsub.f32 1.0, %v935
        %v937 = vmul.f32 %v934, %v936
        %v938 = vadd.f32 %v934, %v937
        %vm939 = vweird.f32 %v862
        %vm940 = vweird.f32 %v934
        %vm941 = vmor %vm939, %vm940
        %v942 = vsel %vm941, %v934, %v938
        %v943 = vand.u32 2147483647, %v862
        %vm944 = vcmp.eq.f32.partialorder %v943, 8.507059e+37
        %v945 = vand.u32 %v862, 2147483648
        %v946 = vor.u32 1.1754944e-38, %v945
        %v947 = vsel %vm944, %v946, %v942
        %v948 = vmul.f32 1.0, %v947
        %v949 = vrcp.pop %v863
        %v950 = vmul.f32 %v863, %v949
        %v951 = vsub.f32 1.0, %v950
        %v952 = vmul.f32 %v949, %v951
        %v953 = vadd.f32 %v949, %v952
        %vm954 = vweird.f32 %v863
        %vm955 = vweird.f32 %v949
        %vm956 = vmor %vm954, %vm955
        %v957 = vsel %vm956, %v949, %v953
        %v958 = vand.u32 2147483647, %v863
        %vm959 = vcmp.eq.f32.partialorder %v958, 8.507059e+37
        %v960 = vand.u32 %v863, 2147483648
        %v961 = vor.u32 1.1754944e-38, %v960
        %v962 = vsel %vm959, %v961, %v957
        %v963 = vmul.f32 1.0, %v962
        %v964 = vrcp.pop %v864
        %v965 = vmul.f32 %v864, %v964
        %v966 = vsub.f32 1.0, %v965
        %v967 = vmul.f32 %v964, %v966
        %v968 = vadd.f32 %v964, %v967
        %vm969 = vweird.f32 %v864
        %vm970 = vweird.f32 %v964
        %vm971 = vmor %vm969, %vm970
        %v972 = vsel %vm971, %v964, %v968
        %v973 = vand.u32 2147483647, %v864
        %vm974 = vcmp.eq.f32.partialorder %v973, 8.507059e+37
        %v975 = vand.u32 %v864, 2147483648
        %v976 = vor.u32 1.1754944e-38, %v975
        %v977 = vsel %vm974, %v976, %v972
        %v978 = vmul.f32 1.0, %v977
        %v979 = vrcp.pop %v865
        %v980 = vmul.f32 %v865, %v979
        %v981 = vsub.f32 1.0, %v980
        %v982 = vmul.f32 %v979, %v981
        %v983 = vadd.f32 %v979, %v982
        %vm984 = vweird.f32 %v865
        %vm985 = vweird.f32 %v979
        %vm986 = vmor %vm984, %vm985
        %v987 = vsel %vm986, %v979, %v983
        %v988 = vand.u32 2147483647, %v865
        %vm989 = vcmp.eq.f32.partialorder %v988, 8.507059e+37
        %v990 = vand.u32 %v865, 2147483648
        %v991 = vor.u32 1.1754944e-38, %v990
        %v992 = vsel %vm989, %v991, %v987
        %v993 = vmul.f32 1.0, %v992
        %v994 = vrcp.pop %v866
        %v995 = vmul.f32 %v866, %v994
        %v996 = vsub.f32 1.0, %v995
        %v997 = vmul.f32 %v994, %v996
        %v998 = vadd.f32 %v994, %v997
        %vm999 = vweird.f32 %v866
        %vm1000 = vweird.f32 %v994
        %vm1001 = vmor %vm999, %vm1000
        %v1002 = vsel %vm1001, %v994, %v998
        %v1003 = vand.u32 2147483647, %v866
        %vm1004 = vcmp.eq.f32.partialorder %v1003, 8.507059e+37
        %v1005 = vand.u32 %v866, 2147483648
        %v1006 = vor.u32 1.1754944e-38, %v1005
        %v1007 = vsel %vm1004, %v1006, %v1002
        %v1008 = vmul.f32 1.0, %v1007
        %v1009 = vrcp.pop %v867
        %v1010 = vmul.f32 %v867, %v1009
        %v1011 = vsub.f32 1.0, %v1010
        %v1012 = vmul.f32 %v1009, %v1011
        %v1013 = vadd.f32 %v1009, %v1012
        %vm1014 = vweird.f32 %v867
        %vm1015 = vweird.f32 %v1009
        %vm1016 = vmor %vm1014, %vm1015
        %v1017 = vsel %vm1016, %v1009, %v1013
        %v1018 = vand.u32 2147483647, %v867
        %vm1019 = vcmp.eq.f32.partialorder %v1018, 8.507059e+37
        %v1020 = vand.u32 %v867, 2147483648
        %v1021 = vor.u32 1.1754944e-38, %v1020
        %v1022 = vsel %vm1019, %v1021, %v1017
        %v1023 = vmul.f32 1.0, %v1022
        %v1024 = vrcp.pop %v868
        %v1025 = vmul.f32 %v868, %v1024
        %v1026 = vsub.f32 1.0, %v1025
        %v1027 = vmul.f32 %v1024, %v1026
        %v1028 = vadd.f32 %v1024, %v1027
        %vm1029 = vweird.f32 %v868
        %vm1030 = vweird.f32 %v1024
        %vm1031 = vmor %vm1029, %vm1030
        %v1032 = vsel %vm1031, %v1024, %v1028
        %v1033 = vand.u32 2147483647, %v868
        %vm1034 = vcmp.eq.f32.partialorder %v1033, 8.507059e+37
        %v1035 = vand.u32 %v868, 2147483648
        %v1036 = vor.u32 1.1754944e-38, %v1035
        %v1037 = vsel %vm1034, %v1036, %v1032
        %v1038 = vmul.f32 1.0, %v1037
        %v1039 = vrcp.pop %v869
        %v1040 = vmul.f32 %v869, %v1039
        %v1041 = vsub.f32 1.0, %v1040
        %v1042 = vmul.f32 %v1039, %v1041
        %v1043 = vadd.f32 %v1039, %v1042
        %vm1044 = vweird.f32 %v869
        %vm1045 = vweird.f32 %v1039
        %vm1046 = vmor %vm1044, %vm1045
        %v1047 = vsel %vm1046, %v1039, %v1043
        %v1048 = vand.u32 2147483647, %v869
        %vm1049 = vcmp.eq.f32.partialorder %v1048, 8.507059e+37
        %v1050 = vand.u32 %v869, 2147483648
        %v1051 = vor.u32 1.1754944e-38, %v1050
        %v1052 = vsel %vm1049, %v1051, %v1047
        %v1053 = vmul.f32 1.0, %v1052
        %v1054 = vrcp.pop %v870
        %v1055 = vmul.f32 %v870, %v1054
        %v1056 = vsub.f32 1.0, %v1055
        %v1057 = vmul.f32 %v1054, %v1056
        %v1058 = vadd.f32 %v1054, %v1057
        %vm1059 = vweird.f32 %v870
        %vm1060 = vweird.f32 %v1054
        %vm1061 = vmor %vm1059, %vm1060
        %v1062 = vsel %vm1061, %v1054, %v1058
        %v1063 = vand.u32 2147483647, %v870
        %vm1064 = vcmp.eq.f32.partialorder %v1063, 8.507059e+37
        %v1065 = vand.u32 %v870, 2147483648
        %v1066 = vor.u32 1.1754944e-38, %v1065
        %v1067 = vsel %vm1064, %v1066, %v1062
        %v1068 = vmul.f32 1.0, %v1067
        %v1069 = vrcp.pop %v871
        %v1070 = vmul.f32 %v871, %v1069
        %v1071 = vsub.f32 1.0, %v1070
        %v1072 = vmul.f32 %v1069, %v1071
        %v1073 = vadd.f32 %v1069, %v1072
        %vm1074 = vweird.f32 %v871
        %vm1075 = vweird.f32 %v1069
        %vm1076 = vmor %vm1074, %vm1075
        %v1077 = vsel %vm1076, %v1069, %v1073
        %v1078 = vand.u32 2147483647, %v871
        %vm1079 = vcmp.eq.f32.partialorder %v1078, 8.507059e+37
        %v1080 = vand.u32 %v871, 2147483648
        %v1081 = vor.u32 1.1754944e-38, %v1080
        %v1082 = vsel %vm1079, %v1081, %v1077
        %v1083 = vmul.f32 1.0, %v1082
        %v1084 = vrcp.pop %v872
        %v1085 = vmul.f32 %v872, %v1084
        %v1086 = vsub.f32 1.0, %v1085
        %v1087 = vmul.f32 %v1084, %v1086
        %v1088 = vadd.f32 %v1084, %v1087
        %vm1089 = vweird.f32 %v872
        %vm1090 = vweird.f32 %v1084
        %vm1091 = vmor %vm1089, %vm1090
        %v1092 = vsel %vm1091, %v1084, %v1088
        %v1093 = vand.u32 2147483647, %v872
        %vm1094 = vcmp.eq.f32.partialorder %v1093, 8.507059e+37
        %v1095 = vand.u32 %v872, 2147483648
        %v1096 = vor.u32 1.1754944e-38, %v1095
        %v1097 = vsel %vm1094, %v1096, %v1092
        %v1098 = vmul.f32 1.0, %v1097
        %v1099 = vrcp.pop %v873
        %v1100 = vmul.f32 %v873, %v1099
        %v1101 = vsub.f32 1.0, %v1100
        %v1102 = vmul.f32 %v1099, %v1101
        %v1103 = vadd.f32 %v1099, %v1102
        %vm1104 = vweird.f32 %v873
        %vm1105 = vweird.f32 %v1099
        %vm1106 = vmor %vm1104, %vm1105
        %v1107 = vsel %vm1106, %v1099, %v1103
        %v1108 = vand.u32 2147483647, %v873
        %vm1109 = vcmp.eq.f32.partialorder %v1108, 8.507059e+37
        %v1110 = vand.u32 %v873, 2147483648
        %v1111 = vor.u32 1.1754944e-38, %v1110
        %v1112 = vsel %vm1109, %v1111, %v1107
        %v1113 = vmul.f32 1.0, %v1112
        %v1114 = vmul.f32 %v744, %v888
        %v1115 = vmul.f32 %v763, %v903
        %v1116 = vmul.f32 %v782, %v918
        %v1117 = vmul.f32 %v801, %v933
        %v1118 = vmul.f32 %v746, %v948
        %v1119 = vmul.f32 %v765, %v963
        %v1120 = vmul.f32 %v784, %v978
        %v1121 = vmul.f32 %v803, %v993
        %v1122 = vmul.f32 %v749, %v1008
        %v1123 = vmul.f32 %v768, %v1023
        %v1124 = vmul.f32 %v787, %v1038
        %v1125 = vmul.f32 %v806, %v1053
        %v1126 = vmul.f32 %v751, %v1068
        %v1127 = vmul.f32 %v770, %v1083
        %v1128 = vmul.f32 %v789, %v1098
        %v1129 = vmul.f32 %v808, %v1113
        %v1130 = vpack.c.bf16 %v1118, %v1114
        %v1131 = vpack.c.bf16 %v1119, %v1115
        %v1132 = vpack.c.bf16 %v1120, %v1116
        %v1133 = vpack.c.bf16 %v1121, %v1117
        %v1134 = vpack.c.bf16 %v1126, %v1122
        %v1135 = vpack.c.bf16 %v1127, %v1123
        %v1136 = vpack.c.bf16 %v1128, %v1124
        %v1137 = vpack.c.bf16 %v1129, %v1125
        %v1138 = vld [vmem:[%s527] sm:$0xff]
        %v1139 = vld [vmem:[%s527 + $0x8] sm:$0xff]
        %v1140 = vld [vmem:[%s527 + $0x10] sm:$0xff]
        %v1141 = vld [vmem:[%s527 + $0x18] sm:$0xff]
        %v1142 = vld [vmem:[%s527 + $0x20] sm:$0xff]
        %v1143 = vld [vmem:[%s527 + $0x28] sm:$0xff]
        %v1144 = vld [vmem:[%s527 + $0x30] sm:$0xff]
        %v1145 = vld [vmem:[%s527 + $0x38] sm:$0xff]
        %v1146 = vld [vmem:[%s527 + $0x40] sm:$0xff]
        %v1147 = vld [vmem:[%s527 + $0x48] sm:$0xff]
        %v1148 = vld [vmem:[%s527 + $0x50] sm:$0xff]
        %v1149 = vld [vmem:[%s527 + $0x58] sm:$0xff]
        %v1150 = vld [vmem:[%s527 + $0x60] sm:$0xff]
        %v1151 = vld [vmem:[%s527 + $0x68] sm:$0xff]
        %v1152 = vld [vmem:[%s527 + $0x70] sm:$0xff]
        %v1153 = vld [vmem:[%s527 + $0x78] sm:$0xff]
        %v1154 = vld [vmem:[%s527 + $0x80] sm:$0xff]
        %v1155 = vld [vmem:[%s527 + $0x88] sm:$0xff]
        %v1156 = vld [vmem:[%s527 + $0x90] sm:$0xff]
        %v1157 = vld [vmem:[%s527 + $0x98] sm:$0xff]
        %v1158 = vld [vmem:[%s527 + $0xa0] sm:$0xff]
        %v1159 = vld [vmem:[%s527 + $0xa8] sm:$0xff]
        %v1160 = vld [vmem:[%s527 + $0xb0] sm:$0xff]
        %v1161 = vld [vmem:[%s527 + $0xb8] sm:$0xff]
        %v1162 = vld [vmem:[%s527 + $0xc0] sm:$0xff]
        %v1163 = vld [vmem:[%s527 + $0xc8] sm:$0xff]
        %v1164 = vld [vmem:[%s527 + $0xd0] sm:$0xff]
        %v1165 = vld [vmem:[%s527 + $0xd8] sm:$0xff]
        %v1166 = vld [vmem:[%s527 + $0xe0] sm:$0xff]
        %v1167 = vld [vmem:[%s527 + $0xe8] sm:$0xff]
        %v1168 = vld [vmem:[%s527 + $0xf0] sm:$0xff]
        %v1169 = vld [vmem:[%s527 + $0xf8] sm:$0xff]
        %v1170 = vld [vmem:[%s527 + $0x100] sm:$0xff]
        %v1171 = vld [vmem:[%s527 + $0x108] sm:$0xff]
        %v1172 = vld [vmem:[%s527 + $0x110] sm:$0xff]
        %v1173 = vld [vmem:[%s527 + $0x118] sm:$0xff]
        %v1174 = vld [vmem:[%s527 + $0x120] sm:$0xff]
        %v1175 = vld [vmem:[%s527 + $0x128] sm:$0xff]
        %v1176 = vld [vmem:[%s527 + $0x130] sm:$0xff]
        %v1177 = vld [vmem:[%s527 + $0x138] sm:$0xff]
        %v1178 = vld [vmem:[%s527 + $0x140] sm:$0xff]
        %v1179 = vld [vmem:[%s527 + $0x148] sm:$0xff]
        %v1180 = vld [vmem:[%s527 + $0x150] sm:$0xff]
        %v1181 = vld [vmem:[%s527 + $0x158] sm:$0xff]
        %v1182 = vld [vmem:[%s527 + $0x160] sm:$0xff]
        %v1183 = vld [vmem:[%s527 + $0x168] sm:$0xff]
        %v1184 = vld [vmem:[%s527 + $0x170] sm:$0xff]
        %v1185 = vld [vmem:[%s527 + $0x178] sm:$0xff]
        %v1186 = vld [vmem:[%s527 + $0x180] sm:$0xff]
        %v1187 = vld [vmem:[%s527 + $0x188] sm:$0xff]
        %v1188 = vld [vmem:[%s527 + $0x190] sm:$0xff]
        %v1189 = vld [vmem:[%s527 + $0x198] sm:$0xff]
        %v1190 = vld [vmem:[%s527 + $0x1a0] sm:$0xff]
        %v1191 = vld [vmem:[%s527 + $0x1a8] sm:$0xff]
        %v1192 = vld [vmem:[%s527 + $0x1b0] sm:$0xff]
        %v1193 = vld [vmem:[%s527 + $0x1b8] sm:$0xff]
        %v1194 = vld [vmem:[%s527 + $0x1c0] sm:$0xff]
        %v1195 = vld [vmem:[%s527 + $0x1c8] sm:$0xff]
        %v1196 = vld [vmem:[%s527 + $0x1d0] sm:$0xff]
        %v1197 = vld [vmem:[%s527 + $0x1d8] sm:$0xff]
        %v1198 = vld [vmem:[%s527 + $0x1e0] sm:$0xff]
        %v1199 = vld [vmem:[%s527 + $0x1e8] sm:$0xff]
        %v1200 = vld [vmem:[%s527 + $0x1f0] sm:$0xff]
        %v1201 = vld [vmem:[%s527 + $0x1f8] sm:$0xff]
        %v1202 = vld [vmem:[%s527 + $0x200] sm:$0xff]
        %v1203 = vld [vmem:[%s527 + $0x208] sm:$0xff]
        %v1204 = vld [vmem:[%s527 + $0x210] sm:$0xff]
        %v1205 = vld [vmem:[%s527 + $0x218] sm:$0xff]
        %v1206 = vld [vmem:[%s527 + $0x220] sm:$0xff]
        %v1207 = vld [vmem:[%s527 + $0x228] sm:$0xff]
        %v1208 = vld [vmem:[%s527 + $0x230] sm:$0xff]
        %v1209 = vld [vmem:[%s527 + $0x238] sm:$0xff]
        %v1210 = vld [vmem:[%s527 + $0x240] sm:$0xff]
        %v1211 = vld [vmem:[%s527 + $0x248] sm:$0xff]
        %v1212 = vld [vmem:[%s527 + $0x250] sm:$0xff]
        %v1213 = vld [vmem:[%s527 + $0x258] sm:$0xff]
        %v1214 = vld [vmem:[%s527 + $0x260] sm:$0xff]
        %v1215 = vld [vmem:[%s527 + $0x268] sm:$0xff]
        %v1216 = vld [vmem:[%s527 + $0x270] sm:$0xff]
        %v1217 = vld [vmem:[%s527 + $0x278] sm:$0xff]
        %v1218 = vld [vmem:[%s527 + $0x280] sm:$0xff]
        %v1219 = vld [vmem:[%s527 + $0x288] sm:$0xff]
        %v1220 = vld [vmem:[%s527 + $0x290] sm:$0xff]
        %v1221 = vld [vmem:[%s527 + $0x298] sm:$0xff]
        %v1222 = vld [vmem:[%s527 + $0x2a0] sm:$0xff]
        %v1223 = vld [vmem:[%s527 + $0x2a8] sm:$0xff]
        %v1224 = vld [vmem:[%s527 + $0x2b0] sm:$0xff]
        %v1225 = vld [vmem:[%s527 + $0x2b8] sm:$0xff]
        %v1226 = vld [vmem:[%s527 + $0x2c0] sm:$0xff]
        %v1227 = vld [vmem:[%s527 + $0x2c8] sm:$0xff]
        %v1228 = vld [vmem:[%s527 + $0x2d0] sm:$0xff]
        %v1229 = vld [vmem:[%s527 + $0x2d8] sm:$0xff]
        %v1230 = vld [vmem:[%s527 + $0x2e0] sm:$0xff]
        %v1231 = vld [vmem:[%s527 + $0x2e8] sm:$0xff]
        %v1232 = vld [vmem:[%s527 + $0x2f0] sm:$0xff]
        %v1233 = vld [vmem:[%s527 + $0x2f8] sm:$0xff]
        %v1234 = vld [vmem:[%s527 + $0x300] sm:$0xff]
        %v1235 = vld [vmem:[%s527 + $0x308] sm:$0xff]
        %v1236 = vld [vmem:[%s527 + $0x310] sm:$0xff]
        %v1237 = vld [vmem:[%s527 + $0x318] sm:$0xff]
        %v1238 = vld [vmem:[%s527 + $0x320] sm:$0xff]
        %v1239 = vld [vmem:[%s527 + $0x328] sm:$0xff]
        %v1240 = vld [vmem:[%s527 + $0x330] sm:$0xff]
        %v1241 = vld [vmem:[%s527 + $0x338] sm:$0xff]
        %v1242 = vld [vmem:[%s527 + $0x340] sm:$0xff]
        %v1243 = vld [vmem:[%s527 + $0x348] sm:$0xff]
        %v1244 = vld [vmem:[%s527 + $0x350] sm:$0xff]
        %v1245 = vld [vmem:[%s527 + $0x358] sm:$0xff]
        %v1246 = vld [vmem:[%s527 + $0x360] sm:$0xff]
        %v1247 = vld [vmem:[%s527 + $0x368] sm:$0xff]
        %v1248 = vld [vmem:[%s527 + $0x370] sm:$0xff]
        %v1249 = vld [vmem:[%s527 + $0x378] sm:$0xff]
        %v1250 = vld [vmem:[%s527 + $0x380] sm:$0xff]
        %v1251 = vld [vmem:[%s527 + $0x388] sm:$0xff]
        %v1252 = vld [vmem:[%s527 + $0x390] sm:$0xff]
        %v1253 = vld [vmem:[%s527 + $0x398] sm:$0xff]
        %v1254 = vld [vmem:[%s527 + $0x3a0] sm:$0xff]
        %v1255 = vld [vmem:[%s527 + $0x3a8] sm:$0xff]
        %v1256 = vld [vmem:[%s527 + $0x3b0] sm:$0xff]
        %v1257 = vld [vmem:[%s527 + $0x3b8] sm:$0xff]
        %v1258 = vld [vmem:[%s527 + $0x3c0] sm:$0xff]
        %v1259 = vld [vmem:[%s527 + $0x3c8] sm:$0xff]
        %v1260 = vld [vmem:[%s527 + $0x3d0] sm:$0xff]
        %v1261 = vld [vmem:[%s527 + $0x3d8] sm:$0xff]
        %v1262 = vld [vmem:[%s527 + $0x3e0] sm:$0xff]
        %v1263 = vld [vmem:[%s527 + $0x3e8] sm:$0xff]
        %v1264 = vld [vmem:[%s527 + $0x3f0] sm:$0xff]
        %v1265 = vld [vmem:[%s527 + $0x3f8] sm:$0xff]
        %v1266 = vld [vmem:[%s646] sm:$0xf]
        %v1268 = vperm.slane %v1266, 0
        %v1269 = vperm.slane %v1266, 1
        %v1270 = vperm.slane %v1266, 2
        %v1271 = vperm.slane %v1266, 3
        %v1404 = vunpack.c.l.b16 %v1138
        %v1405 = vunpack.c.h.b16 %v1138
        %v1406 = vunpack.c.l.b16 %v1139
        %v1407 = vunpack.c.h.b16 %v1139
        %v1408 = vunpack.c.l.b16 %v1140
        %v1409 = vunpack.c.h.b16 %v1140
        %v1410 = vunpack.c.l.b16 %v1141
        %v1411 = vunpack.c.h.b16 %v1141
        %v1412 = vunpack.c.l.b16 %v1142
        %v1413 = vunpack.c.h.b16 %v1142
        %v1414 = vunpack.c.l.b16 %v1143
        %v1415 = vunpack.c.h.b16 %v1143
        %v1416 = vunpack.c.l.b16 %v1144
        %v1417 = vunpack.c.h.b16 %v1144
        %v1418 = vunpack.c.l.b16 %v1145
        %v1419 = vunpack.c.h.b16 %v1145
        %v1420 = vunpack.c.l.b16 %v1146
        %v1421 = vunpack.c.h.b16 %v1146
        %v1422 = vunpack.c.l.b16 %v1147
        %v1423 = vunpack.c.h.b16 %v1147
        %v1424 = vunpack.c.l.b16 %v1148
        %v1425 = vunpack.c.h.b16 %v1148
        %v1426 = vunpack.c.l.b16 %v1149
        %v1427 = vunpack.c.h.b16 %v1149
        %v1428 = vunpack.c.l.b16 %v1150
        %v1429 = vunpack.c.h.b16 %v1150
        %v1430 = vunpack.c.l.b16 %v1151
        %v1431 = vunpack.c.h.b16 %v1151
        %v1432 = vunpack.c.l.b16 %v1152
        %v1433 = vunpack.c.h.b16 %v1152
        %v1434 = vunpack.c.l.b16 %v1153
        %v1435 = vunpack.c.h.b16 %v1153
        %v1436 = vunpack.c.l.b16 %v1154
        %v1437 = vunpack.c.h.b16 %v1154
        %v1438 = vunpack.c.l.b16 %v1155
        %v1439 = vunpack.c.h.b16 %v1155
        %v1440 = vunpack.c.l.b16 %v1156
        %v1441 = vunpack.c.h.b16 %v1156
        %v1442 = vunpack.c.l.b16 %v1157
        %v1443 = vunpack.c.h.b16 %v1157
        %v1444 = vunpack.c.l.b16 %v1158
        %v1445 = vunpack.c.h.b16 %v1158
        %v1446 = vunpack.c.l.b16 %v1159
        %v1447 = vunpack.c.h.b16 %v1159
        %v1448 = vunpack.c.l.b16 %v1160
        %v1449 = vunpack.c.h.b16 %v1160
        %v1450 = vunpack.c.l.b16 %v1161
        %v1451 = vunpack.c.h.b16 %v1161
        %v1452 = vunpack.c.l.b16 %v1162
        %v1453 = vunpack.c.h.b16 %v1162
        %v1454 = vunpack.c.l.b16 %v1163
        %v1455 = vunpack.c.h.b16 %v1163
        %v1456 = vunpack.c.l.b16 %v1164
        %v1457 = vunpack.c.h.b16 %v1164
        %v1458 = vunpack.c.l.b16 %v1165
        %v1459 = vunpack.c.h.b16 %v1165
        %v1460 = vunpack.c.l.b16 %v1166
        %v1461 = vunpack.c.h.b16 %v1166
        %v1462 = vunpack.c.l.b16 %v1167
        %v1463 = vunpack.c.h.b16 %v1167
        %v1464 = vunpack.c.l.b16 %v1168
        %v1465 = vunpack.c.h.b16 %v1168
        %v1466 = vunpack.c.l.b16 %v1169
        %v1467 = vunpack.c.h.b16 %v1169
        %v1468 = vunpack.c.l.b16 %v1170
        %v1469 = vunpack.c.h.b16 %v1170
        %v1470 = vunpack.c.l.b16 %v1171
        %v1471 = vunpack.c.h.b16 %v1171
        %v1472 = vunpack.c.l.b16 %v1172
        %v1473 = vunpack.c.h.b16 %v1172
        %v1474 = vunpack.c.l.b16 %v1173
        %v1475 = vunpack.c.h.b16 %v1173
        %v1476 = vunpack.c.l.b16 %v1174
        %v1477 = vunpack.c.h.b16 %v1174
        %v1478 = vunpack.c.l.b16 %v1175
        %v1479 = vunpack.c.h.b16 %v1175
        %v1480 = vunpack.c.l.b16 %v1176
        %v1481 = vunpack.c.h.b16 %v1176
        %v1482 = vunpack.c.l.b16 %v1177
        %v1483 = vunpack.c.h.b16 %v1177
        %v1484 = vunpack.c.l.b16 %v1178
        %v1485 = vunpack.c.h.b16 %v1178
        %v1486 = vunpack.c.l.b16 %v1179
        %v1487 = vunpack.c.h.b16 %v1179
        %v1488 = vunpack.c.l.b16 %v1180
        %v1489 = vunpack.c.h.b16 %v1180
        %v1490 = vunpack.c.l.b16 %v1181
        %v1491 = vunpack.c.h.b16 %v1181
        %v1492 = vunpack.c.l.b16 %v1182
        %v1493 = vunpack.c.h.b16 %v1182
        %v1494 = vunpack.c.l.b16 %v1183
        %v1495 = vunpack.c.h.b16 %v1183
        %v1496 = vunpack.c.l.b16 %v1184
        %v1497 = vunpack.c.h.b16 %v1184
        %v1498 = vunpack.c.l.b16 %v1185
        %v1499 = vunpack.c.h.b16 %v1185
        %v1500 = vunpack.c.l.b16 %v1186
        %v1501 = vunpack.c.h.b16 %v1186
        %v1502 = vunpack.c.l.b16 %v1187
        %v1503 = vunpack.c.h.b16 %v1187
        %v1504 = vunpack.c.l.b16 %v1188
        %v1505 = vunpack.c.h.b16 %v1188
        %v1506 = vunpack.c.l.b16 %v1189
        %v1507 = vunpack.c.h.b16 %v1189
        %v1508 = vunpack.c.l.b16 %v1190
        %v1509 = vunpack.c.h.b16 %v1190
        %v1510 = vunpack.c.l.b16 %v1191
        %v1511 = vunpack.c.h.b16 %v1191
        %v1512 = vunpack.c.l.b16 %v1192
        %v1513 = vunpack.c.h.b16 %v1192
        %v1514 = vunpack.c.l.b16 %v1193
        %v1515 = vunpack.c.h.b16 %v1193
        %v1516 = vunpack.c.l.b16 %v1194
        %v1517 = vunpack.c.h.b16 %v1194
        %v1518 = vunpack.c.l.b16 %v1195
        %v1519 = vunpack.c.h.b16 %v1195
        %v1520 = vunpack.c.l.b16 %v1196
        %v1521 = vunpack.c.h.b16 %v1196
        %v1522 = vunpack.c.l.b16 %v1197
        %v1523 = vunpack.c.h.b16 %v1197
        %v1524 = vunpack.c.l.b16 %v1198
        %v1525 = vunpack.c.h.b16 %v1198
        %v1526 = vunpack.c.l.b16 %v1199
        %v1527 = vunpack.c.h.b16 %v1199
        %v1528 = vunpack.c.l.b16 %v1200
        %v1529 = vunpack.c.h.b16 %v1200
        %v1530 = vunpack.c.l.b16 %v1201
        %v1531 = vunpack.c.h.b16 %v1201
        %v1532 = vunpack.c.l.b16 %v1202
        %v1533 = vunpack.c.h.b16 %v1202
        %v1534 = vunpack.c.l.b16 %v1203
        %v1535 = vunpack.c.h.b16 %v1203
        %v1536 = vunpack.c.l.b16 %v1204
        %v1537 = vunpack.c.h.b16 %v1204
        %v1538 = vunpack.c.l.b16 %v1205
        %v1539 = vunpack.c.h.b16 %v1205
        %v1540 = vunpack.c.l.b16 %v1206
        %v1541 = vunpack.c.h.b16 %v1206
        %v1542 = vunpack.c.l.b16 %v1207
        %v1543 = vunpack.c.h.b16 %v1207
        %v1544 = vunpack.c.l.b16 %v1208
        %v1545 = vunpack.c.h.b16 %v1208
        %v1546 = vunpack.c.l.b16 %v1209
        %v1547 = vunpack.c.h.b16 %v1209
        %v1548 = vunpack.c.l.b16 %v1210
        %v1549 = vunpack.c.h.b16 %v1210
        %v1550 = vunpack.c.l.b16 %v1211
        %v1551 = vunpack.c.h.b16 %v1211
        %v1552 = vunpack.c.l.b16 %v1212
        %v1553 = vunpack.c.h.b16 %v1212
        %v1554 = vunpack.c.l.b16 %v1213
        %v1555 = vunpack.c.h.b16 %v1213
        %v1556 = vunpack.c.l.b16 %v1214
        %v1557 = vunpack.c.h.b16 %v1214
        %v1558 = vunpack.c.l.b16 %v1215
        %v1559 = vunpack.c.h.b16 %v1215
        %v1560 = vunpack.c.l.b16 %v1216
        %v1561 = vunpack.c.h.b16 %v1216
        %v1562 = vunpack.c.l.b16 %v1217
        %v1563 = vunpack.c.h.b16 %v1217
        %v1564 = vunpack.c.l.b16 %v1218
        %v1565 = vunpack.c.h.b16 %v1218
        %v1566 = vunpack.c.l.b16 %v1219
        %v1567 = vunpack.c.h.b16 %v1219
        %v1568 = vunpack.c.l.b16 %v1220
        %v1569 = vunpack.c.h.b16 %v1220
        %v1570 = vunpack.c.l.b16 %v1221
        %v1571 = vunpack.c.h.b16 %v1221
        %v1572 = vunpack.c.l.b16 %v1222
        %v1573 = vunpack.c.h.b16 %v1222
        %v1574 = vunpack.c.l.b16 %v1223
        %v1575 = vunpack.c.h.b16 %v1223
        %v1576 = vunpack.c.l.b16 %v1224
        %v1577 = vunpack.c.h.b16 %v1224
        %v1578 = vunpack.c.l.b16 %v1225
        %v1579 = vunpack.c.h.b16 %v1225
        %v1580 = vunpack.c.l.b16 %v1226
        %v1581 = vunpack.c.h.b16 %v1226
        %v1582 = vunpack.c.l.b16 %v1227
        %v1583 = vunpack.c.h.b16 %v1227
        %v1584 = vunpack.c.l.b16 %v1228
        %v1585 = vunpack.c.h.b16 %v1228
        %v1586 = vunpack.c.l.b16 %v1229
        %v1587 = vunpack.c.h.b16 %v1229
        %v1588 = vunpack.c.l.b16 %v1230
        %v1589 = vunpack.c.h.b16 %v1230
        %v1590 = vunpack.c.l.b16 %v1231
        %v1591 = vunpack.c.h.b16 %v1231
        %v1592 = vunpack.c.l.b16 %v1232
        %v1593 = vunpack.c.h.b16 %v1232
        %v1594 = vunpack.c.l.b16 %v1233
        %v1595 = vunpack.c.h.b16 %v1233
        %v1596 = vunpack.c.l.b16 %v1234
        %v1597 = vunpack.c.h.b16 %v1234
        %v1598 = vunpack.c.l.b16 %v1235
        %v1599 = vunpack.c.h.b16 %v1235
        %v1600 = vunpack.c.l.b16 %v1236
        %v1601 = vunpack.c.h.b16 %v1236
        %v1602 = vunpack.c.l.b16 %v1237
        %v1603 = vunpack.c.h.b16 %v1237
        %v1604 = vunpack.c.l.b16 %v1238
        %v1605 = vunpack.c.h.b16 %v1238
        %v1606 = vunpack.c.l.b16 %v1239
        %v1607 = vunpack.c.h.b16 %v1239
        %v1608 = vunpack.c.l.b16 %v1240
        %v1609 = vunpack.c.h.b16 %v1240
        %v1610 = vunpack.c.l.b16 %v1241
        %v1611 = vunpack.c.h.b16 %v1241
        %v1612 = vunpack.c.l.b16 %v1242
        %v1613 = vunpack.c.h.b16 %v1242
        %v1614 = vunpack.c.l.b16 %v1243
        %v1615 = vunpack.c.h.b16 %v1243
        %v1616 = vunpack.c.l.b16 %v1244
        %v1617 = vunpack.c.h.b16 %v1244
        %v1618 = vunpack.c.l.b16 %v1245
        %v1619 = vunpack.c.h.b16 %v1245
        %v1620 = vunpack.c.l.b16 %v1246
        %v1621 = vunpack.c.h.b16 %v1246
        %v1622 = vunpack.c.l.b16 %v1247
        %v1623 = vunpack.c.h.b16 %v1247
        %v1624 = vunpack.c.l.b16 %v1248
        %v1625 = vunpack.c.h.b16 %v1248
        %v1626 = vunpack.c.l.b16 %v1249
        %v1627 = vunpack.c.h.b16 %v1249
        %v1628 = vunpack.c.l.b16 %v1250
        %v1629 = vunpack.c.h.b16 %v1250
        %v1630 = vunpack.c.l.b16 %v1251
        %v1631 = vunpack.c.h.b16 %v1251
        %v1632 = vunpack.c.l.b16 %v1252
        %v1633 = vunpack.c.h.b16 %v1252
        %v1634 = vunpack.c.l.b16 %v1253
        %v1635 = vunpack.c.h.b16 %v1253
        %v1636 = vunpack.c.l.b16 %v1254
        %v1637 = vunpack.c.h.b16 %v1254
        %v1638 = vunpack.c.l.b16 %v1255
        %v1639 = vunpack.c.h.b16 %v1255
        %v1640 = vunpack.c.l.b16 %v1256
        %v1641 = vunpack.c.h.b16 %v1256
        %v1642 = vunpack.c.l.b16 %v1257
        %v1643 = vunpack.c.h.b16 %v1257
        %v1644 = vunpack.c.l.b16 %v1258
        %v1645 = vunpack.c.h.b16 %v1258
        %v1646 = vunpack.c.l.b16 %v1259
        %v1647 = vunpack.c.h.b16 %v1259
        %v1648 = vunpack.c.l.b16 %v1260
        %v1649 = vunpack.c.h.b16 %v1260
        %v1650 = vunpack.c.l.b16 %v1261
        %v1651 = vunpack.c.h.b16 %v1261
        %v1652 = vunpack.c.l.b16 %v1262
        %v1653 = vunpack.c.h.b16 %v1262
        %v1654 = vunpack.c.l.b16 %v1263
        %v1655 = vunpack.c.h.b16 %v1263
        %v1656 = vunpack.c.l.b16 %v1264
        %v1657 = vunpack.c.h.b16 %v1264
        %v1658 = vunpack.c.l.b16 %v1265
        %v1659 = vunpack.c.h.b16 %v1265
        %v1660 = vpack.c.b16 %v1408, %v1404
        %v1661 = vpack.c.b16 %v1409, %v1405
        %v1662 = vpack.c.b16 %v1410, %v1406
        %v1663 = vpack.c.b16 %v1411, %v1407
        %v1664 = vpack.c.b16 %v1416, %v1412
        %v1665 = vpack.c.b16 %v1417, %v1413
        %v1666 = vpack.c.b16 %v1418, %v1414
        %v1667 = vpack.c.b16 %v1419, %v1415
        %v1668 = vpack.c.b16 %v1424, %v1420
        %v1669 = vpack.c.b16 %v1425, %v1421
        %v1670 = vpack.c.b16 %v1426, %v1422
        %v1671 = vpack.c.b16 %v1427, %v1423
        %v1672 = vpack.c.b16 %v1432, %v1428
        %v1673 = vpack.c.b16 %v1433, %v1429
        %v1674 = vpack.c.b16 %v1434, %v1430
        %v1675 = vpack.c.b16 %v1435, %v1431
        %v1676 = vpack.c.b16 %v1440, %v1436
        %v1677 = vpack.c.b16 %v1441, %v1437
        %v1678 = vpack.c.b16 %v1442, %v1438
        %v1679 = vpack.c.b16 %v1443, %v1439
        %v1680 = vpack.c.b16 %v1448, %v1444
        %v1681 = vpack.c.b16 %v1449, %v1445
        %v1682 = vpack.c.b16 %v1450, %v1446
        %v1683 = vpack.c.b16 %v1451, %v1447
        %v1684 = vpack.c.b16 %v1456, %v1452
        %v1685 = vpack.c.b16 %v1457, %v1453
        %v1686 = vpack.c.b16 %v1458, %v1454
        %v1687 = vpack.c.b16 %v1459, %v1455
        %v1688 = vpack.c.b16 %v1464, %v1460
        %v1689 = vpack.c.b16 %v1465, %v1461
        %v1690 = vpack.c.b16 %v1466, %v1462
        %v1691 = vpack.c.b16 %v1467, %v1463
        %v1692 = vpack.c.b16 %v1472, %v1468
        %v1693 = vpack.c.b16 %v1473, %v1469
        %v1694 = vpack.c.b16 %v1474, %v1470
        %v1695 = vpack.c.b16 %v1475, %v1471
        %v1696 = vpack.c.b16 %v1480, %v1476
        %v1697 = vpack.c.b16 %v1481, %v1477
        %v1698 = vpack.c.b16 %v1482, %v1478
        %v1699 = vpack.c.b16 %v1483, %v1479
        %v1700 = vpack.c.b16 %v1488, %v1484
        %v1701 = vpack.c.b16 %v1489, %v1485
        %v1702 = vpack.c.b16 %v1490, %v1486
        %v1703 = vpack.c.b16 %v1491, %v1487
        %v1704 = vpack.c.b16 %v1496, %v1492
        %v1705 = vpack.c.b16 %v1497, %v1493
        %v1706 = vpack.c.b16 %v1498, %v1494
        %v1707 = vpack.c.b16 %v1499, %v1495
        %v1708 = vpack.c.b16 %v1504, %v1500
        %v1709 = vpack.c.b16 %v1505, %v1501
        %v1710 = vpack.c.b16 %v1506, %v1502
        %v1711 = vpack.c.b16 %v1507, %v1503
        %v1712 = vpack.c.b16 %v1512, %v1508
        %v1713 = vpack.c.b16 %v1513, %v1509
        %v1714 = vpack.c.b16 %v1514, %v1510
        %v1715 = vpack.c.b16 %v1515, %v1511
        %v1716 = vpack.c.b16 %v1520, %v1516
        %v1717 = vpack.c.b16 %v1521, %v1517
        %v1718 = vpack.c.b16 %v1522, %v1518
        %v1719 = vpack.c.b16 %v1523, %v1519
        %v1720 = vpack.c.b16 %v1528, %v1524
        %v1721 = vpack.c.b16 %v1529, %v1525
        %v1722 = vpack.c.b16 %v1530, %v1526
        %v1723 = vpack.c.b16 %v1531, %v1527
        %v1724 = vpack.c.b16 %v1536, %v1532
        %v1725 = vpack.c.b16 %v1537, %v1533
        %v1726 = vpack.c.b16 %v1538, %v1534
        %v1727 = vpack.c.b16 %v1539, %v1535
        %v1728 = vpack.c.b16 %v1544, %v1540
        %v1729 = vpack.c.b16 %v1545, %v1541
        %v1730 = vpack.c.b16 %v1546, %v1542
        %v1731 = vpack.c.b16 %v1547, %v1543
        %v1732 = vpack.c.b16 %v1552, %v1548
        %v1733 = vpack.c.b16 %v1553, %v1549
        %v1734 = vpack.c.b16 %v1554, %v1550
        %v1735 = vpack.c.b16 %v1555, %v1551
        %v1736 = vpack.c.b16 %v1560, %v1556
        %v1737 = vpack.c.b16 %v1561, %v1557
        %v1738 = vpack.c.b16 %v1562, %v1558
        %v1739 = vpack.c.b16 %v1563, %v1559
        %v1740 = vpack.c.b16 %v1568, %v1564
        %v1741 = vpack.c.b16 %v1569, %v1565
        %v1742 = vpack.c.b16 %v1570, %v1566
        %v1743 = vpack.c.b16 %v1571, %v1567
        %v1744 = vpack.c.b16 %v1576, %v1572
        %v1745 = vpack.c.b16 %v1577, %v1573
        %v1746 = vpack.c.b16 %v1578, %v1574
        %v1747 = vpack.c.b16 %v1579, %v1575
        %v1748 = vpack.c.b16 %v1584, %v1580
        %v1749 = vpack.c.b16 %v1585, %v1581
        %v1750 = vpack.c.b16 %v1586, %v1582
        %v1751 = vpack.c.b16 %v1587, %v1583
        %v1752 = vpack.c.b16 %v1592, %v1588
        %v1753 = vpack.c.b16 %v1593, %v1589
        %v1754 = vpack.c.b16 %v1594, %v1590
        %v1755 = vpack.c.b16 %v1595, %v1591
        %v1756 = vpack.c.b16 %v1600, %v1596
        %v1757 = vpack.c.b16 %v1601, %v1597
        %v1758 = vpack.c.b16 %v1602, %v1598
        %v1759 = vpack.c.b16 %v1603, %v1599
        %v1760 = vpack.c.b16 %v1608, %v1604
        %v1761 = vpack.c.b16 %v1609, %v1605
        %v1762 = vpack.c.b16 %v1610, %v1606
        %v1763 = vpack.c.b16 %v1611, %v1607
        %v1764 = vpack.c.b16 %v1616, %v1612
        %v1765 = vpack.c.b16 %v1617, %v1613
        %v1766 = vpack.c.b16 %v1618, %v1614
        %v1767 = vpack.c.b16 %v1619, %v1615
        %v1768 = vpack.c.b16 %v1624, %v1620
        %v1769 = vpack.c.b16 %v1625, %v1621
        %v1770 = vpack.c.b16 %v1626, %v1622
        %v1771 = vpack.c.b16 %v1627, %v1623
        %v1772 = vpack.c.b16 %v1632, %v1628
        %v1773 = vpack.c.b16 %v1633, %v1629
        %v1774 = vpack.c.b16 %v1634, %v1630
        %v1775 = vpack.c.b16 %v1635, %v1631
        %v1776 = vpack.c.b16 %v1640, %v1636
        %v1777 = vpack.c.b16 %v1641, %v1637
        %v1778 = vpack.c.b16 %v1642, %v1638
        %v1779 = vpack.c.b16 %v1643, %v1639
        %v1780 = vpack.c.b16 %v1648, %v1644
        %v1781 = vpack.c.b16 %v1649, %v1645
        %v1782 = vpack.c.b16 %v1650, %v1646
        %v1783 = vpack.c.b16 %v1651, %v1647
        %v1784 = vpack.c.b16 %v1656, %v1652
        %v1785 = vpack.c.b16 %v1657, %v1653
        %v1786 = vpack.c.b16 %v1658, %v1654
        %v1787 = vpack.c.b16 %v1659, %v1655
        %1916 = vmatpush.bf16.msra.mxu0 %v1688
        %1917 = vmatpush.bf16.msra.mxu0 %v1684
        %1918 = vmatpush.bf16.msra.mxu0 %v1680
        %1919 = vmatpush.bf16.msra.mxu0 %v1676
        %1920 = vmatpush.bf16.msra.mxu0 %v1672
        %1921 = vmatpush.bf16.msra.mxu0 %v1668
        %1922 = vmatpush.bf16.msra.mxu0 %v1664
        %1923 = vmatpush.bf16.msra.mxu0 %v1660
        %1924 = vmatmul.bf16.gmra.mxu0 %v1130
        %v1925 = vpop.f32.mrf.mxu0
        %v1926 = vadd.f32 %v1268, %v1925
        %v1927 = vpop.f32.mrf.mxu0
        %v1928 = vadd.f32 %v1268, %v1927
        %1929 = vmatmul.bf16.gmra.mxu0 %v1134
        %v1930 = vpop.f32.mrf.mxu0
        %v1931 = vadd.f32 %v1268, %v1930
        %v1932 = vpop.f32.mrf.mxu0
        %v1933 = vadd.f32 %v1268, %v1932
        %1934 = vdwg.mxu0
        %1935 = vmatpush.bf16.msra.mxu0 %v1720
        %1936 = vmatpush.bf16.msra.mxu0 %v1716
        %1937 = vmatpush.bf16.msra.mxu0 %v1712
        %1938 = vmatpush.bf16.msra.mxu0 %v1708
        %1939 = vmatpush.bf16.msra.mxu0 %v1704
        %1940 = vmatpush.bf16.msra.mxu0 %v1700
        %1941 = vmatpush.bf16.msra.mxu0 %v1696
        %1942 = vmatpush.bf16.msra.mxu0 %v1692
        %1943 = vmatmul.bf16.gmra.mxu0 %v1131
        %v1944 = vpop.f32.mrf.mxu0
        %v1945 = vadd.f32 %v1926, %v1944
        %v1946 = vpop.f32.mrf.mxu0
        %v1947 = vadd.f32 %v1928, %v1946
        %1948 = vmatmul.bf16.gmra.mxu0 %v1135
        %v1949 = vpop.f32.mrf.mxu0
        %v1950 = vadd.f32 %v1931, %v1949
        %v1951 = vpop.f32.mrf.mxu0
        %v1952 = vadd.f32 %v1933, %v1951
        %1953 = vdwg.mxu0
        %1954 = vmatpush.bf16.msra.mxu0 %v1752
        %1955 = vmatpush.bf16.msra.mxu0 %v1748
        %1956 = vmatpush.bf16.msra.mxu0 %v1744
        %1957 = vmatpush.bf16.msra.mxu0 %v1740
        %1958 = vmatpush.bf16.msra.mxu0 %v1736
        %1959 = vmatpush.bf16.msra.mxu0 %v1732
        %1960 = vmatpush.bf16.msra.mxu0 %v1728
        %1961 = vmatpush.bf16.msra.mxu0 %v1724
        %1962 = vmatmul.bf16.gmra.mxu0 %v1132
        %v1963 = vpop.f32.mrf.mxu0
        %v1964 = vadd.f32 %v1945, %v1963
        %v1965 = vpop.f32.mrf.mxu0
        %v1966 = vadd.f32 %v1947, %v1965
        %1967 = vmatmul.bf16.gmra.mxu0 %v1136
        %v1968 = vpop.f32.mrf.mxu0
        %v1969 = vadd.f32 %v1950, %v1968
        %v1970 = vpop.f32.mrf.mxu0
        %v1971 = vadd.f32 %v1952, %v1970
        %1972 = vdwg.mxu0
        %1973 = vmatpush.bf16.msra.mxu0 %v1784
        %1974 = vmatpush.bf16.msra.mxu0 %v1780
        %1975 = vmatpush.bf16.msra.mxu0 %v1776
        %1976 = vmatpush.bf16.msra.mxu0 %v1772
        %1977 = vmatpush.bf16.msra.mxu0 %v1768
        %1978 = vmatpush.bf16.msra.mxu0 %v1764
        %1979 = vmatpush.bf16.msra.mxu0 %v1760
        %1980 = vmatpush.bf16.msra.mxu0 %v1756
        %1981 = vmatmul.bf16.gmra.mxu0 %v1133
        %v1982 = vpop.f32.mrf.mxu0
        %v1983 = vadd.f32 %v1964, %v1982
        %v1984 = vpop.f32.mrf.mxu0
        %v1985 = vadd.f32 %v1966, %v1984
        %1986 = vmatmul.bf16.gmra.mxu0 %v1137
        %v1987 = vpop.f32.mrf.mxu0
        %v1988 = vadd.f32 %v1969, %v1987
        %v1989 = vpop.f32.mrf.mxu0
        %v1990 = vadd.f32 %v1971, %v1989
        %1991 = vdwg.mxu0
        %1992 = vmatpush.bf16.msra.mxu0 %v1689
        %1993 = vmatpush.bf16.msra.mxu0 %v1685
        %1994 = vmatpush.bf16.msra.mxu0 %v1681
        %1995 = vmatpush.bf16.msra.mxu0 %v1677
        %1996 = vmatpush.bf16.msra.mxu0 %v1673
        %1997 = vmatpush.bf16.msra.mxu0 %v1669
        %1998 = vmatpush.bf16.msra.mxu0 %v1665
        %1999 = vmatpush.bf16.msra.mxu0 %v1661
        %2000 = vmatmul.bf16.gmra.mxu0 %v1130
        %v2001 = vpop.f32.mrf.mxu0
        %v2002 = vadd.f32 %v1269, %v2001
        %v2003 = vpop.f32.mrf.mxu0
        %v2004 = vadd.f32 %v1269, %v2003
        %2005 = vmatmul.bf16.gmra.mxu0 %v1134
        %v2006 = vpop.f32.mrf.mxu0
        %v2007 = vadd.f32 %v1269, %v2006
        %v2008 = vpop.f32.mrf.mxu0
        %v2009 = vadd.f32 %v1269, %v2008
        %2010 = vdwg.mxu0
        %2011 = vmatpush.bf16.msra.mxu0 %v1721
        %2012 = vmatpush.bf16.msra.mxu0 %v1717
        %2013 = vmatpush.bf16.msra.mxu0 %v1713
        %2014 = vmatpush.bf16.msra.mxu0 %v1709
        %2015 = vmatpush.bf16.msra.mxu0 %v1705
        %2016 = vmatpush.bf16.msra.mxu0 %v1701
        %2017 = vmatpush.bf16.msra.mxu0 %v1697
        %2018 = vmatpush.bf16.msra.mxu0 %v1693
        %2019 = vmatmul.bf16.gmra.mxu0 %v1131
        %v2020 = vpop.f32.mrf.mxu0
        %v2021 = vadd.f32 %v2002, %v2020
        %v2022 = vpop.f32.mrf.mxu0
        %v2023 = vadd.f32 %v2004, %v2022
        %2024 = vmatmul.bf16.gmra.mxu0 %v1135
        %v2025 = vpop.f32.mrf.mxu0
        %v2026 = vadd.f32 %v2007, %v2025
        %v2027 = vpop.f32.mrf.mxu0
        %v2028 = vadd.f32 %v2009, %v2027
        %2029 = vdwg.mxu0
        %2030 = vmatpush.bf16.msra.mxu0 %v1753
        %2031 = vmatpush.bf16.msra.mxu0 %v1749
        %2032 = vmatpush.bf16.msra.mxu0 %v1745
        %2033 = vmatpush.bf16.msra.mxu0 %v1741
        %2034 = vmatpush.bf16.msra.mxu0 %v1737
        %2035 = vmatpush.bf16.msra.mxu0 %v1733
        %2036 = vmatpush.bf16.msra.mxu0 %v1729
        %2037 = vmatpush.bf16.msra.mxu0 %v1725
        %2038 = vmatmul.bf16.gmra.mxu0 %v1132
        %v2039 = vpop.f32.mrf.mxu0
        %v2040 = vadd.f32 %v2021, %v2039
        %v2041 = vpop.f32.mrf.mxu0
        %v2042 = vadd.f32 %v2023, %v2041
        %2043 = vmatmul.bf16.gmra.mxu0 %v1136
        %v2044 = vpop.f32.mrf.mxu0
        %v2045 = vadd.f32 %v2026, %v2044
        %v2046 = vpop.f32.mrf.mxu0
        %v2047 = vadd.f32 %v2028, %v2046
        %2048 = vdwg.mxu0
        %2049 = vmatpush.bf16.msra.mxu0 %v1785
        %2050 = vmatpush.bf16.msra.mxu0 %v1781
        %2051 = vmatpush.bf16.msra.mxu0 %v1777
        %2052 = vmatpush.bf16.msra.mxu0 %v1773
        %2053 = vmatpush.bf16.msra.mxu0 %v1769
        %2054 = vmatpush.bf16.msra.mxu0 %v1765
        %2055 = vmatpush.bf16.msra.mxu0 %v1761
        %2056 = vmatpush.bf16.msra.mxu0 %v1757
        %2057 = vmatmul.bf16.gmra.mxu0 %v1133
        %v2058 = vpop.f32.mrf.mxu0
        %v2059 = vadd.f32 %v2040, %v2058
        %v2060 = vpop.f32.mrf.mxu0
        %v2061 = vadd.f32 %v2042, %v2060
        %2062 = vmatmul.bf16.gmra.mxu0 %v1137
        %v2063 = vpop.f32.mrf.mxu0
        %v2064 = vadd.f32 %v2045, %v2063
        %v2065 = vpop.f32.mrf.mxu0
        %v2066 = vadd.f32 %v2047, %v2065
        %2067 = vdwg.mxu0
        %2068 = vmatpush.bf16.msra.mxu0 %v1690
        %2069 = vmatpush.bf16.msra.mxu0 %v1686
        %2070 = vmatpush.bf16.msra.mxu0 %v1682
        %2071 = vmatpush.bf16.msra.mxu0 %v1678
        %2072 = vmatpush.bf16.msra.mxu0 %v1674
        %2073 = vmatpush.bf16.msra.mxu0 %v1670
        %2074 = vmatpush.bf16.msra.mxu0 %v1666
        %2075 = vmatpush.bf16.msra.mxu0 %v1662
        %2076 = vmatmul.bf16.gmra.mxu0 %v1130
        %v2077 = vpop.f32.mrf.mxu0
        %v2078 = vadd.f32 %v1270, %v2077
        %v2079 = vpop.f32.mrf.mxu0
        %v2080 = vadd.f32 %v1270, %v2079
        %2081 = vmatmul.bf16.gmra.mxu0 %v1134
        %v2082 = vpop.f32.mrf.mxu0
        %v2083 = vadd.f32 %v1270, %v2082
        %v2084 = vpop.f32.mrf.mxu0
        %v2085 = vadd.f32 %v1270, %v2084
        %2086 = vdwg.mxu0
        %2087 = vmatpush.bf16.msra.mxu0 %v1722
        %2088 = vmatpush.bf16.msra.mxu0 %v1718
        %2089 = vmatpush.bf16.msra.mxu0 %v1714
        %2090 = vmatpush.bf16.msra.mxu0 %v1710
        %2091 = vmatpush.bf16.msra.mxu0 %v1706
        %2092 = vmatpush.bf16.msra.mxu0 %v1702
        %2093 = vmatpush.bf16.msra.mxu0 %v1698
        %2094 = vmatpush.bf16.msra.mxu0 %v1694
        %2095 = vmatmul.bf16.gmra.mxu0 %v1131
        %v2096 = vpop.f32.mrf.mxu0
        %v2097 = vadd.f32 %v2078, %v2096
        %v2098 = vpop.f32.mrf.mxu0
        %v2099 = vadd.f32 %v2080, %v2098
        %2100 = vmatmul.bf16.gmra.mxu0 %v1135
        %v2101 = vpop.f32.mrf.mxu0
        %v2102 = vadd.f32 %v2083, %v2101
        %v2103 = vpop.f32.mrf.mxu0
        %v2104 = vadd.f32 %v2085, %v2103
        %2105 = vdwg.mxu0
        %2106 = vmatpush.bf16.msra.mxu0 %v1754
        %2107 = vmatpush.bf16.msra.mxu0 %v1750
        %2108 = vmatpush.bf16.msra.mxu0 %v1746
        %2109 = vmatpush.bf16.msra.mxu0 %v1742
        %2110 = vmatpush.bf16.msra.mxu0 %v1738
        %2111 = vmatpush.bf16.msra.mxu0 %v1734
        %2112 = vmatpush.bf16.msra.mxu0 %v1730
        %2113 = vmatpush.bf16.msra.mxu0 %v1726
        %2114 = vmatmul.bf16.gmra.mxu0 %v1132
        %v2115 = vpop.f32.mrf.mxu0
        %v2116 = vadd.f32 %v2097, %v2115
        %v2117 = vpop.f32.mrf.mxu0
        %v2118 = vadd.f32 %v2099, %v2117
        %2119 = vmatmul.bf16.gmra.mxu0 %v1136
        %v2120 = vpop.f32.mrf.mxu0
        %v2121 = vadd.f32 %v2102, %v2120
        %v2122 = vpop.f32.mrf.mxu0
        %v2123 = vadd.f32 %v2104, %v2122
        %2124 = vdwg.mxu0
        %2125 = vmatpush.bf16.msra.mxu0 %v1786
        %2126 = vmatpush.bf16.msra.mxu0 %v1782
        %2127 = vmatpush.bf16.msra.mxu0 %v1778
        %2128 = vmatpush.bf16.msra.mxu0 %v1774
        %2129 = vmatpush.bf16.msra.mxu0 %v1770
        %2130 = vmatpush.bf16.msra.mxu0 %v1766
        %2131 = vmatpush.bf16.msra.mxu0 %v1762
        %2132 = vmatpush.bf16.msra.mxu0 %v1758
        %2133 = vmatmul.bf16.gmra.mxu0 %v1133
        %v2134 = vpop.f32.mrf.mxu0
        %v2135 = vadd.f32 %v2116, %v2134
        %v2136 = vpop.f32.mrf.mxu0
        %v2137 = vadd.f32 %v2118, %v2136
        %2138 = vmatmul.bf16.gmra.mxu0 %v1137
        %v2139 = vpop.f32.mrf.mxu0
        %v2140 = vadd.f32 %v2121, %v2139
        %v2141 = vpop.f32.mrf.mxu0
        %v2142 = vadd.f32 %v2123, %v2141
        %2143 = vdwg.mxu0
        %2144 = vmatpush.bf16.msra.mxu0 %v1691
        %2145 = vmatpush.bf16.msra.mxu0 %v1687
        %2146 = vmatpush.bf16.msra.mxu0 %v1683
        %2147 = vmatpush.bf16.msra.mxu0 %v1679
        %2148 = vmatpush.bf16.msra.mxu0 %v1675
        %2149 = vmatpush.bf16.msra.mxu0 %v1671
        %2150 = vmatpush.bf16.msra.mxu0 %v1667
        %2151 = vmatpush.bf16.msra.mxu0 %v1663
        %2152 = vmatmul.bf16.gmra.mxu0 %v1130
        %v2153 = vpop.f32.mrf.mxu0
        %v2154 = vadd.f32 %v1271, %v2153
        %v2155 = vpop.f32.mrf.mxu0
        %v2156 = vadd.f32 %v1271, %v2155
        %2157 = vmatmul.bf16.gmra.mxu0 %v1134
        %v2158 = vpop.f32.mrf.mxu0
        %v2159 = vadd.f32 %v1271, %v2158
        %v2160 = vpop.f32.mrf.mxu0
        %v2161 = vadd.f32 %v1271, %v2160
        %2162 = vdwg.mxu0
        %2163 = vmatpush.bf16.msra.mxu0 %v1723
        %2164 = vmatpush.bf16.msra.mxu0 %v1719
        %2165 = vmatpush.bf16.msra.mxu0 %v1715
        %2166 = vmatpush.bf16.msra.mxu0 %v1711
        %2167 = vmatpush.bf16.msra.mxu0 %v1707
        %2168 = vmatpush.bf16.msra.mxu0 %v1703
        %2169 = vmatpush.bf16.msra.mxu0 %v1699
        %2170 = vmatpush.bf16.msra.mxu0 %v1695
        %2171 = vmatmul.bf16.gmra.mxu0 %v1131
        %v2172 = vpop.f32.mrf.mxu0
        %v2173 = vadd.f32 %v2154, %v2172
        %v2174 = vpop.f32.mrf.mxu0
        %v2175 = vadd.f32 %v2156, %v2174
        %2176 = vmatmul.bf16.gmra.mxu0 %v1135
        %v2177 = vpop.f32.mrf.mxu0
        %v2178 = vadd.f32 %v2159, %v2177
        %v2179 = vpop.f32.mrf.mxu0
        %v2180 = vadd.f32 %v2161, %v2179
        %2181 = vdwg.mxu0
        %2182 = vmatpush.bf16.msra.mxu0 %v1755
        %2183 = vmatpush.bf16.msra.mxu0 %v1751
        %2184 = vmatpush.bf16.msra.mxu0 %v1747
        %2185 = vmatpush.bf16.msra.mxu0 %v1743
        %2186 = vmatpush.bf16.msra.mxu0 %v1739
        %2187 = vmatpush.bf16.msra.mxu0 %v1735
        %2188 = vmatpush.bf16.msra.mxu0 %v1731
        %2189 = vmatpush.bf16.msra.mxu0 %v1727
        %2190 = vmatmul.bf16.gmra.mxu0 %v1132
        %v2191 = vpop.f32.mrf.mxu0
        %v2192 = vadd.f32 %v2173, %v2191
        %v2193 = vpop.f32.mrf.mxu0
        %v2194 = vadd.f32 %v2175, %v2193
        %2195 = vmatmul.bf16.gmra.mxu0 %v1136
        %v2196 = vpop.f32.mrf.mxu0
        %v2197 = vadd.f32 %v2178, %v2196
        %v2198 = vpop.f32.mrf.mxu0
        %v2199 = vadd.f32 %v2180, %v2198
        %2200 = vdwg.mxu0
        %2201 = vmatpush.bf16.msra.mxu0 %v1787
        %2202 = vmatpush.bf16.msra.mxu0 %v1783
        %2203 = vmatpush.bf16.msra.mxu0 %v1779
        %2204 = vmatpush.bf16.msra.mxu0 %v1775
        %2205 = vmatpush.bf16.msra.mxu0 %v1771
        %2206 = vmatpush.bf16.msra.mxu0 %v1767
        %2207 = vmatpush.bf16.msra.mxu0 %v1763
        %2208 = vmatpush.bf16.msra.mxu0 %v1759
        %2209 = vmatmul.bf16.gmra.mxu0 %v1133
        %v2210 = vpop.f32.mrf.mxu0
        %v2211 = vadd.f32 %v2192, %v2210
        %v2212 = vpop.f32.mrf.mxu0
        %v2213 = vadd.f32 %v2194, %v2212
        %2214 = vmatmul.bf16.gmra.mxu0 %v1137
        %v2215 = vpop.f32.mrf.mxu0
        %v2216 = vadd.f32 %v2197, %v2215
        %v2217 = vpop.f32.mrf.mxu0
        %v2218 = vadd.f32 %v2199, %v2217
        %2219 = vdwg.mxu0
        %v2220 = vxor.u32 %v1983, 2147483648
        %v2221 = vxor.u32 %v2059, 2147483648
        %v2222 = vxor.u32 %v2135, 2147483648
        %v2223 = vxor.u32 %v2211, 2147483648
        %v2224 = vxor.u32 %v1985, 2147483648
        %v2225 = vxor.u32 %v2061, 2147483648
        %v2226 = vxor.u32 %v2137, 2147483648
        %v2227 = vxor.u32 %v2213, 2147483648
        %v2228 = vxor.u32 %v1988, 2147483648
        %v2229 = vxor.u32 %v2064, 2147483648
        %v2230 = vxor.u32 %v2140, 2147483648
        %v2231 = vxor.u32 %v2216, 2147483648
        %v2232 = vxor.u32 %v1990, 2147483648
        %v2233 = vxor.u32 %v2066, 2147483648
        %v2234 = vxor.u32 %v2142, 2147483648
        %v2235 = vxor.u32 %v2218, 2147483648
        %v2236 = vmul.f32 %v2220, 1.442695
        %v2237 = vpow.pop %v2236
        %v2238 = vmul.f32 %v2221, 1.442695
        %v2239 = vpow.pop %v2238
        %v2240 = vmul.f32 %v2222, 1.442695
        %v2241 = vpow.pop %v2240
        %v2242 = vmul.f32 %v2223, 1.442695
        %v2243 = vpow.pop %v2242
        %v2244 = vmul.f32 %v2224, 1.442695
        %v2245 = vpow.pop %v2244
        %v2246 = vmul.f32 %v2225, 1.442695
        %v2247 = vpow.pop %v2246
        %v2248 = vmul.f32 %v2226, 1.442695
        %v2249 = vpow.pop %v2248
        %v2250 = vmul.f32 %v2227, 1.442695
        %v2251 = vpow.pop %v2250
        %v2252 = vmul.f32 %v2228, 1.442695
        %v2253 = vpow.pop %v2252
        %v2254 = vmul.f32 %v2229, 1.442695
        %v2255 = vpow.pop %v2254
        %v2256 = vmul.f32 %v2230, 1.442695
        %v2257 = vpow.pop %v2256
        %v2258 = vmul.f32 %v2231, 1.442695
        %v2259 = vpow.pop %v2258
        %v2260 = vmul.f32 %v2232, 1.442695
        %v2261 = vpow.pop %v2260
        %v2262 = vmul.f32 %v2233, 1.442695
        %v2263 = vpow.pop %v2262
        %v2264 = vmul.f32 %v2234, 1.442695
        %v2265 = vpow.pop %v2264
        %v2266 = vmul.f32 %v2235, 1.442695
        %v2267 = vpow.pop %v2266
        %v2268 = vadd.f32 %v2237, 1.0
        %v2269 = vadd.f32 %v2239, 1.0
        %v2270 = vadd.f32 %v2241, 1.0
        %v2271 = vadd.f32 %v2243, 1.0
        %v2272 = vadd.f32 %v2245, 1.0
        %v2273 = vadd.f32 %v2247, 1.0
        %v2274 = vadd.f32 %v2249, 1.0
        %v2275 = vadd.f32 %v2251, 1.0
        %v2276 = vadd.f32 %v2253, 1.0
        %v2277 = vadd.f32 %v2255, 1.0
        %v2278 = vadd.f32 %v2257, 1.0
        %v2279 = vadd.f32 %v2259, 1.0
        %v2280 = vadd.f32 %v2261, 1.0
        %v2281 = vadd.f32 %v2263, 1.0
        %v2282 = vadd.f32 %v2265, 1.0
        %v2283 = vadd.f32 %v2267, 1.0
        %v2284 = vrcp.pop %v2268
        %v2285 = vmul.f32 %v2268, %v2284
        %v2286 = vsub.f32 1.0, %v2285
        %v2287 = vmul.f32 %v2284, %v2286
        %v2288 = vadd.f32 %v2284, %v2287
        %vm2289 = vweird.f32 %v2268
        %vm2290 = vweird.f32 %v2284
        %vm2291 = vmor %vm2289, %vm2290
        %v2292 = vsel %vm2291, %v2284, %v2288
        %v2293 = vand.u32 2147483647, %v2268
        %vm2294 = vcmp.eq.f32.partialorder %v2293, 8.507059e+37
        %v2295 = vand.u32 %v2268, 2147483648
        %v2296 = vor.u32 1.1754944e-38, %v2295
        %v2297 = vsel %vm2294, %v2296, %v2292
        %v2298 = vmul.f32 1.0, %v2297
        %v2299 = vrcp.pop %v2269
        %v2300 = vmul.f32 %v2269, %v2299
        %v2301 = vsub.f32 1.0, %v2300
        %v2302 = vmul.f32 %v2299, %v2301
        %v2303 = vadd.f32 %v2299, %v2302
        %vm2304 = vweird.f32 %v2269
        %vm2305 = vweird.f32 %v2299
        %vm2306 = vmor %vm2304, %vm2305
        %v2307 = vsel %vm2306, %v2299, %v2303
        %v2308 = vand.u32 2147483647, %v2269
        %vm2309 = vcmp.eq.f32.partialorder %v2308, 8.507059e+37
        %v2310 = vand.u32 %v2269, 2147483648
        %v2311 = vor.u32 1.1754944e-38, %v2310
        %v2312 = vsel %vm2309, %v2311, %v2307
        %v2313 = vmul.f32 1.0, %v2312
        %v2314 = vrcp.pop %v2270
        %v2315 = vmul.f32 %v2270, %v2314
        %v2316 = vsub.f32 1.0, %v2315
        %v2317 = vmul.f32 %v2314, %v2316
        %v2318 = vadd.f32 %v2314, %v2317
        %vm2319 = vweird.f32 %v2270
        %vm2320 = vweird.f32 %v2314
        %vm2321 = vmor %vm2319, %vm2320
        %v2322 = vsel %vm2321, %v2314, %v2318
        %v2323 = vand.u32 2147483647, %v2270
        %vm2324 = vcmp.eq.f32.partialorder %v2323, 8.507059e+37
        %v2325 = vand.u32 %v2270, 2147483648
        %v2326 = vor.u32 1.1754944e-38, %v2325
        %v2327 = vsel %vm2324, %v2326, %v2322
        %v2328 = vmul.f32 1.0, %v2327
        %v2329 = vrcp.pop %v2271
        %v2330 = vmul.f32 %v2271, %v2329
        %v2331 = vsub.f32 1.0, %v2330
        %v2332 = vmul.f32 %v2329, %v2331
        %v2333 = vadd.f32 %v2329, %v2332
        %vm2334 = vweird.f32 %v2271
        %vm2335 = vweird.f32 %v2329
        %vm2336 = vmor %vm2334, %vm2335
        %v2337 = vsel %vm2336, %v2329, %v2333
        %v2338 = vand.u32 2147483647, %v2271
        %vm2339 = vcmp.eq.f32.partialorder %v2338, 8.507059e+37
        %v2340 = vand.u32 %v2271, 2147483648
        %v2341 = vor.u32 1.1754944e-38, %v2340
        %v2342 = vsel %vm2339, %v2341, %v2337
        %v2343 = vmul.f32 1.0, %v2342
        %v2344 = vrcp.pop %v2272
        %v2345 = vmul.f32 %v2272, %v2344
        %v2346 = vsub.f32 1.0, %v2345
        %v2347 = vmul.f32 %v2344, %v2346
        %v2348 = vadd.f32 %v2344, %v2347
        %vm2349 = vweird.f32 %v2272
        %vm2350 = vweird.f32 %v2344
        %vm2351 = vmor %vm2349, %vm2350
        %v2352 = vsel %vm2351, %v2344, %v2348
        %v2353 = vand.u32 2147483647, %v2272
        %vm2354 = vcmp.eq.f32.partialorder %v2353, 8.507059e+37
        %v2355 = vand.u32 %v2272, 2147483648
        %v2356 = vor.u32 1.1754944e-38, %v2355
        %v2357 = vsel %vm2354, %v2356, %v2352
        %v2358 = vmul.f32 1.0, %v2357
        %v2359 = vrcp.pop %v2273
        %v2360 = vmul.f32 %v2273, %v2359
        %v2361 = vsub.f32 1.0, %v2360
        %v2362 = vmul.f32 %v2359, %v2361
        %v2363 = vadd.f32 %v2359, %v2362
        %vm2364 = vweird.f32 %v2273
        %vm2365 = vweird.f32 %v2359
        %vm2366 = vmor %vm2364, %vm2365
        %v2367 = vsel %vm2366, %v2359, %v2363
        %v2368 = vand.u32 2147483647, %v2273
        %vm2369 = vcmp.eq.f32.partialorder %v2368, 8.507059e+37
        %v2370 = vand.u32 %v2273, 2147483648
        %v2371 = vor.u32 1.1754944e-38, %v2370
        %v2372 = vsel %vm2369, %v2371, %v2367
        %v2373 = vmul.f32 1.0, %v2372
        %v2374 = vrcp.pop %v2274
        %v2375 = vmul.f32 %v2274, %v2374
        %v2376 = vsub.f32 1.0, %v2375
        %v2377 = vmul.f32 %v2374, %v2376
        %v2378 = vadd.f32 %v2374, %v2377
        %vm2379 = vweird.f32 %v2274
        %vm2380 = vweird.f32 %v2374
        %vm2381 = vmor %vm2379, %vm2380
        %v2382 = vsel %vm2381, %v2374, %v2378
        %v2383 = vand.u32 2147483647, %v2274
        %vm2384 = vcmp.eq.f32.partialorder %v2383, 8.507059e+37
        %v2385 = vand.u32 %v2274, 2147483648
        %v2386 = vor.u32 1.1754944e-38, %v2385
        %v2387 = vsel %vm2384, %v2386, %v2382
        %v2388 = vmul.f32 1.0, %v2387
        %v2389 = vrcp.pop %v2275
        %v2390 = vmul.f32 %v2275, %v2389
        %v2391 = vsub.f32 1.0, %v2390
        %v2392 = vmul.f32 %v2389, %v2391
        %v2393 = vadd.f32 %v2389, %v2392
        %vm2394 = vweird.f32 %v2275
        %vm2395 = vweird.f32 %v2389
        %vm2396 = vmor %vm2394, %vm2395
        %v2397 = vsel %vm2396, %v2389, %v2393
        %v2398 = vand.u32 2147483647, %v2275
        %vm2399 = vcmp.eq.f32.partialorder %v2398, 8.507059e+37
        %v2400 = vand.u32 %v2275, 2147483648
        %v2401 = vor.u32 1.1754944e-38, %v2400
        %v2402 = vsel %vm2399, %v2401, %v2397
        %v2403 = vmul.f32 1.0, %v2402
        %v2404 = vrcp.pop %v2276
        %v2405 = vmul.f32 %v2276, %v2404
        %v2406 = vsub.f32 1.0, %v2405
        %v2407 = vmul.f32 %v2404, %v2406
        %v2408 = vadd.f32 %v2404, %v2407
        %vm2409 = vweird.f32 %v2276
        %vm2410 = vweird.f32 %v2404
        %vm2411 = vmor %vm2409, %vm2410
        %v2412 = vsel %vm2411, %v2404, %v2408
        %v2413 = vand.u32 2147483647, %v2276
        %vm2414 = vcmp.eq.f32.partialorder %v2413, 8.507059e+37
        %v2415 = vand.u32 %v2276, 2147483648
        %v2416 = vor.u32 1.1754944e-38, %v2415
        %v2417 = vsel %vm2414, %v2416, %v2412
        %v2418 = vmul.f32 1.0, %v2417
        %v2419 = vrcp.pop %v2277
        %v2420 = vmul.f32 %v2277, %v2419
        %v2421 = vsub.f32 1.0, %v2420
        %v2422 = vmul.f32 %v2419, %v2421
        %v2423 = vadd.f32 %v2419, %v2422
        %vm2424 = vweird.f32 %v2277
        %vm2425 = vweird.f32 %v2419
        %vm2426 = vmor %vm2424, %vm2425
        %v2427 = vsel %vm2426, %v2419, %v2423
        %v2428 = vand.u32 2147483647, %v2277
        %vm2429 = vcmp.eq.f32.partialorder %v2428, 8.507059e+37
        %v2430 = vand.u32 %v2277, 2147483648
        %v2431 = vor.u32 1.1754944e-38, %v2430
        %v2432 = vsel %vm2429, %v2431, %v2427
        %v2433 = vmul.f32 1.0, %v2432
        %v2434 = vrcp.pop %v2278
        %v2435 = vmul.f32 %v2278, %v2434
        %v2436 = vsub.f32 1.0, %v2435
        %v2437 = vmul.f32 %v2434, %v2436
        %v2438 = vadd.f32 %v2434, %v2437
        %vm2439 = vweird.f32 %v2278
        %vm2440 = vweird.f32 %v2434
        %vm2441 = vmor %vm2439, %vm2440
        %v2442 = vsel %vm2441, %v2434, %v2438
        %v2443 = vand.u32 2147483647, %v2278
        %vm2444 = vcmp.eq.f32.partialorder %v2443, 8.507059e+37
        %v2445 = vand.u32 %v2278, 2147483648
        %v2446 = vor.u32 1.1754944e-38, %v2445
        %v2447 = vsel %vm2444, %v2446, %v2442
        %v2448 = vmul.f32 1.0, %v2447
        %v2449 = vrcp.pop %v2279
        %v2450 = vmul.f32 %v2279, %v2449
        %v2451 = vsub.f32 1.0, %v2450
        %v2452 = vmul.f32 %v2449, %v2451
        %v2453 = vadd.f32 %v2449, %v2452
        %vm2454 = vweird.f32 %v2279
        %vm2455 = vweird.f32 %v2449
        %vm2456 = vmor %vm2454, %vm2455
        %v2457 = vsel %vm2456, %v2449, %v2453
        %v2458 = vand.u32 2147483647, %v2279
        %vm2459 = vcmp.eq.f32.partialorder %v2458, 8.507059e+37
        %v2460 = vand.u32 %v2279, 2147483648
        %v2461 = vor.u32 1.1754944e-38, %v2460
        %v2462 = vsel %vm2459, %v2461, %v2457
        %v2463 = vmul.f32 1.0, %v2462
        %v2464 = vrcp.pop %v2280
        %v2465 = vmul.f32 %v2280, %v2464
        %v2466 = vsub.f32 1.0, %v2465
        %v2467 = vmul.f32 %v2464, %v2466
        %v2468 = vadd.f32 %v2464, %v2467
        %vm2469 = vweird.f32 %v2280
        %vm2470 = vweird.f32 %v2464
        %vm2471 = vmor %vm2469, %vm2470
        %v2472 = vsel %vm2471, %v2464, %v2468
        %v2473 = vand.u32 2147483647, %v2280
        %vm2474 = vcmp.eq.f32.partialorder %v2473, 8.507059e+37
        %v2475 = vand.u32 %v2280, 2147483648
        %v2476 = vor.u32 1.1754944e-38, %v2475
        %v2477 = vsel %vm2474, %v2476, %v2472
        %v2478 = vmul.f32 1.0, %v2477
        %v2479 = vrcp.pop %v2281
        %v2480 = vmul.f32 %v2281, %v2479
        %v2481 = vsub.f32 1.0, %v2480
        %v2482 = vmul.f32 %v2479, %v2481
        %v2483 = vadd.f32 %v2479, %v2482
        %vm2484 = vweird.f32 %v2281
        %vm2485 = vweird.f32 %v2479
        %vm2486 = vmor %vm2484, %vm2485
        %v2487 = vsel %vm2486, %v2479, %v2483
        %v2488 = vand.u32 2147483647, %v2281
        %vm2489 = vcmp.eq.f32.partialorder %v2488, 8.507059e+37
        %v2490 = vand.u32 %v2281, 2147483648
        %v2491 = vor.u32 1.1754944e-38, %v2490
        %v2492 = vsel %vm2489, %v2491, %v2487
        %v2493 = vmul.f32 1.0, %v2492
        %v2494 = vrcp.pop %v2282
        %v2495 = vmul.f32 %v2282, %v2494
        %v2496 = vsub.f32 1.0, %v2495
        %v2497 = vmul.f32 %v2494, %v2496
        %v2498 = vadd.f32 %v2494, %v2497
        %vm2499 = vweird.f32 %v2282
        %vm2500 = vweird.f32 %v2494
        %vm2501 = vmor %vm2499, %vm2500
        %v2502 = vsel %vm2501, %v2494, %v2498
        %v2503 = vand.u32 2147483647, %v2282
        %vm2504 = vcmp.eq.f32.partialorder %v2503, 8.507059e+37
        %v2505 = vand.u32 %v2282, 2147483648
        %v2506 = vor.u32 1.1754944e-38, %v2505
        %v2507 = vsel %vm2504, %v2506, %v2502
        %v2508 = vmul.f32 1.0, %v2507
        %v2509 = vrcp.pop %v2283
        %v2510 = vmul.f32 %v2283, %v2509
        %v2511 = vsub.f32 1.0, %v2510
        %v2512 = vmul.f32 %v2509, %v2511
        %v2513 = vadd.f32 %v2509, %v2512
        %vm2514 = vweird.f32 %v2283
        %vm2515 = vweird.f32 %v2509
        %vm2516 = vmor %vm2514, %vm2515
        %v2517 = vsel %vm2516, %v2509, %v2513
        %v2518 = vand.u32 2147483647, %v2283
        %vm2519 = vcmp.eq.f32.partialorder %v2518, 8.507059e+37
        %v2520 = vand.u32 %v2283, 2147483648
        %v2521 = vor.u32 1.1754944e-38, %v2520
        %v2522 = vsel %vm2519, %v2521, %v2517
        %v2523 = vmul.f32 1.0, %v2522
        %v2524 = vmul.f32 %v1983, %v2298
        %v2525 = vmul.f32 %v2059, %v2313
        %v2526 = vmul.f32 %v2135, %v2328
        %v2527 = vmul.f32 %v2211, %v2343
        %v2528 = vmul.f32 %v1985, %v2358
        %v2529 = vmul.f32 %v2061, %v2373
        %v2530 = vmul.f32 %v2137, %v2388
        %v2531 = vmul.f32 %v2213, %v2403
        %v2532 = vmul.f32 %v1988, %v2418
        %v2533 = vmul.f32 %v2064, %v2433
        %v2534 = vmul.f32 %v2140, %v2448
        %v2535 = vmul.f32 %v2216, %v2463
        %v2536 = vmul.f32 %v1990, %v2478
        %v2537 = vmul.f32 %v2066, %v2493
        %v2538 = vmul.f32 %v2142, %v2508
        %v2539 = vmul.f32 %v2218, %v2523
        %v2540 = vpack.c.bf16 %v2528, %v2524
        %v2541 = vpack.c.bf16 %v2529, %v2525
        %v2542 = vpack.c.bf16 %v2530, %v2526
        %v2543 = vpack.c.bf16 %v2531, %v2527
        %v2544 = vpack.c.bf16 %v2536, %v2532
        %v2545 = vpack.c.bf16 %v2537, %v2533
        %v2546 = vpack.c.bf16 %v2538, %v2534
        %v2547 = vpack.c.bf16 %v2539, %v2535
        %v2548 = vld [vmem:[%s537] sm:$0xff]
        %v2549 = vld [vmem:[%s537 + $0x8] sm:$0xff]
        %v2550 = vld [vmem:[%s537 + $0x10] sm:$0xff]
        %v2551 = vld [vmem:[%s537 + $0x18] sm:$0xff]
        %v2552 = vld [vmem:[%s537 + $0x20] sm:$0xff]
        %v2553 = vld [vmem:[%s537 + $0x28] sm:$0xff]
        %v2554 = vld [vmem:[%s537 + $0x30] sm:$0xff]
        %v2555 = vld [vmem:[%s537 + $0x38] sm:$0xff]
        %v2556 = vld [vmem:[%s537 + $0x40] sm:$0xff]
        %v2557 = vld [vmem:[%s537 + $0x48] sm:$0xff]
        %v2558 = vld [vmem:[%s537 + $0x50] sm:$0xff]
        %v2559 = vld [vmem:[%s537 + $0x58] sm:$0xff]
        %v2560 = vld [vmem:[%s537 + $0x60] sm:$0xff]
        %v2561 = vld [vmem:[%s537 + $0x68] sm:$0xff]
        %v2562 = vld [vmem:[%s537 + $0x70] sm:$0xff]
        %v2563 = vld [vmem:[%s537 + $0x78] sm:$0xff]
        %v2564 = vld [vmem:[%s537 + $0x80] sm:$0xff]
        %v2565 = vld [vmem:[%s537 + $0x88] sm:$0xff]
        %v2566 = vld [vmem:[%s537 + $0x90] sm:$0xff]
        %v2567 = vld [vmem:[%s537 + $0x98] sm:$0xff]
        %v2568 = vld [vmem:[%s537 + $0xa0] sm:$0xff]
        %v2569 = vld [vmem:[%s537 + $0xa8] sm:$0xff]
        %v2570 = vld [vmem:[%s537 + $0xb0] sm:$0xff]
        %v2571 = vld [vmem:[%s537 + $0xb8] sm:$0xff]
        %v2572 = vld [vmem:[%s537 + $0xc0] sm:$0xff]
        %v2573 = vld [vmem:[%s537 + $0xc8] sm:$0xff]
        %v2574 = vld [vmem:[%s537 + $0xd0] sm:$0xff]
        %v2575 = vld [vmem:[%s537 + $0xd8] sm:$0xff]
        %v2576 = vld [vmem:[%s537 + $0xe0] sm:$0xff]
        %v2577 = vld [vmem:[%s537 + $0xe8] sm:$0xff]
        %v2578 = vld [vmem:[%s537 + $0xf0] sm:$0xff]
        %v2579 = vld [vmem:[%s537 + $0xf8] sm:$0xff]
        %v2580 = vld [vmem:[%s537 + $0x100] sm:$0xff]
        %v2581 = vld [vmem:[%s537 + $0x108] sm:$0xff]
        %v2582 = vld [vmem:[%s537 + $0x110] sm:$0xff]
        %v2583 = vld [vmem:[%s537 + $0x118] sm:$0xff]
        %v2584 = vld [vmem:[%s537 + $0x120] sm:$0xff]
        %v2585 = vld [vmem:[%s537 + $0x128] sm:$0xff]
        %v2586 = vld [vmem:[%s537 + $0x130] sm:$0xff]
        %v2587 = vld [vmem:[%s537 + $0x138] sm:$0xff]
        %v2588 = vld [vmem:[%s537 + $0x140] sm:$0xff]
        %v2589 = vld [vmem:[%s537 + $0x148] sm:$0xff]
        %v2590 = vld [vmem:[%s537 + $0x150] sm:$0xff]
        %v2591 = vld [vmem:[%s537 + $0x158] sm:$0xff]
        %v2592 = vld [vmem:[%s537 + $0x160] sm:$0xff]
        %v2593 = vld [vmem:[%s537 + $0x168] sm:$0xff]
        %v2594 = vld [vmem:[%s537 + $0x170] sm:$0xff]
        %v2595 = vld [vmem:[%s537 + $0x178] sm:$0xff]
        %v2596 = vld [vmem:[%s537 + $0x180] sm:$0xff]
        %v2597 = vld [vmem:[%s537 + $0x188] sm:$0xff]
        %v2598 = vld [vmem:[%s537 + $0x190] sm:$0xff]
        %v2599 = vld [vmem:[%s537 + $0x198] sm:$0xff]
        %v2600 = vld [vmem:[%s537 + $0x1a0] sm:$0xff]
        %v2601 = vld [vmem:[%s537 + $0x1a8] sm:$0xff]
        %v2602 = vld [vmem:[%s537 + $0x1b0] sm:$0xff]
        %v2603 = vld [vmem:[%s537 + $0x1b8] sm:$0xff]
        %v2604 = vld [vmem:[%s537 + $0x1c0] sm:$0xff]
        %v2605 = vld [vmem:[%s537 + $0x1c8] sm:$0xff]
        %v2606 = vld [vmem:[%s537 + $0x1d0] sm:$0xff]
        %v2607 = vld [vmem:[%s537 + $0x1d8] sm:$0xff]
        %v2608 = vld [vmem:[%s537 + $0x1e0] sm:$0xff]
        %v2609 = vld [vmem:[%s537 + $0x1e8] sm:$0xff]
        %v2610 = vld [vmem:[%s537 + $0x1f0] sm:$0xff]
        %v2611 = vld [vmem:[%s537 + $0x1f8] sm:$0xff]
        %v2612 = vld [vmem:[%s537 + $0x200] sm:$0xff]
        %v2613 = vld [vmem:[%s537 + $0x208] sm:$0xff]
        %v2614 = vld [vmem:[%s537 + $0x210] sm:$0xff]
        %v2615 = vld [vmem:[%s537 + $0x218] sm:$0xff]
        %v2616 = vld [vmem:[%s537 + $0x220] sm:$0xff]
        %v2617 = vld [vmem:[%s537 + $0x228] sm:$0xff]
        %v2618 = vld [vmem:[%s537 + $0x230] sm:$0xff]
        %v2619 = vld [vmem:[%s537 + $0x238] sm:$0xff]
        %v2620 = vld [vmem:[%s537 + $0x240] sm:$0xff]
        %v2621 = vld [vmem:[%s537 + $0x248] sm:$0xff]
        %v2622 = vld [vmem:[%s537 + $0x250] sm:$0xff]
        %v2623 = vld [vmem:[%s537 + $0x258] sm:$0xff]
        %v2624 = vld [vmem:[%s537 + $0x260] sm:$0xff]
        %v2625 = vld [vmem:[%s537 + $0x268] sm:$0xff]
        %v2626 = vld [vmem:[%s537 + $0x270] sm:$0xff]
        %v2627 = vld [vmem:[%s537 + $0x278] sm:$0xff]
        %v2628 = vld [vmem:[%s537 + $0x280] sm:$0xff]
        %v2629 = vld [vmem:[%s537 + $0x288] sm:$0xff]
        %v2630 = vld [vmem:[%s537 + $0x290] sm:$0xff]
        %v2631 = vld [vmem:[%s537 + $0x298] sm:$0xff]
        %v2632 = vld [vmem:[%s537 + $0x2a0] sm:$0xff]
        %v2633 = vld [vmem:[%s537 + $0x2a8] sm:$0xff]
        %v2634 = vld [vmem:[%s537 + $0x2b0] sm:$0xff]
        %v2635 = vld [vmem:[%s537 + $0x2b8] sm:$0xff]
        %v2636 = vld [vmem:[%s537 + $0x2c0] sm:$0xff]
        %v2637 = vld [vmem:[%s537 + $0x2c8] sm:$0xff]
        %v2638 = vld [vmem:[%s537 + $0x2d0] sm:$0xff]
        %v2639 = vld [vmem:[%s537 + $0x2d8] sm:$0xff]
        %v2640 = vld [vmem:[%s537 + $0x2e0] sm:$0xff]
        %v2641 = vld [vmem:[%s537 + $0x2e8] sm:$0xff]
        %v2642 = vld [vmem:[%s537 + $0x2f0] sm:$0xff]
        %v2643 = vld [vmem:[%s537 + $0x2f8] sm:$0xff]
        %v2644 = vld [vmem:[%s537 + $0x300] sm:$0xff]
        %v2645 = vld [vmem:[%s537 + $0x308] sm:$0xff]
        %v2646 = vld [vmem:[%s537 + $0x310] sm:$0xff]
        %v2647 = vld [vmem:[%s537 + $0x318] sm:$0xff]
        %v2648 = vld [vmem:[%s537 + $0x320] sm:$0xff]
        %v2649 = vld [vmem:[%s537 + $0x328] sm:$0xff]
        %v2650 = vld [vmem:[%s537 + $0x330] sm:$0xff]
        %v2651 = vld [vmem:[%s537 + $0x338] sm:$0xff]
        %v2652 = vld [vmem:[%s537 + $0x340] sm:$0xff]
        %v2653 = vld [vmem:[%s537 + $0x348] sm:$0xff]
        %v2654 = vld [vmem:[%s537 + $0x350] sm:$0xff]
        %v2655 = vld [vmem:[%s537 + $0x358] sm:$0xff]
        %v2656 = vld [vmem:[%s537 + $0x360] sm:$0xff]
        %v2657 = vld [vmem:[%s537 + $0x368] sm:$0xff]
        %v2658 = vld [vmem:[%s537 + $0x370] sm:$0xff]
        %v2659 = vld [vmem:[%s537 + $0x378] sm:$0xff]
        %v2660 = vld [vmem:[%s537 + $0x380] sm:$0xff]
        %v2661 = vld [vmem:[%s537 + $0x388] sm:$0xff]
        %v2662 = vld [vmem:[%s537 + $0x390] sm:$0xff]
        %v2663 = vld [vmem:[%s537 + $0x398] sm:$0xff]
        %v2664 = vld [vmem:[%s537 + $0x3a0] sm:$0xff]
        %v2665 = vld [vmem:[%s537 + $0x3a8] sm:$0xff]
        %v2666 = vld [vmem:[%s537 + $0x3b0] sm:$0xff]
        %v2667 = vld [vmem:[%s537 + $0x3b8] sm:$0xff]
        %v2668 = vld [vmem:[%s537 + $0x3c0] sm:$0xff]
        %v2669 = vld [vmem:[%s537 + $0x3c8] sm:$0xff]
        %v2670 = vld [vmem:[%s537 + $0x3d0] sm:$0xff]
        %v2671 = vld [vmem:[%s537 + $0x3d8] sm:$0xff]
        %v2672 = vld [vmem:[%s537 + $0x3e0] sm:$0xff]
        %v2673 = vld [vmem:[%s537 + $0x3e8] sm:$0xff]
        %v2674 = vld [vmem:[%s537 + $0x3f0] sm:$0xff]
        %v2675 = vld [vmem:[%s537 + $0x3f8] sm:$0xff]
        %v2676 = vld [vmem:[%s650] sm:$0xf]
        %v2678 = vperm.slane %v2676, 0
        %v2679 = vperm.slane %v2676, 1
        %v2680 = vperm.slane %v2676, 2
        %v2681 = vperm.slane %v2676, 3
        %v2814 = vunpack.c.l.b16 %v2548
        %v2815 = vunpack.c.h.b16 %v2548
        %v2816 = vunpack.c.l.b16 %v2549
        %v2817 = vunpack.c.h.b16 %v2549
        %v2818 = vunpack.c.l.b16 %v2550
        %v2819 = vunpack.c.h.b16 %v2550
        %v2820 = vunpack.c.l.b16 %v2551
        %v2821 = vunpack.c.h.b16 %v2551
        %v2822 = vunpack.c.l.b16 %v2552
        %v2823 = vunpack.c.h.b16 %v2552
        %v2824 = vunpack.c.l.b16 %v2553
        %v2825 = vunpack.c.h.b16 %v2553
        %v2826 = vunpack.c.l.b16 %v2554
        %v2827 = vunpack.c.h.b16 %v2554
        %v2828 = vunpack.c.l.b16 %v2555
        %v2829 = vunpack.c.h.b16 %v2555
        %v2830 = vunpack.c.l.b16 %v2556
        %v2831 = vunpack.c.h.b16 %v2556
        %v2832 = vunpack.c.l.b16 %v2557
        %v2833 = vunpack.c.h.b16 %v2557
        %v2834 = vunpack.c.l.b16 %v2558
        %v2835 = vunpack.c.h.b16 %v2558
        %v2836 = vunpack.c.l.b16 %v2559
        %v2837 = vunpack.c.h.b16 %v2559
        %v2838 = vunpack.c.l.b16 %v2560
        %v2839 = vunpack.c.h.b16 %v2560
        %v2840 = vunpack.c.l.b16 %v2561
        %v2841 = vunpack.c.h.b16 %v2561
        %v2842 = vunpack.c.l.b16 %v2562
        %v2843 = vunpack.c.h.b16 %v2562
        %v2844 = vunpack.c.l.b16 %v2563
        %v2845 = vunpack.c.h.b16 %v2563
        %v2846 = vunpack.c.l.b16 %v2564
        %v2847 = vunpack.c.h.b16 %v2564
        %v2848 = vunpack.c.l.b16 %v2565
        %v2849 = vunpack.c.h.b16 %v2565
        %v2850 = vunpack.c.l.b16 %v2566
        %v2851 = vunpack.c.h.b16 %v2566
        %v2852 = vunpack.c.l.b16 %v2567
        %v2853 = vunpack.c.h.b16 %v2567
        %v2854 = vunpack.c.l.b16 %v2568
        %v2855 = vunpack.c.h.b16 %v2568
        %v2856 = vunpack.c.l.b16 %v2569
        %v2857 = vunpack.c.h.b16 %v2569
        %v2858 = vunpack.c.l.b16 %v2570
        %v2859 = vunpack.c.h.b16 %v2570
        %v2860 = vunpack.c.l.b16 %v2571
        %v2861 = vunpack.c.h.b16 %v2571
        %v2862 = vunpack.c.l.b16 %v2572
        %v2863 = vunpack.c.h.b16 %v2572
        %v2864 = vunpack.c.l.b16 %v2573
        %v2865 = vunpack.c.h.b16 %v2573
        %v2866 = vunpack.c.l.b16 %v2574
        %v2867 = vunpack.c.h.b16 %v2574
        %v2868 = vunpack.c.l.b16 %v2575
        %v2869 = vunpack.c.h.b16 %v2575
        %v2870 = vunpack.c.l.b16 %v2576
        %v2871 = vunpack.c.h.b16 %v2576
        %v2872 = vunpack.c.l.b16 %v2577
        %v2873 = vunpack.c.h.b16 %v2577
        %v2874 = vunpack.c.l.b16 %v2578
        %v2875 = vunpack.c.h.b16 %v2578
        %v2876 = vunpack.c.l.b16 %v2579
        %v2877 = vunpack.c.h.b16 %v2579
        %v2878 = vunpack.c.l.b16 %v2580
        %v2879 = vunpack.c.h.b16 %v2580
        %v2880 = vunpack.c.l.b16 %v2581
        %v2881 = vunpack.c.h.b16 %v2581
        %v2882 = vunpack.c.l.b16 %v2582
        %v2883 = vunpack.c.h.b16 %v2582
        %v2884 = vunpack.c.l.b16 %v2583
        %v2885 = vunpack.c.h.b16 %v2583
        %v2886 = vunpack.c.l.b16 %v2584
        %v2887 = vunpack.c.h.b16 %v2584
        %v2888 = vunpack.c.l.b16 %v2585
        %v2889 = vunpack.c.h.b16 %v2585
        %v2890 = vunpack.c.l.b16 %v2586
        %v2891 = vunpack.c.h.b16 %v2586
        %v2892 = vunpack.c.l.b16 %v2587
        %v2893 = vunpack.c.h.b16 %v2587
        %v2894 = vunpack.c.l.b16 %v2588
        %v2895 = vunpack.c.h.b16 %v2588
        %v2896 = vunpack.c.l.b16 %v2589
        %v2897 = vunpack.c.h.b16 %v2589
        %v2898 = vunpack.c.l.b16 %v2590
        %v2899 = vunpack.c.h.b16 %v2590
        %v2900 = vunpack.c.l.b16 %v2591
        %v2901 = vunpack.c.h.b16 %v2591
        %v2902 = vunpack.c.l.b16 %v2592
        %v2903 = vunpack.c.h.b16 %v2592
        %v2904 = vunpack.c.l.b16 %v2593
        %v2905 = vunpack.c.h.b16 %v2593
        %v2906 = vunpack.c.l.b16 %v2594
        %v2907 = vunpack.c.h.b16 %v2594
        %v2908 = vunpack.c.l.b16 %v2595
        %v2909 = vunpack.c.h.b16 %v2595
        %v2910 = vunpack.c.l.b16 %v2596
        %v2911 = vunpack.c.h.b16 %v2596
        %v2912 = vunpack.c.l.b16 %v2597
        %v2913 = vunpack.c.h.b16 %v2597
        %v2914 = vunpack.c.l.b16 %v2598
        %v2915 = vunpack.c.h.b16 %v2598
        %v2916 = vunpack.c.l.b16 %v2599
        %v2917 = vunpack.c.h.b16 %v2599
        %v2918 = vunpack.c.l.b16 %v2600
        %v2919 = vunpack.c.h.b16 %v2600
        %v2920 = vunpack.c.l.b16 %v2601
        %v2921 = vunpack.c.h.b16 %v2601
        %v2922 = vunpack.c.l.b16 %v2602
        %v2923 = vunpack.c.h.b16 %v2602
        %v2924 = vunpack.c.l.b16 %v2603
        %v2925 = vunpack.c.h.b16 %v2603
        %v2926 = vunpack.c.l.b16 %v2604
        %v2927 = vunpack.c.h.b16 %v2604
        %v2928 = vunpack.c.l.b16 %v2605
        %v2929 = vunpack.c.h.b16 %v2605
        %v2930 = vunpack.c.l.b16 %v2606
        %v2931 = vunpack.c.h.b16 %v2606
        %v2932 = vunpack.c.l.b16 %v2607
        %v2933 = vunpack.c.h.b16 %v2607
        %v2934 = vunpack.c.l.b16 %v2608
        %v2935 = vunpack.c.h.b16 %v2608
        %v2936 = vunpack.c.l.b16 %v2609
        %v2937 = vunpack.c.h.b16 %v2609
        %v2938 = vunpack.c.l.b16 %v2610
        %v2939 = vunpack.c.h.b16 %v2610
        %v2940 = vunpack.c.l.b16 %v2611
        %v2941 = vunpack.c.h.b16 %v2611
        %v2942 = vunpack.c.l.b16 %v2612
        %v2943 = vunpack.c.h.b16 %v2612
        %v2944 = vunpack.c.l.b16 %v2613
        %v2945 = vunpack.c.h.b16 %v2613
        %v2946 = vunpack.c.l.b16 %v2614
        %v2947 = vunpack.c.h.b16 %v2614
        %v2948 = vunpack.c.l.b16 %v2615
        %v2949 = vunpack.c.h.b16 %v2615
        %v2950 = vunpack.c.l.b16 %v2616
        %v2951 = vunpack.c.h.b16 %v2616
        %v2952 = vunpack.c.l.b16 %v2617
        %v2953 = vunpack.c.h.b16 %v2617
        %v2954 = vunpack.c.l.b16 %v2618
        %v2955 = vunpack.c.h.b16 %v2618
        %v2956 = vunpack.c.l.b16 %v2619
        %v2957 = vunpack.c.h.b16 %v2619
        %v2958 = vunpack.c.l.b16 %v2620
        %v2959 = vunpack.c.h.b16 %v2620
        %v2960 = vunpack.c.l.b16 %v2621
        %v2961 = vunpack.c.h.b16 %v2621
        %v2962 = vunpack.c.l.b16 %v2622
        %v2963 = vunpack.c.h.b16 %v2622
        %v2964 = vunpack.c.l.b16 %v2623
        %v2965 = vunpack.c.h.b16 %v2623
        %v2966 = vunpack.c.l.b16 %v2624
        %v2967 = vunpack.c.h.b16 %v2624
        %v2968 = vunpack.c.l.b16 %v2625
        %v2969 = vunpack.c.h.b16 %v2625
        %v2970 = vunpack.c.l.b16 %v2626
        %v2971 = vunpack.c.h.b16 %v2626
        %v2972 = vunpack.c.l.b16 %v2627
        %v2973 = vunpack.c.h.b16 %v2627
        %v2974 = vunpack.c.l.b16 %v2628
        %v2975 = vunpack.c.h.b16 %v2628
        %v2976 = vunpack.c.l.b16 %v2629
        %v2977 = vunpack.c.h.b16 %v2629
        %v2978 = vunpack.c.l.b16 %v2630
        %v2979 = vunpack.c.h.b16 %v2630
        %v2980 = vunpack.c.l.b16 %v2631
        %v2981 = vunpack.c.h.b16 %v2631
        %v2982 = vunpack.c.l.b16 %v2632
        %v2983 = vunpack.c.h.b16 %v2632
        %v2984 = vunpack.c.l.b16 %v2633
        %v2985 = vunpack.c.h.b16 %v2633
        %v2986 = vunpack.c.l.b16 %v2634
        %v2987 = vunpack.c.h.b16 %v2634
        %v2988 = vunpack.c.l.b16 %v2635
        %v2989 = vunpack.c.h.b16 %v2635
        %v2990 = vunpack.c.l.b16 %v2636
        %v2991 = vunpack.c.h.b16 %v2636
        %v2992 = vunpack.c.l.b16 %v2637
        %v2993 = vunpack.c.h.b16 %v2637
        %v2994 = vunpack.c.l.b16 %v2638
        %v2995 = vunpack.c.h.b16 %v2638
        %v2996 = vunpack.c.l.b16 %v2639
        %v2997 = vunpack.c.h.b16 %v2639
        %v2998 = vunpack.c.l.b16 %v2640
        %v2999 = vunpack.c.h.b16 %v2640
        %v3000 = vunpack.c.l.b16 %v2641
        %v3001 = vunpack.c.h.b16 %v2641
        %v3002 = vunpack.c.l.b16 %v2642
        %v3003 = vunpack.c.h.b16 %v2642
        %v3004 = vunpack.c.l.b16 %v2643
        %v3005 = vunpack.c.h.b16 %v2643
        %v3006 = vunpack.c.l.b16 %v2644
        %v3007 = vunpack.c.h.b16 %v2644
        %v3008 = vunpack.c.l.b16 %v2645
        %v3009 = vunpack.c.h.b16 %v2645
        %v3010 = vunpack.c.l.b16 %v2646
        %v3011 = vunpack.c.h.b16 %v2646
        %v3012 = vunpack.c.l.b16 %v2647
        %v3013 = vunpack.c.h.b16 %v2647
        %v3014 = vunpack.c.l.b16 %v2648
        %v3015 = vunpack.c.h.b16 %v2648
        %v3016 = vunpack.c.l.b16 %v2649
        %v3017 = vunpack.c.h.b16 %v2649
        %v3018 = vunpack.c.l.b16 %v2650
        %v3019 = vunpack.c.h.b16 %v2650
        %v3020 = vunpack.c.l.b16 %v2651
        %v3021 = vunpack.c.h.b16 %v2651
        %v3022 = vunpack.c.l.b16 %v2652
        %v3023 = vunpack.c.h.b16 %v2652
        %v3024 = vunpack.c.l.b16 %v2653
        %v3025 = vunpack.c.h.b16 %v2653
        %v3026 = vunpack.c.l.b16 %v2654
        %v3027 = vunpack.c.h.b16 %v2654
        %v3028 = vunpack.c.l.b16 %v2655
        %v3029 = vunpack.c.h.b16 %v2655
        %v3030 = vunpack.c.l.b16 %v2656
        %v3031 = vunpack.c.h.b16 %v2656
        %v3032 = vunpack.c.l.b16 %v2657
        %v3033 = vunpack.c.h.b16 %v2657
        %v3034 = vunpack.c.l.b16 %v2658
        %v3035 = vunpack.c.h.b16 %v2658
        %v3036 = vunpack.c.l.b16 %v2659
        %v3037 = vunpack.c.h.b16 %v2659
        %v3038 = vunpack.c.l.b16 %v2660
        %v3039 = vunpack.c.h.b16 %v2660
        %v3040 = vunpack.c.l.b16 %v2661
        %v3041 = vunpack.c.h.b16 %v2661
        %v3042 = vunpack.c.l.b16 %v2662
        %v3043 = vunpack.c.h.b16 %v2662
        %v3044 = vunpack.c.l.b16 %v2663
        %v3045 = vunpack.c.h.b16 %v2663
        %v3046 = vunpack.c.l.b16 %v2664
        %v3047 = vunpack.c.h.b16 %v2664
        %v3048 = vunpack.c.l.b16 %v2665
        %v3049 = vunpack.c.h.b16 %v2665
        %v3050 = vunpack.c.l.b16 %v2666
        %v3051 = vunpack.c.h.b16 %v2666
        %v3052 = vunpack.c.l.b16 %v2667
        %v3053 = vunpack.c.h.b16 %v2667
        %v3054 = vunpack.c.l.b16 %v2668
        %v3055 = vunpack.c.h.b16 %v2668
        %v3056 = vunpack.c.l.b16 %v2669
        %v3057 = vunpack.c.h.b16 %v2669
        %v3058 = vunpack.c.l.b16 %v2670
        %v3059 = vunpack.c.h.b16 %v2670
        %v3060 = vunpack.c.l.b16 %v2671
        %v3061 = vunpack.c.h.b16 %v2671
        %v3062 = vunpack.c.l.b16 %v2672
        %v3063 = vunpack.c.h.b16 %v2672
        %v3064 = vunpack.c.l.b16 %v2673
        %v3065 = vunpack.c.h.b16 %v2673
        %v3066 = vunpack.c.l.b16 %v2674
        %v3067 = vunpack.c.h.b16 %v2674
        %v3068 = vunpack.c.l.b16 %v2675
        %v3069 = vunpack.c.h.b16 %v2675
        %v3070 = vpack.c.b16 %v2818, %v2814
        %v3071 = vpack.c.b16 %v2819, %v2815
        %v3072 = vpack.c.b16 %v2820, %v2816
        %v3073 = vpack.c.b16 %v2821, %v2817
        %v3074 = vpack.c.b16 %v2826, %v2822
        %v3075 = vpack.c.b16 %v2827, %v2823
        %v3076 = vpack.c.b16 %v2828, %v2824
        %v3077 = vpack.c.b16 %v2829, %v2825
        %v3078 = vpack.c.b16 %v2834, %v2830
        %v3079 = vpack.c.b16 %v2835, %v2831
        %v3080 = vpack.c.b16 %v2836, %v2832
        %v3081 = vpack.c.b16 %v2837, %v2833
        %v3082 = vpack.c.b16 %v2842, %v2838
        %v3083 = vpack.c.b16 %v2843, %v2839
        %v3084 = vpack.c.b16 %v2844, %v2840
        %v3085 = vpack.c.b16 %v2845, %v2841
        %v3086 = vpack.c.b16 %v2850, %v2846
        %v3087 = vpack.c.b16 %v2851, %v2847
        %v3088 = vpack.c.b16 %v2852, %v2848
        %v3089 = vpack.c.b16 %v2853, %v2849
        %v3090 = vpack.c.b16 %v2858, %v2854
        %v3091 = vpack.c.b16 %v2859, %v2855
        %v3092 = vpack.c.b16 %v2860, %v2856
        %v3093 = vpack.c.b16 %v2861, %v2857
        %v3094 = vpack.c.b16 %v2866, %v2862
        %v3095 = vpack.c.b16 %v2867, %v2863
        %v3096 = vpack.c.b16 %v2868, %v2864
        %v3097 = vpack.c.b16 %v2869, %v2865
        %v3098 = vpack.c.b16 %v2874, %v2870
        %v3099 = vpack.c.b16 %v2875, %v2871
        %v3100 = vpack.c.b16 %v2876, %v2872
        %v3101 = vpack.c.b16 %v2877, %v2873
        %v3102 = vpack.c.b16 %v2882, %v2878
        %v3103 = vpack.c.b16 %v2883, %v2879
        %v3104 = vpack.c.b16 %v2884, %v2880
        %v3105 = vpack.c.b16 %v2885, %v2881
        %v3106 = vpack.c.b16 %v2890, %v2886
        %v3107 = vpack.c.b16 %v2891, %v2887
        %v3108 = vpack.c.b16 %v2892, %v2888
        %v3109 = vpack.c.b16 %v2893, %v2889
        %v3110 = vpack.c.b16 %v2898, %v2894
        %v3111 = vpack.c.b16 %v2899, %v2895
        %v3112 = vpack.c.b16 %v2900, %v2896
        %v3113 = vpack.c.b16 %v2901, %v2897
        %v3114 = vpack.c.b16 %v2906, %v2902
        %v3115 = vpack.c.b16 %v2907, %v2903
        %v3116 = vpack.c.b16 %v2908, %v2904
        %v3117 = vpack.c.b16 %v2909, %v2905
        %v3118 = vpack.c.b16 %v2914, %v2910
        %v3119 = vpack.c.b16 %v2915, %v2911
        %v3120 = vpack.c.b16 %v2916, %v2912
        %v3121 = vpack.c.b16 %v2917, %v2913
        %v3122 = vpack.c.b16 %v2922, %v2918
        %v3123 = vpack.c.b16 %v2923, %v2919
        %v3124 = vpack.c.b16 %v2924, %v2920
        %v3125 = vpack.c.b16 %v2925, %v2921
        %v3126 = vpack.c.b16 %v2930, %v2926
        %v3127 = vpack.c.b16 %v2931, %v2927
        %v3128 = vpack.c.b16 %v2932, %v2928
        %v3129 = vpack.c.b16 %v2933, %v2929
        %v3130 = vpack.c.b16 %v2938, %v2934
        %v3131 = vpack.c.b16 %v2939, %v2935
        %v3132 = vpack.c.b16 %v2940, %v2936
        %v3133 = vpack.c.b16 %v2941, %v2937
        %v3134 = vpack.c.b16 %v2946, %v2942
        %v3135 = vpack.c.b16 %v2947, %v2943
        %v3136 = vpack.c.b16 %v2948, %v2944
        %v3137 = vpack.c.b16 %v2949, %v2945
        %v3138 = vpack.c.b16 %v2954, %v2950
        %v3139 = vpack.c.b16 %v2955, %v2951
        %v3140 = vpack.c.b16 %v2956, %v2952
        %v3141 = vpack.c.b16 %v2957, %v2953
        %v3142 = vpack.c.b16 %v2962, %v2958
        %v3143 = vpack.c.b16 %v2963, %v2959
        %v3144 = vpack.c.b16 %v2964, %v2960
        %v3145 = vpack.c.b16 %v2965, %v2961
        %v3146 = vpack.c.b16 %v2970, %v2966
        %v3147 = vpack.c.b16 %v2971, %v2967
        %v3148 = vpack.c.b16 %v2972, %v2968
        %v3149 = vpack.c.b16 %v2973, %v2969
        %v3150 = vpack.c.b16 %v2978, %v2974
        %v3151 = vpack.c.b16 %v2979, %v2975
        %v3152 = vpack.c.b16 %v2980, %v2976
        %v3153 = vpack.c.b16 %v2981, %v2977
        %v3154 = vpack.c.b16 %v2986, %v2982
        %v3155 = vpack.c.b16 %v2987, %v2983
        %v3156 = vpack.c.b16 %v2988, %v2984
        %v3157 = vpack.c.b16 %v2989, %v2985
        %v3158 = vpack.c.b16 %v2994, %v2990
        %v3159 = vpack.c.b16 %v2995, %v2991
        %v3160 = vpack.c.b16 %v2996, %v2992
        %v3161 = vpack.c.b16 %v2997, %v2993
        %v3162 = vpack.c.b16 %v3002, %v2998
        %v3163 = vpack.c.b16 %v3003, %v2999
        %v3164 = vpack.c.b16 %v3004, %v3000
        %v3165 = vpack.c.b16 %v3005, %v3001
        %v3166 = vpack.c.b16 %v3010, %v3006
        %v3167 = vpack.c.b16 %v3011, %v3007
        %v3168 = vpack.c.b16 %v3012, %v3008
        %v3169 = vpack.c.b16 %v3013, %v3009
        %v3170 = vpack.c.b16 %v3018, %v3014
        %v3171 = vpack.c.b16 %v3019, %v3015
        %v3172 = vpack.c.b16 %v3020, %v3016
        %v3173 = vpack.c.b16 %v3021, %v3017
        %v3174 = vpack.c.b16 %v3026, %v3022
        %v3175 = vpack.c.b16 %v3027, %v3023
        %v3176 = vpack.c.b16 %v3028, %v3024
        %v3177 = vpack.c.b16 %v3029, %v3025
        %v3178 = vpack.c.b16 %v3034, %v3030
        %v3179 = vpack.c.b16 %v3035, %v3031
        %v3180 = vpack.c.b16 %v3036, %v3032
        %v3181 = vpack.c.b16 %v3037, %v3033
        %v3182 = vpack.c.b16 %v3042, %v3038
        %v3183 = vpack.c.b16 %v3043, %v3039
        %v3184 = vpack.c.b16 %v3044, %v3040
        %v3185 = vpack.c.b16 %v3045, %v3041
        %v3186 = vpack.c.b16 %v3050, %v3046
        %v3187 = vpack.c.b16 %v3051, %v3047
        %v3188 = vpack.c.b16 %v3052, %v3048
        %v3189 = vpack.c.b16 %v3053, %v3049
        %v3190 = vpack.c.b16 %v3058, %v3054
        %v3191 = vpack.c.b16 %v3059, %v3055
        %v3192 = vpack.c.b16 %v3060, %v3056
        %v3193 = vpack.c.b16 %v3061, %v3057
        %v3194 = vpack.c.b16 %v3066, %v3062
        %v3195 = vpack.c.b16 %v3067, %v3063
        %v3196 = vpack.c.b16 %v3068, %v3064
        %v3197 = vpack.c.b16 %v3069, %v3065
        %3326 = vmatpush.bf16.msra.mxu0 %v3098
        %3327 = vmatpush.bf16.msra.mxu0 %v3094
        %3328 = vmatpush.bf16.msra.mxu0 %v3090
        %3329 = vmatpush.bf16.msra.mxu0 %v3086
        %3330 = vmatpush.bf16.msra.mxu0 %v3082
        %3331 = vmatpush.bf16.msra.mxu0 %v3078
        %3332 = vmatpush.bf16.msra.mxu0 %v3074
        %3333 = vmatpush.bf16.msra.mxu0 %v3070
        %3334 = vmatmul.bf16.gmra.mxu0 %v2540
        %v3335 = vpop.f32.mrf.mxu0
        %v3336 = vadd.f32 %v2678, %v3335
        %v3337 = vpop.f32.mrf.mxu0
        %v3338 = vadd.f32 %v2678, %v3337
        %3339 = vmatmul.bf16.gmra.mxu0 %v2544
        %v3340 = vpop.f32.mrf.mxu0
        %v3341 = vadd.f32 %v2678, %v3340
        %v3342 = vpop.f32.mrf.mxu0
        %v3343 = vadd.f32 %v2678, %v3342
        %3344 = vdwg.mxu0
        %3345 = vmatpush.bf16.msra.mxu0 %v3130
        %3346 = vmatpush.bf16.msra.mxu0 %v3126
        %3347 = vmatpush.bf16.msra.mxu0 %v3122
        %3348 = vmatpush.bf16.msra.mxu0 %v3118
        %3349 = vmatpush.bf16.msra.mxu0 %v3114
        %3350 = vmatpush.bf16.msra.mxu0 %v3110
        %3351 = vmatpush.bf16.msra.mxu0 %v3106
        %3352 = vmatpush.bf16.msra.mxu0 %v3102
        %3353 = vmatmul.bf16.gmra.mxu0 %v2541
        %v3354 = vpop.f32.mrf.mxu0
        %v3355 = vadd.f32 %v3336, %v3354
        %v3356 = vpop.f32.mrf.mxu0
        %v3357 = vadd.f32 %v3338, %v3356
        %3358 = vmatmul.bf16.gmra.mxu0 %v2545
        %v3359 = vpop.f32.mrf.mxu0
        %v3360 = vadd.f32 %v3341, %v3359
        %v3361 = vpop.f32.mrf.mxu0
        %v3362 = vadd.f32 %v3343, %v3361
        %3363 = vdwg.mxu0
        %3364 = vmatpush.bf16.msra.mxu0 %v3162
        %3365 = vmatpush.bf16.msra.mxu0 %v3158
        %3366 = vmatpush.bf16.msra.mxu0 %v3154
        %3367 = vmatpush.bf16.msra.mxu0 %v3150
        %3368 = vmatpush.bf16.msra.mxu0 %v3146
        %3369 = vmatpush.bf16.msra.mxu0 %v3142
        %3370 = vmatpush.bf16.msra.mxu0 %v3138
        %3371 = vmatpush.bf16.msra.mxu0 %v3134
        %3372 = vmatmul.bf16.gmra.mxu0 %v2542
        %v3373 = vpop.f32.mrf.mxu0
        %v3374 = vadd.f32 %v3355, %v3373
        %v3375 = vpop.f32.mrf.mxu0
        %v3376 = vadd.f32 %v3357, %v3375
        %3377 = vmatmul.bf16.gmra.mxu0 %v2546
        %v3378 = vpop.f32.mrf.mxu0
        %v3379 = vadd.f32 %v3360, %v3378
        %v3380 = vpop.f32.mrf.mxu0
        %v3381 = vadd.f32 %v3362, %v3380
        %3382 = vdwg.mxu0
        %3383 = vmatpush.bf16.msra.mxu0 %v3194
        %3384 = vmatpush.bf16.msra.mxu0 %v3190
        %3385 = vmatpush.bf16.msra.mxu0 %v3186
        %3386 = vmatpush.bf16.msra.mxu0 %v3182
        %3387 = vmatpush.bf16.msra.mxu0 %v3178
        %3388 = vmatpush.bf16.msra.mxu0 %v3174
        %3389 = vmatpush.bf16.msra.mxu0 %v3170
        %3390 = vmatpush.bf16.msra.mxu0 %v3166
        %3391 = vmatmul.bf16.gmra.mxu0 %v2543
        %v3392 = vpop.f32.mrf.mxu0
        %v3393 = vadd.f32 %v3374, %v3392
        %v3394 = vpop.f32.mrf.mxu0
        %v3395 = vadd.f32 %v3376, %v3394
        %3396 = vmatmul.bf16.gmra.mxu0 %v2547
        %v3397 = vpop.f32.mrf.mxu0
        %v3398 = vadd.f32 %v3379, %v3397
        %v3399 = vpop.f32.mrf.mxu0
        %v3400 = vadd.f32 %v3381, %v3399
        %3401 = vdwg.mxu0
        %3402 = vmatpush.bf16.msra.mxu0 %v3099
        %3403 = vmatpush.bf16.msra.mxu0 %v3095
        %3404 = vmatpush.bf16.msra.mxu0 %v3091
        %3405 = vmatpush.bf16.msra.mxu0 %v3087
        %3406 = vmatpush.bf16.msra.mxu0 %v3083
        %3407 = vmatpush.bf16.msra.mxu0 %v3079
        %3408 = vmatpush.bf16.msra.mxu0 %v3075
        %3409 = vmatpush.bf16.msra.mxu0 %v3071
        %3410 = vmatmul.bf16.gmra.mxu0 %v2540
        %v3411 = vpop.f32.mrf.mxu0
        %v3412 = vadd.f32 %v2679, %v3411
        %v3413 = vpop.f32.mrf.mxu0
        %v3414 = vadd.f32 %v2679, %v3413
        %3415 = vmatmul.bf16.gmra.mxu0 %v2544
        %v3416 = vpop.f32.mrf.mxu0
        %v3417 = vadd.f32 %v2679, %v3416
        %v3418 = vpop.f32.mrf.mxu0
        %v3419 = vadd.f32 %v2679, %v3418
        %3420 = vdwg.mxu0
        %3421 = vmatpush.bf16.msra.mxu0 %v3131
        %3422 = vmatpush.bf16.msra.mxu0 %v3127
        %3423 = vmatpush.bf16.msra.mxu0 %v3123
        %3424 = vmatpush.bf16.msra.mxu0 %v3119
        %3425 = vmatpush.bf16.msra.mxu0 %v3115
        %3426 = vmatpush.bf16.msra.mxu0 %v3111
        %3427 = vmatpush.bf16.msra.mxu0 %v3107
        %3428 = vmatpush.bf16.msra.mxu0 %v3103
        %3429 = vmatmul.bf16.gmra.mxu0 %v2541
        %v3430 = vpop.f32.mrf.mxu0
        %v3431 = vadd.f32 %v3412, %v3430
        %v3432 = vpop.f32.mrf.mxu0
        %v3433 = vadd.f32 %v3414, %v3432
        %3434 = vmatmul.bf16.gmra.mxu0 %v2545
        %v3435 = vpop.f32.mrf.mxu0
        %v3436 = vadd.f32 %v3417, %v3435
        %v3437 = vpop.f32.mrf.mxu0
        %v3438 = vadd.f32 %v3419, %v3437
        %3439 = vdwg.mxu0
        %3440 = vmatpush.bf16.msra.mxu0 %v3163
        %3441 = vmatpush.bf16.msra.mxu0 %v3159
        %3442 = vmatpush.bf16.msra.mxu0 %v3155
        %3443 = vmatpush.bf16.msra.mxu0 %v3151
        %3444 = vmatpush.bf16.msra.mxu0 %v3147
        %3445 = vmatpush.bf16.msra.mxu0 %v3143
        %3446 = vmatpush.bf16.msra.mxu0 %v3139
        %3447 = vmatpush.bf16.msra.mxu0 %v3135
        %3448 = vmatmul.bf16.gmra.mxu0 %v2542
        %v3449 = vpop.f32.mrf.mxu0
        %v3450 = vadd.f32 %v3431, %v3449
        %v3451 = vpop.f32.mrf.mxu0
        %v3452 = vadd.f32 %v3433, %v3451
        %3453 = vmatmul.bf16.gmra.mxu0 %v2546
        %v3454 = vpop.f32.mrf.mxu0
        %v3455 = vadd.f32 %v3436, %v3454
        %v3456 = vpop.f32.mrf.mxu0
        %v3457 = vadd.f32 %v3438, %v3456
        %3458 = vdwg.mxu0
        %3459 = vmatpush.bf16.msra.mxu0 %v3195
        %3460 = vmatpush.bf16.msra.mxu0 %v3191
        %3461 = vmatpush.bf16.msra.mxu0 %v3187
        %3462 = vmatpush.bf16.msra.mxu0 %v3183
        %3463 = vmatpush.bf16.msra.mxu0 %v3179
        %3464 = vmatpush.bf16.msra.mxu0 %v3175
        %3465 = vmatpush.bf16.msra.mxu0 %v3171
        %3466 = vmatpush.bf16.msra.mxu0 %v3167
        %3467 = vmatmul.bf16.gmra.mxu0 %v2543
        %v3468 = vpop.f32.mrf.mxu0
        %v3469 = vadd.f32 %v3450, %v3468
        %v3470 = vpop.f32.mrf.mxu0
        %v3471 = vadd.f32 %v3452, %v3470
        %3472 = vmatmul.bf16.gmra.mxu0 %v2547
        %v3473 = vpop.f32.mrf.mxu0
        %v3474 = vadd.f32 %v3455, %v3473
        %v3475 = vpop.f32.mrf.mxu0
        %v3476 = vadd.f32 %v3457, %v3475
        %3477 = vdwg.mxu0
        %3478 = vmatpush.bf16.msra.mxu0 %v3100
        %3479 = vmatpush.bf16.msra.mxu0 %v3096
        %3480 = vmatpush.bf16.msra.mxu0 %v3092
        %3481 = vmatpush.bf16.msra.mxu0 %v3088
        %3482 = vmatpush.bf16.msra.mxu0 %v3084
        %3483 = vmatpush.bf16.msra.mxu0 %v3080
        %3484 = vmatpush.bf16.msra.mxu0 %v3076
        %3485 = vmatpush.bf16.msra.mxu0 %v3072
        %3486 = vmatmul.bf16.gmra.mxu0 %v2540
        %v3487 = vpop.f32.mrf.mxu0
        %v3488 = vadd.f32 %v2680, %v3487
        %v3489 = vpop.f32.mrf.mxu0
        %v3490 = vadd.f32 %v2680, %v3489
        %3491 = vmatmul.bf16.gmra.mxu0 %v2544
        %v3492 = vpop.f32.mrf.mxu0
        %v3493 = vadd.f32 %v2680, %v3492
        %v3494 = vpop.f32.mrf.mxu0
        %v3495 = vadd.f32 %v2680, %v3494
        %3496 = vdwg.mxu0
        %3497 = vmatpush.bf16.msra.mxu0 %v3132
        %3498 = vmatpush.bf16.msra.mxu0 %v3128
        %3499 = vmatpush.bf16.msra.mxu0 %v3124
        %3500 = vmatpush.bf16.msra.mxu0 %v3120
        %3501 = vmatpush.bf16.msra.mxu0 %v3116
        %3502 = vmatpush.bf16.msra.mxu0 %v3112
        %3503 = vmatpush.bf16.msra.mxu0 %v3108
        %3504 = vmatpush.bf16.msra.mxu0 %v3104
        %3505 = vmatmul.bf16.gmra.mxu0 %v2541
        %v3506 = vpop.f32.mrf.mxu0
        %v3507 = vadd.f32 %v3488, %v3506
        %v3508 = vpop.f32.mrf.mxu0
        %v3509 = vadd.f32 %v3490, %v3508
        %3510 = vmatmul.bf16.gmra.mxu0 %v2545
        %v3511 = vpop.f32.mrf.mxu0
        %v3512 = vadd.f32 %v3493, %v3511
        %v3513 = vpop.f32.mrf.mxu0
        %v3514 = vadd.f32 %v3495, %v3513
        %3515 = vdwg.mxu0
        %3516 = vmatpush.bf16.msra.mxu0 %v3164
        %3517 = vmatpush.bf16.msra.mxu0 %v3160
        %3518 = vmatpush.bf16.msra.mxu0 %v3156
        %3519 = vmatpush.bf16.msra.mxu0 %v3152
        %3520 = vmatpush.bf16.msra.mxu0 %v3148
        %3521 = vmatpush.bf16.msra.mxu0 %v3144
        %3522 = vmatpush.bf16.msra.mxu0 %v3140
        %3523 = vmatpush.bf16.msra.mxu0 %v3136
        %3524 = vmatmul.bf16.gmra.mxu0 %v2542
        %v3525 = vpop.f32.mrf.mxu0
        %v3526 = vadd.f32 %v3507, %v3525
        %v3527 = vpop.f32.mrf.mxu0
        %v3528 = vadd.f32 %v3509, %v3527
        %3529 = vmatmul.bf16.gmra.mxu0 %v2546
        %v3530 = vpop.f32.mrf.mxu0
        %v3531 = vadd.f32 %v3512, %v3530
        %v3532 = vpop.f32.mrf.mxu0
        %v3533 = vadd.f32 %v3514, %v3532
        %3534 = vdwg.mxu0
        %3535 = vmatpush.bf16.msra.mxu0 %v3196
        %3536 = vmatpush.bf16.msra.mxu0 %v3192
        %3537 = vmatpush.bf16.msra.mxu0 %v3188
        %3538 = vmatpush.bf16.msra.mxu0 %v3184
        %3539 = vmatpush.bf16.msra.mxu0 %v3180
        %3540 = vmatpush.bf16.msra.mxu0 %v3176
        %3541 = vmatpush.bf16.msra.mxu0 %v3172
        %3542 = vmatpush.bf16.msra.mxu0 %v3168
        %3543 = vmatmul.bf16.gmra.mxu0 %v2543
        %v3544 = vpop.f32.mrf.mxu0
        %v3545 = vadd.f32 %v3526, %v3544
        %v3546 = vpop.f32.mrf.mxu0
        %v3547 = vadd.f32 %v3528, %v3546
        %3548 = vmatmul.bf16.gmra.mxu0 %v2547
        %v3549 = vpop.f32.mrf.mxu0
        %v3550 = vadd.f32 %v3531, %v3549
        %v3551 = vpop.f32.mrf.mxu0
        %v3552 = vadd.f32 %v3533, %v3551
        %3553 = vdwg.mxu0
        %3554 = vmatpush.bf16.msra.mxu0 %v3101
        %3555 = vmatpush.bf16.msra.mxu0 %v3097
        %3556 = vmatpush.bf16.msra.mxu0 %v3093
        %3557 = vmatpush.bf16.msra.mxu0 %v3089
        %3558 = vmatpush.bf16.msra.mxu0 %v3085
        %3559 = vmatpush.bf16.msra.mxu0 %v3081
        %3560 = vmatpush.bf16.msra.mxu0 %v3077
        %3561 = vmatpush.bf16.msra.mxu0 %v3073
        %3562 = vmatmul.bf16.gmra.mxu0 %v2540
        %v3563 = vpop.f32.mrf.mxu0
        %v3564 = vadd.f32 %v2681, %v3563
        %v3565 = vpop.f32.mrf.mxu0
        %v3566 = vadd.f32 %v2681, %v3565
        %3567 = vmatmul.bf16.gmra.mxu0 %v2544
        %v3568 = vpop.f32.mrf.mxu0
        %v3569 = vadd.f32 %v2681, %v3568
        %v3570 = vpop.f32.mrf.mxu0
        %v3571 = vadd.f32 %v2681, %v3570
        %3572 = vdwg.mxu0
        %3573 = vmatpush.bf16.msra.mxu0 %v3133
        %3574 = vmatpush.bf16.msra.mxu0 %v3129
        %3575 = vmatpush.bf16.msra.mxu0 %v3125
        %3576 = vmatpush.bf16.msra.mxu0 %v3121
        %3577 = vmatpush.bf16.msra.mxu0 %v3117
        %3578 = vmatpush.bf16.msra.mxu0 %v3113
        %3579 = vmatpush.bf16.msra.mxu0 %v3109
        %3580 = vmatpush.bf16.msra.mxu0 %v3105
        %3581 = vmatmul.bf16.gmra.mxu0 %v2541
        %v3582 = vpop.f32.mrf.mxu0
        %v3583 = vadd.f32 %v3564, %v3582
        %v3584 = vpop.f32.mrf.mxu0
        %v3585 = vadd.f32 %v3566, %v3584
        %3586 = vmatmul.bf16.gmra.mxu0 %v2545
        %v3587 = vpop.f32.mrf.mxu0
        %v3588 = vadd.f32 %v3569, %v3587
        %v3589 = vpop.f32.mrf.mxu0
        %v3590 = vadd.f32 %v3571, %v3589
        %3591 = vdwg.mxu0
        %3592 = vmatpush.bf16.msra.mxu0 %v3165
        %3593 = vmatpush.bf16.msra.mxu0 %v3161
        %3594 = vmatpush.bf16.msra.mxu0 %v3157
        %3595 = vmatpush.bf16.msra.mxu0 %v3153
        %3596 = vmatpush.bf16.msra.mxu0 %v3149
        %3597 = vmatpush.bf16.msra.mxu0 %v3145
        %3598 = vmatpush.bf16.msra.mxu0 %v3141
        %3599 = vmatpush.bf16.msra.mxu0 %v3137
        %3600 = vmatmul.bf16.gmra.mxu0 %v2542
        %v3601 = vpop.f32.mrf.mxu0
        %v3602 = vadd.f32 %v3583, %v3601
        %v3603 = vpop.f32.mrf.mxu0
        %v3604 = vadd.f32 %v3585, %v3603
        %3605 = vmatmul.bf16.gmra.mxu0 %v2546
        %v3606 = vpop.f32.mrf.mxu0
        %v3607 = vadd.f32 %v3588, %v3606
        %v3608 = vpop.f32.mrf.mxu0
        %v3609 = vadd.f32 %v3590, %v3608
        %3610 = vdwg.mxu0
        %3611 = vmatpush.bf16.msra.mxu0 %v3197
        %3612 = vmatpush.bf16.msra.mxu0 %v3193
        %3613 = vmatpush.bf16.msra.mxu0 %v3189
        %3614 = vmatpush.bf16.msra.mxu0 %v3185
        %3615 = vmatpush.bf16.msra.mxu0 %v3181
        %3616 = vmatpush.bf16.msra.mxu0 %v3177
        %3617 = vmatpush.bf16.msra.mxu0 %v3173
        %3618 = vmatpush.bf16.msra.mxu0 %v3169
        %3619 = vmatmul.bf16.gmra.mxu0 %v2543
        %v3620 = vpop.f32.mrf.mxu0
        %v3621 = vadd.f32 %v3602, %v3620
        %v3622 = vpop.f32.mrf.mxu0
        %v3623 = vadd.f32 %v3604, %v3622
        %3624 = vmatmul.bf16.gmra.mxu0 %v2547
        %v3625 = vpop.f32.mrf.mxu0
        %v3626 = vadd.f32 %v3607, %v3625
        %v3627 = vpop.f32.mrf.mxu0
        %v3628 = vadd.f32 %v3609, %v3627
        %3629 = vdwg.mxu0
        %v3630 = vxor.u32 %v3393, 2147483648
        %v3631 = vxor.u32 %v3469, 2147483648
        %v3632 = vxor.u32 %v3545, 2147483648
        %v3633 = vxor.u32 %v3621, 2147483648
        %v3634 = vxor.u32 %v3395, 2147483648
        %v3635 = vxor.u32 %v3471, 2147483648
        %v3636 = vxor.u32 %v3547, 2147483648
        %v3637 = vxor.u32 %v3623, 2147483648
        %v3638 = vxor.u32 %v3398, 2147483648
        %v3639 = vxor.u32 %v3474, 2147483648
        %v3640 = vxor.u32 %v3550, 2147483648
        %v3641 = vxor.u32 %v3626, 2147483648
        %v3642 = vxor.u32 %v3400, 2147483648
        %v3643 = vxor.u32 %v3476, 2147483648
        %v3644 = vxor.u32 %v3552, 2147483648
        %v3645 = vxor.u32 %v3628, 2147483648
        %v3646 = vmul.f32 %v3630, 1.442695
        %v3647 = vpow.pop %v3646
        %v3648 = vmul.f32 %v3631, 1.442695
        %v3649 = vpow.pop %v3648
        %v3650 = vmul.f32 %v3632, 1.442695
        %v3651 = vpow.pop %v3650
        %v3652 = vmul.f32 %v3633, 1.442695
        %v3653 = vpow.pop %v3652
        %v3654 = vmul.f32 %v3634, 1.442695
        %v3655 = vpow.pop %v3654
        %v3656 = vmul.f32 %v3635, 1.442695
        %v3657 = vpow.pop %v3656
        %v3658 = vmul.f32 %v3636, 1.442695
        %v3659 = vpow.pop %v3658
        %v3660 = vmul.f32 %v3637, 1.442695
        %v3661 = vpow.pop %v3660
        %v3662 = vmul.f32 %v3638, 1.442695
        %v3663 = vpow.pop %v3662
        %v3664 = vmul.f32 %v3639, 1.442695
        %v3665 = vpow.pop %v3664
        %v3666 = vmul.f32 %v3640, 1.442695
        %v3667 = vpow.pop %v3666
        %v3668 = vmul.f32 %v3641, 1.442695
        %v3669 = vpow.pop %v3668
        %v3670 = vmul.f32 %v3642, 1.442695
        %v3671 = vpow.pop %v3670
        %v3672 = vmul.f32 %v3643, 1.442695
        %v3673 = vpow.pop %v3672
        %v3674 = vmul.f32 %v3644, 1.442695
        %v3675 = vpow.pop %v3674
        %v3676 = vmul.f32 %v3645, 1.442695
        %v3677 = vpow.pop %v3676
        %v3678 = vadd.f32 %v3647, 1.0
        %v3679 = vadd.f32 %v3649, 1.0
        %v3680 = vadd.f32 %v3651, 1.0
        %v3681 = vadd.f32 %v3653, 1.0
        %v3682 = vadd.f32 %v3655, 1.0
        %v3683 = vadd.f32 %v3657, 1.0
        %v3684 = vadd.f32 %v3659, 1.0
        %v3685 = vadd.f32 %v3661, 1.0
        %v3686 = vadd.f32 %v3663, 1.0
        %v3687 = vadd.f32 %v3665, 1.0
        %v3688 = vadd.f32 %v3667, 1.0
        %v3689 = vadd.f32 %v3669, 1.0
        %v3690 = vadd.f32 %v3671, 1.0
        %v3691 = vadd.f32 %v3673, 1.0
        %v3692 = vadd.f32 %v3675, 1.0
        %v3693 = vadd.f32 %v3677, 1.0
        %v3694 = vrcp.pop %v3678
        %v3695 = vmul.f32 %v3678, %v3694
        %v3696 = vsub.f32 1.0, %v3695
        %v3697 = vmul.f32 %v3694, %v3696
        %v3698 = vadd.f32 %v3694, %v3697
        %vm3699 = vweird.f32 %v3678
        %vm3700 = vweird.f32 %v3694
        %vm3701 = vmor %vm3699, %vm3700
        %v3702 = vsel %vm3701, %v3694, %v3698
        %v3703 = vand.u32 2147483647, %v3678
        %vm3704 = vcmp.eq.f32.partialorder %v3703, 8.507059e+37
        %v3705 = vand.u32 %v3678, 2147483648
        %v3706 = vor.u32 1.1754944e-38, %v3705
        %v3707 = vsel %vm3704, %v3706, %v3702
        %v3708 = vmul.f32 1.0, %v3707
        %v3709 = vrcp.pop %v3679
        %v3710 = vmul.f32 %v3679, %v3709
        %v3711 = vsub.f32 1.0, %v3710
        %v3712 = vmul.f32 %v3709, %v3711
        %v3713 = vadd.f32 %v3709, %v3712
        %vm3714 = vweird.f32 %v3679
        %vm3715 = vweird.f32 %v3709
        %vm3716 = vmor %vm3714, %vm3715
        %v3717 = vsel %vm3716, %v3709, %v3713
        %v3718 = vand.u32 2147483647, %v3679
        %vm3719 = vcmp.eq.f32.partialorder %v3718, 8.507059e+37
        %v3720 = vand.u32 %v3679, 2147483648
        %v3721 = vor.u32 1.1754944e-38, %v3720
        %v3722 = vsel %vm3719, %v3721, %v3717
        %v3723 = vmul.f32 1.0, %v3722
        %v3724 = vrcp.pop %v3680
        %v3725 = vmul.f32 %v3680, %v3724
        %v3726 = vsub.f32 1.0, %v3725
        %v3727 = vmul.f32 %v3724, %v3726
        %v3728 = vadd.f32 %v3724, %v3727
        %vm3729 = vweird.f32 %v3680
        %vm3730 = vweird.f32 %v3724
        %vm3731 = vmor %vm3729, %vm3730
        %v3732 = vsel %vm3731, %v3724, %v3728
        %v3733 = vand.u32 2147483647, %v3680
        %vm3734 = vcmp.eq.f32.partialorder %v3733, 8.507059e+37
        %v3735 = vand.u32 %v3680, 2147483648
        %v3736 = vor.u32 1.1754944e-38, %v3735
        %v3737 = vsel %vm3734, %v3736, %v3732
        %v3738 = vmul.f32 1.0, %v3737
        %v3739 = vrcp.pop %v3681
        %v3740 = vmul.f32 %v3681, %v3739
        %v3741 = vsub.f32 1.0, %v3740
        %v3742 = vmul.f32 %v3739, %v3741
        %v3743 = vadd.f32 %v3739, %v3742
        %vm3744 = vweird.f32 %v3681
        %vm3745 = vweird.f32 %v3739
        %vm3746 = vmor %vm3744, %vm3745
        %v3747 = vsel %vm3746, %v3739, %v3743
        %v3748 = vand.u32 2147483647, %v3681
        %vm3749 = vcmp.eq.f32.partialorder %v3748, 8.507059e+37
        %v3750 = vand.u32 %v3681, 2147483648
        %v3751 = vor.u32 1.1754944e-38, %v3750
        %v3752 = vsel %vm3749, %v3751, %v3747
        %v3753 = vmul.f32 1.0, %v3752
        %v3754 = vrcp.pop %v3682
        %v3755 = vmul.f32 %v3682, %v3754
        %v3756 = vsub.f32 1.0, %v3755
        %v3757 = vmul.f32 %v3754, %v3756
        %v3758 = vadd.f32 %v3754, %v3757
        %vm3759 = vweird.f32 %v3682
        %vm3760 = vweird.f32 %v3754
        %vm3761 = vmor %vm3759, %vm3760
        %v3762 = vsel %vm3761, %v3754, %v3758
        %v3763 = vand.u32 2147483647, %v3682
        %vm3764 = vcmp.eq.f32.partialorder %v3763, 8.507059e+37
        %v3765 = vand.u32 %v3682, 2147483648
        %v3766 = vor.u32 1.1754944e-38, %v3765
        %v3767 = vsel %vm3764, %v3766, %v3762
        %v3768 = vmul.f32 1.0, %v3767
        %v3769 = vrcp.pop %v3683
        %v3770 = vmul.f32 %v3683, %v3769
        %v3771 = vsub.f32 1.0, %v3770
        %v3772 = vmul.f32 %v3769, %v3771
        %v3773 = vadd.f32 %v3769, %v3772
        %vm3774 = vweird.f32 %v3683
        %vm3775 = vweird.f32 %v3769
        %vm3776 = vmor %vm3774, %vm3775
        %v3777 = vsel %vm3776, %v3769, %v3773
        %v3778 = vand.u32 2147483647, %v3683
        %vm3779 = vcmp.eq.f32.partialorder %v3778, 8.507059e+37
        %v3780 = vand.u32 %v3683, 2147483648
        %v3781 = vor.u32 1.1754944e-38, %v3780
        %v3782 = vsel %vm3779, %v3781, %v3777
        %v3783 = vmul.f32 1.0, %v3782
        %v3784 = vrcp.pop %v3684
        %v3785 = vmul.f32 %v3684, %v3784
        %v3786 = vsub.f32 1.0, %v3785
        %v3787 = vmul.f32 %v3784, %v3786
        %v3788 = vadd.f32 %v3784, %v3787
        %vm3789 = vweird.f32 %v3684
        %vm3790 = vweird.f32 %v3784
        %vm3791 = vmor %vm3789, %vm3790
        %v3792 = vsel %vm3791, %v3784, %v3788
        %v3793 = vand.u32 2147483647, %v3684
        %vm3794 = vcmp.eq.f32.partialorder %v3793, 8.507059e+37
        %v3795 = vand.u32 %v3684, 2147483648
        %v3796 = vor.u32 1.1754944e-38, %v3795
        %v3797 = vsel %vm3794, %v3796, %v3792
        %v3798 = vmul.f32 1.0, %v3797
        %v3799 = vrcp.pop %v3685
        %v3800 = vmul.f32 %v3685, %v3799
        %v3801 = vsub.f32 1.0, %v3800
        %v3802 = vmul.f32 %v3799, %v3801
        %v3803 = vadd.f32 %v3799, %v3802
        %vm3804 = vweird.f32 %v3685
        %vm3805 = vweird.f32 %v3799
        %vm3806 = vmor %vm3804, %vm3805
        %v3807 = vsel %vm3806, %v3799, %v3803
        %v3808 = vand.u32 2147483647, %v3685
        %vm3809 = vcmp.eq.f32.partialorder %v3808, 8.507059e+37
        %v3810 = vand.u32 %v3685, 2147483648
        %v3811 = vor.u32 1.1754944e-38, %v3810
        %v3812 = vsel %vm3809, %v3811, %v3807
        %v3813 = vmul.f32 1.0, %v3812
        %v3814 = vrcp.pop %v3686
        %v3815 = vmul.f32 %v3686, %v3814
        %v3816 = vsub.f32 1.0, %v3815
        %v3817 = vmul.f32 %v3814, %v3816
        %v3818 = vadd.f32 %v3814, %v3817
        %vm3819 = vweird.f32 %v3686
        %vm3820 = vweird.f32 %v3814
        %vm3821 = vmor %vm3819, %vm3820
        %v3822 = vsel %vm3821, %v3814, %v3818
        %v3823 = vand.u32 2147483647, %v3686
        %vm3824 = vcmp.eq.f32.partialorder %v3823, 8.507059e+37
        %v3825 = vand.u32 %v3686, 2147483648
        %v3826 = vor.u32 1.1754944e-38, %v3825
        %v3827 = vsel %vm3824, %v3826, %v3822
        %v3828 = vmul.f32 1.0, %v3827
        %v3829 = vrcp.pop %v3687
        %v3830 = vmul.f32 %v3687, %v3829
        %v3831 = vsub.f32 1.0, %v3830
        %v3832 = vmul.f32 %v3829, %v3831
        %v3833 = vadd.f32 %v3829, %v3832
        %vm3834 = vweird.f32 %v3687
        %vm3835 = vweird.f32 %v3829
        %vm3836 = vmor %vm3834, %vm3835
        %v3837 = vsel %vm3836, %v3829, %v3833
        %v3838 = vand.u32 2147483647, %v3687
        %vm3839 = vcmp.eq.f32.partialorder %v3838, 8.507059e+37
        %v3840 = vand.u32 %v3687, 2147483648
        %v3841 = vor.u32 1.1754944e-38, %v3840
        %v3842 = vsel %vm3839, %v3841, %v3837
        %v3843 = vmul.f32 1.0, %v3842
        %v3844 = vrcp.pop %v3688
        %v3845 = vmul.f32 %v3688, %v3844
        %v3846 = vsub.f32 1.0, %v3845
        %v3847 = vmul.f32 %v3844, %v3846
        %v3848 = vadd.f32 %v3844, %v3847
        %vm3849 = vweird.f32 %v3688
        %vm3850 = vweird.f32 %v3844
        %vm3851 = vmor %vm3849, %vm3850
        %v3852 = vsel %vm3851, %v3844, %v3848
        %v3853 = vand.u32 2147483647, %v3688
        %vm3854 = vcmp.eq.f32.partialorder %v3853, 8.507059e+37
        %v3855 = vand.u32 %v3688, 2147483648
        %v3856 = vor.u32 1.1754944e-38, %v3855
        %v3857 = vsel %vm3854, %v3856, %v3852
        %v3858 = vmul.f32 1.0, %v3857
        %v3859 = vrcp.pop %v3689
        %v3860 = vmul.f32 %v3689, %v3859
        %v3861 = vsub.f32 1.0, %v3860
        %v3862 = vmul.f32 %v3859, %v3861
        %v3863 = vadd.f32 %v3859, %v3862
        %vm3864 = vweird.f32 %v3689
        %vm3865 = vweird.f32 %v3859
        %vm3866 = vmor %vm3864, %vm3865
        %v3867 = vsel %vm3866, %v3859, %v3863
        %v3868 = vand.u32 2147483647, %v3689
        %vm3869 = vcmp.eq.f32.partialorder %v3868, 8.507059e+37
        %v3870 = vand.u32 %v3689, 2147483648
        %v3871 = vor.u32 1.1754944e-38, %v3870
        %v3872 = vsel %vm3869, %v3871, %v3867
        %v3873 = vmul.f32 1.0, %v3872
        %v3874 = vrcp.pop %v3690
        %v3875 = vmul.f32 %v3690, %v3874
        %v3876 = vsub.f32 1.0, %v3875
        %v3877 = vmul.f32 %v3874, %v3876
        %v3878 = vadd.f32 %v3874, %v3877
        %vm3879 = vweird.f32 %v3690
        %vm3880 = vweird.f32 %v3874
        %vm3881 = vmor %vm3879, %vm3880
        %v3882 = vsel %vm3881, %v3874, %v3878
        %v3883 = vand.u32 2147483647, %v3690
        %vm3884 = vcmp.eq.f32.partialorder %v3883, 8.507059e+37
        %v3885 = vand.u32 %v3690, 2147483648
        %v3886 = vor.u32 1.1754944e-38, %v3885
        %v3887 = vsel %vm3884, %v3886, %v3882
        %v3888 = vmul.f32 1.0, %v3887
        %v3889 = vrcp.pop %v3691
        %v3890 = vmul.f32 %v3691, %v3889
        %v3891 = vsub.f32 1.0, %v3890
        %v3892 = vmul.f32 %v3889, %v3891
        %v3893 = vadd.f32 %v3889, %v3892
        %vm3894 = vweird.f32 %v3691
        %vm3895 = vweird.f32 %v3889
        %vm3896 = vmor %vm3894, %vm3895
        %v3897 = vsel %vm3896, %v3889, %v3893
        %v3898 = vand.u32 2147483647, %v3691
        %vm3899 = vcmp.eq.f32.partialorder %v3898, 8.507059e+37
        %v3900 = vand.u32 %v3691, 2147483648
        %v3901 = vor.u32 1.1754944e-38, %v3900
        %v3902 = vsel %vm3899, %v3901, %v3897
        %v3903 = vmul.f32 1.0, %v3902
        %v3904 = vrcp.pop %v3692
        %v3905 = vmul.f32 %v3692, %v3904
        %v3906 = vsub.f32 1.0, %v3905
        %v3907 = vmul.f32 %v3904, %v3906
        %v3908 = vadd.f32 %v3904, %v3907
        %vm3909 = vweird.f32 %v3692
        %vm3910 = vweird.f32 %v3904
        %vm3911 = vmor %vm3909, %vm3910
        %v3912 = vsel %vm3911, %v3904, %v3908
        %v3913 = vand.u32 2147483647, %v3692
        %vm3914 = vcmp.eq.f32.partialorder %v3913, 8.507059e+37
        %v3915 = vand.u32 %v3692, 2147483648
        %v3916 = vor.u32 1.1754944e-38, %v3915
        %v3917 = vsel %vm3914, %v3916, %v3912
        %v3918 = vmul.f32 1.0, %v3917
        %v3919 = vrcp.pop %v3693
        %v3920 = vmul.f32 %v3693, %v3919
        %v3921 = vsub.f32 1.0, %v3920
        %v3922 = vmul.f32 %v3919, %v3921
        %v3923 = vadd.f32 %v3919, %v3922
        %vm3924 = vweird.f32 %v3693
        %vm3925 = vweird.f32 %v3919
        %vm3926 = vmor %vm3924, %vm3925
        %v3927 = vsel %vm3926, %v3919, %v3923
        %v3928 = vand.u32 2147483647, %v3693
        %vm3929 = vcmp.eq.f32.partialorder %v3928, 8.507059e+37
        %v3930 = vand.u32 %v3693, 2147483648
        %v3931 = vor.u32 1.1754944e-38, %v3930
        %v3932 = vsel %vm3929, %v3931, %v3927
        %v3933 = vmul.f32 1.0, %v3932
        %v3934 = vmul.f32 %v3393, %v3708
        %v3935 = vmul.f32 %v3469, %v3723
        %v3936 = vmul.f32 %v3545, %v3738
        %v3937 = vmul.f32 %v3621, %v3753
        %v3938 = vmul.f32 %v3395, %v3768
        %v3939 = vmul.f32 %v3471, %v3783
        %v3940 = vmul.f32 %v3547, %v3798
        %v3941 = vmul.f32 %v3623, %v3813
        %v3942 = vmul.f32 %v3398, %v3828
        %v3943 = vmul.f32 %v3474, %v3843
        %v3944 = vmul.f32 %v3550, %v3858
        %v3945 = vmul.f32 %v3626, %v3873
        %v3946 = vmul.f32 %v3400, %v3888
        %v3947 = vmul.f32 %v3476, %v3903
        %v3948 = vmul.f32 %v3552, %v3918
        %v3949 = vmul.f32 %v3628, %v3933
        %v3950 = vpack.c.bf16 %v3938, %v3934
        %v3951 = vpack.c.bf16 %v3939, %v3935
        %v3952 = vpack.c.bf16 %v3940, %v3936
        %v3953 = vpack.c.bf16 %v3941, %v3937
        %v3954 = vpack.c.bf16 %v3946, %v3942
        %v3955 = vpack.c.bf16 %v3947, %v3943
        %v3956 = vpack.c.bf16 %v3948, %v3944
        %v3957 = vpack.c.bf16 %v3949, %v3945
        %v3958 = vld [vmem:[%s655] sm:$0xf]
        %v3959 = vld [vmem:[%s655 + $0x4] sm:$0xf]
        %v3960 = vld [vmem:[%s655 + $0x8] sm:$0xf]
        %v3961 = vld [vmem:[%s655 + $0xc] sm:$0xf]
        %v3962 = vld [vmem:[%s655 + $0x10] sm:$0xf]
        %v3963 = vld [vmem:[%s655 + $0x14] sm:$0xf]
        %v3964 = vld [vmem:[%s655 + $0x18] sm:$0xf]
        %v3965 = vld [vmem:[%s655 + $0x1c] sm:$0xf]
        %v3966 = vld [vmem:[%s655 + $0x20] sm:$0xf]
        %v3967 = vld [vmem:[%s655 + $0x24] sm:$0xf]
        %v3968 = vld [vmem:[%s655 + $0x28] sm:$0xf]
        %v3969 = vld [vmem:[%s655 + $0x2c] sm:$0xf]
        %v3970 = vld [vmem:[%s655 + $0x30] sm:$0xf]
        %v3971 = vld [vmem:[%s655 + $0x34] sm:$0xf]
        %v3972 = vld [vmem:[%s655 + $0x38] sm:$0xf]
        %v3973 = vld [vmem:[%s655 + $0x3c] sm:$0xf]
        %v3974 = vld [vmem:[%s655 + $0x40] sm:$0xf]
        %v3975 = vld [vmem:[%s655 + $0x44] sm:$0xf]
        %v3976 = vld [vmem:[%s655 + $0x48] sm:$0xf]
        %v3977 = vld [vmem:[%s655 + $0x4c] sm:$0xf]
        %v3978 = vld [vmem:[%s655 + $0x50] sm:$0xf]
        %v3979 = vld [vmem:[%s655 + $0x54] sm:$0xf]
        %v3980 = vld [vmem:[%s655 + $0x58] sm:$0xf]
        %v3981 = vld [vmem:[%s655 + $0x5c] sm:$0xf]
        %v3982 = vld [vmem:[%s655 + $0x60] sm:$0xf]
        %v3983 = vld [vmem:[%s655 + $0x64] sm:$0xf]
        %v3984 = vld [vmem:[%s655 + $0x68] sm:$0xf]
        %v3985 = vld [vmem:[%s655 + $0x6c] sm:$0xf]
        %v3986 = vld [vmem:[%s655 + $0x70] sm:$0xf]
        %v3987 = vld [vmem:[%s655 + $0x74] sm:$0xf]
        %v3988 = vld [vmem:[%s655 + $0x78] sm:$0xf]
        %v3989 = vld [vmem:[%s655 + $0x7c] sm:$0xf]
        %v3990 = vld [vmem:[%s655 + $0x80] sm:$0xf]
        %v3991 = vld [vmem:[%s655 + $0x84] sm:$0xf]
        %v3992 = vld [vmem:[%s655 + $0x88] sm:$0xf]
        %v3993 = vld [vmem:[%s655 + $0x8c] sm:$0xf]
        %v3994 = vld [vmem:[%s655 + $0x90] sm:$0xf]
        %v3995 = vld [vmem:[%s655 + $0x94] sm:$0xf]
        %v3996 = vld [vmem:[%s655 + $0x98] sm:$0xf]
        %v3997 = vld [vmem:[%s655 + $0x9c] sm:$0xf]
        %v3998 = vld [vmem:[%s655 + $0xa0] sm:$0xf]
        %v3999 = vld [vmem:[%s655 + $0xa4] sm:$0xf]
        %v4000 = vld [vmem:[%s655 + $0xa8] sm:$0xf]
        %v4001 = vld [vmem:[%s655 + $0xac] sm:$0xf]
        %v4002 = vld [vmem:[%s655 + $0xb0] sm:$0xf]
        %v4003 = vld [vmem:[%s655 + $0xb4] sm:$0xf]
        %v4004 = vld [vmem:[%s655 + $0xb8] sm:$0xf]
        %v4005 = vld [vmem:[%s655 + $0xbc] sm:$0xf]
        %v4006 = vld [vmem:[%s655 + $0xc0] sm:$0xf]
        %v4007 = vld [vmem:[%s655 + $0xc4] sm:$0xf]
        %v4008 = vld [vmem:[%s655 + $0xc8] sm:$0xf]
        %v4009 = vld [vmem:[%s655 + $0xcc] sm:$0xf]
        %v4010 = vld [vmem:[%s655 + $0xd0] sm:$0xf]
        %v4011 = vld [vmem:[%s655 + $0xd4] sm:$0xf]
        %v4012 = vld [vmem:[%s655 + $0xd8] sm:$0xf]
        %v4013 = vld [vmem:[%s655 + $0xdc] sm:$0xf]
        %v4014 = vld [vmem:[%s655 + $0xe0] sm:$0xf]
        %v4015 = vld [vmem:[%s655 + $0xe4] sm:$0xf]
        %v4016 = vld [vmem:[%s655 + $0xe8] sm:$0xf]
        %v4017 = vld [vmem:[%s655 + $0xec] sm:$0xf]
        %v4018 = vld [vmem:[%s655 + $0xf0] sm:$0xf]
        %v4019 = vld [vmem:[%s655 + $0xf4] sm:$0xf]
        %v4020 = vld [vmem:[%s655 + $0xf8] sm:$0xf]
        %v4021 = vld [vmem:[%s655 + $0xfc] sm:$0xf]
        %v4022 = vld [vmem:[%s658] sm:$0x1]
        %v4024 = vperm.slane %v4022, 0
        %v4090 = vunpack.c.l.b16 %v3958
        %v4091 = vunpack.c.l.b16 %v3959
        %v4092 = vunpack.c.l.b16 %v3960
        %v4093 = vunpack.c.l.b16 %v3961
        %v4094 = vunpack.c.l.b16 %v3962
        %v4095 = vunpack.c.l.b16 %v3963
        %v4096 = vunpack.c.l.b16 %v3964
        %v4097 = vunpack.c.l.b16 %v3965
        %v4098 = vunpack.c.l.b16 %v3966
        %v4099 = vunpack.c.l.b16 %v3967
        %v4100 = vunpack.c.l.b16 %v3968
        %v4101 = vunpack.c.l.b16 %v3969
        %v4102 = vunpack.c.l.b16 %v3970
        %v4103 = vunpack.c.l.b16 %v3971
        %v4104 = vunpack.c.l.b16 %v3972
        %v4105 = vunpack.c.l.b16 %v3973
        %v4106 = vunpack.c.l.b16 %v3974
        %v4107 = vunpack.c.l.b16 %v3975
        %v4108 = vunpack.c.l.b16 %v3976
        %v4109 = vunpack.c.l.b16 %v3977
        %v4110 = vunpack.c.l.b16 %v3978
        %v4111 = vunpack.c.l.b16 %v3979
        %v4112 = vunpack.c.l.b16 %v3980
        %v4113 = vunpack.c.l.b16 %v3981
        %v4114 = vunpack.c.l.b16 %v3982
        %v4115 = vunpack.c.l.b16 %v3983
        %v4116 = vunpack.c.l.b16 %v3984
        %v4117 = vunpack.c.l.b16 %v3985
        %v4118 = vunpack.c.l.b16 %v3986
        %v4119 = vunpack.c.l.b16 %v3987
        %v4120 = vunpack.c.l.b16 %v3988
        %v4121 = vunpack.c.l.b16 %v3989
        %v4122 = vunpack.c.l.b16 %v3990
        %v4123 = vunpack.c.l.b16 %v3991
        %v4124 = vunpack.c.l.b16 %v3992
        %v4125 = vunpack.c.l.b16 %v3993
        %v4126 = vunpack.c.l.b16 %v3994
        %v4127 = vunpack.c.l.b16 %v3995
        %v4128 = vunpack.c.l.b16 %v3996
        %v4129 = vunpack.c.l.b16 %v3997
        %v4130 = vunpack.c.l.b16 %v3998
        %v4131 = vunpack.c.l.b16 %v3999
        %v4132 = vunpack.c.l.b16 %v4000
        %v4133 = vunpack.c.l.b16 %v4001
        %v4134 = vunpack.c.l.b16 %v4002
        %v4135 = vunpack.c.l.b16 %v4003
        %v4136 = vunpack.c.l.b16 %v4004
        %v4137 = vunpack.c.l.b16 %v4005
        %v4138 = vunpack.c.l.b16 %v4006
        %v4139 = vunpack.c.l.b16 %v4007
        %v4140 = vunpack.c.l.b16 %v4008
        %v4141 = vunpack.c.l.b16 %v4009
        %v4142 = vunpack.c.l.b16 %v4010
        %v4143 = vunpack.c.l.b16 %v4011
        %v4144 = vunpack.c.l.b16 %v4012
        %v4145 = vunpack.c.l.b16 %v4013
        %v4146 = vunpack.c.l.b16 %v4014
        %v4147 = vunpack.c.l.b16 %v4015
        %v4148 = vunpack.c.l.b16 %v4016
        %v4149 = vunpack.c.l.b16 %v4017
        %v4150 = vunpack.c.l.b16 %v4018
        %v4151 = vunpack.c.l.b16 %v4019
        %v4152 = vunpack.c.l.b16 %v4020
        %v4153 = vunpack.c.l.b16 %v4021
        %v4154 = vpack.c.b16 %v4091, %v4090
        %v4155 = vpack.c.b16 %v4093, %v4092
        %v4156 = vpack.c.b16 %v4095, %v4094
        %v4157 = vpack.c.b16 %v4097, %v4096
        %v4158 = vpack.c.b16 %v4099, %v4098
        %v4159 = vpack.c.b16 %v4101, %v4100
        %v4160 = vpack.c.b16 %v4103, %v4102
        %v4161 = vpack.c.b16 %v4105, %v4104
        %v4162 = vpack.c.b16 %v4107, %v4106
        %v4163 = vpack.c.b16 %v4109, %v4108
        %v4164 = vpack.c.b16 %v4111, %v4110
        %v4165 = vpack.c.b16 %v4113, %v4112
        %v4166 = vpack.c.b16 %v4115, %v4114
        %v4167 = vpack.c.b16 %v4117, %v4116
        %v4168 = vpack.c.b16 %v4119, %v4118
        %v4169 = vpack.c.b16 %v4121, %v4120
        %v4170 = vpack.c.b16 %v4123, %v4122
        %v4171 = vpack.c.b16 %v4125, %v4124
        %v4172 = vpack.c.b16 %v4127, %v4126
        %v4173 = vpack.c.b16 %v4129, %v4128
        %v4174 = vpack.c.b16 %v4131, %v4130
        %v4175 = vpack.c.b16 %v4133, %v4132
        %v4176 = vpack.c.b16 %v4135, %v4134
        %v4177 = vpack.c.b16 %v4137, %v4136
        %v4178 = vpack.c.b16 %v4139, %v4138
        %v4179 = vpack.c.b16 %v4141, %v4140
        %v4180 = vpack.c.b16 %v4143, %v4142
        %v4181 = vpack.c.b16 %v4145, %v4144
        %v4182 = vpack.c.b16 %v4147, %v4146
        %v4183 = vpack.c.b16 %v4149, %v4148
        %v4184 = vpack.c.b16 %v4151, %v4150
        %v4185 = vpack.c.b16 %v4153, %v4152
        %4218 = vmatpush.bf16.msra.mxu0 %v4161
        %4219 = vmatpush.bf16.msra.mxu0 %v4160
        %4220 = vmatpush.bf16.msra.mxu0 %v4159
        %4221 = vmatpush.bf16.msra.mxu0 %v4158
        %4222 = vmatpush.bf16.msra.mxu0 %v4157
        %4223 = vmatpush.bf16.msra.mxu0 %v4156
        %4224 = vmatpush.bf16.msra.mxu0 %v4155
        %4225 = vmatpush.bf16.msra.mxu0 %v4154
        %4226 = vmatmul.bf16.gmra.mxu0 %v3950
        %v4227 = vpop.f32.mrf.mxu0
        %v4228 = vadd.f32 %v4024, %v4227
        %v4229 = vpop.f32.mrf.mxu0
        %v4230 = vadd.f32 %v4024, %v4229
        %4231 = vmatmul.bf16.gmra.mxu0 %v3954
        %v4232 = vpop.f32.mrf.mxu0
        %v4233 = vadd.f32 %v4024, %v4232
        %v4234 = vpop.f32.mrf.mxu0
        %v4235 = vadd.f32 %v4024, %v4234
        %4236 = vdwg.mxu0
        %4237 = vmatpush.bf16.msra.mxu0 %v4169
        %4238 = vmatpush.bf16.msra.mxu0 %v4168
        %4239 = vmatpush.bf16.msra.mxu0 %v4167
        %4240 = vmatpush.bf16.msra.mxu0 %v4166
        %4241 = vmatpush.bf16.msra.mxu0 %v4165
        %4242 = vmatpush.bf16.msra.mxu0 %v4164
        %4243 = vmatpush.bf16.msra.mxu0 %v4163
        %4244 = vmatpush.bf16.msra.mxu0 %v4162
        %4245 = vmatmul.bf16.gmra.mxu0 %v3951
        %v4246 = vpop.f32.mrf.mxu0
        %v4247 = vadd.f32 %v4228, %v4246
        %v4248 = vpop.f32.mrf.mxu0
        %v4249 = vadd.f32 %v4230, %v4248
        %4250 = vmatmul.bf16.gmra.mxu0 %v3955
        %v4251 = vpop.f32.mrf.mxu0
        %v4252 = vadd.f32 %v4233, %v4251
        %v4253 = vpop.f32.mrf.mxu0
        %v4254 = vadd.f32 %v4235, %v4253
        %4255 = vdwg.mxu0
        %4256 = vmatpush.bf16.msra.mxu0 %v4177
        %4257 = vmatpush.bf16.msra.mxu0 %v4176
        %4258 = vmatpush.bf16.msra.mxu0 %v4175
        %4259 = vmatpush.bf16.msra.mxu0 %v4174
        %4260 = vmatpush.bf16.msra.mxu0 %v4173
        %4261 = vmatpush.bf16.msra.mxu0 %v4172
        %4262 = vmatpush.bf16.msra.mxu0 %v4171
        %4263 = vmatpush.bf16.msra.mxu0 %v4170
        %4264 = vmatmul.bf16.gmra.mxu0 %v3952
        %v4265 = vpop.f32.mrf.mxu0
        %v4266 = vadd.f32 %v4247, %v4265
        %v4267 = vpop.f32.mrf.mxu0
        %v4268 = vadd.f32 %v4249, %v4267
        %4269 = vmatmul.bf16.gmra.mxu0 %v3956
        %v4270 = vpop.f32.mrf.mxu0
        %v4271 = vadd.f32 %v4252, %v4270
        %v4272 = vpop.f32.mrf.mxu0
        %v4273 = vadd.f32 %v4254, %v4272
        %4274 = vdwg.mxu0
        %4275 = vmatpush.bf16.msra.mxu0 %v4185
        %4276 = vmatpush.bf16.msra.mxu0 %v4184
        %4277 = vmatpush.bf16.msra.mxu0 %v4183
        %4278 = vmatpush.bf16.msra.mxu0 %v4182
        %4279 = vmatpush.bf16.msra.mxu0 %v4181
        %4280 = vmatpush.bf16.msra.mxu0 %v4180
        %4281 = vmatpush.bf16.msra.mxu0 %v4179
        %4282 = vmatpush.bf16.msra.mxu0 %v4178
        %4283 = vmatmul.bf16.gmra.mxu0 %v3953
        %v4284 = vpop.f32.mrf.mxu0
        %v4285 = vadd.f32 %v4266, %v4284
        %v4286 = vpop.f32.mrf.mxu0
        %v4287 = vadd.f32 %v4268, %v4286
        %4288 = vmatmul.bf16.gmra.mxu0 %v3957
        %v4289 = vpop.f32.mrf.mxu0
        %v4290 = vadd.f32 %v4271, %v4289
        %v4291 = vpop.f32.mrf.mxu0
        %v4292 = vadd.f32 %v4273, %v4291
        %4293 = vdwg.mxu0
        %v4294 = vld [vmem:[%s11] sm:$0x1]
        %v4295 = vld [vmem:[%s12] sm:$0x1]
        %v4297 = vperm.slane %v4294, 0
        %4303 = vrot.lane.b32.xlu0 %v4285, 124
        %v4304 = vpop.permute.xlu0 %4303
        %4305 = vrot.lane.b32.xlu0 %v4287, 124
        %v4306 = vpop.permute.xlu0 %4305
        %4307 = vrot.lane.b32.xlu0 %v4290, 124
        %v4308 = vpop.permute.xlu0 %4307
        %4309 = vrot.lane.b32.xlu0 %v4292, 124
        %v4310 = vpop.permute.xlu0 %4309
        %v4315 = vsub.f32 %v4297, %v4304
        %v4316 = vsub.f32 %v4297, %v4306
        %v4317 = vsub.f32 %v4297, %v4308
        %v4318 = vsub.f32 %v4297, %v4310
        %v4319 = vmax.f32 %v4315, 0.0
        %v4320 = vmax.f32 %v4316, 0.0
        %v4321 = vmax.f32 %v4317, 0.0
        %v4322 = vmax.f32 %v4318, 0.0
        %vm4323 = vcmp.ne.f32.partialorder %v4315, %v4315
        %vm4324 = vcmp.ne.f32.partialorder %v4316, %v4316
        %vm4325 = vcmp.ne.f32.partialorder %v4317, %v4317
        %vm4326 = vcmp.ne.f32.partialorder %v4318, %v4318
        %v4327 = vadd.f32 %v4315, 0.0
        %v4328 = vadd.f32 %v4316, 0.0
        %v4329 = vadd.f32 %v4317, 0.0
        %v4330 = vadd.f32 %v4318, 0.0
        %v4331 = vand.u32 2147483647, %v4315
        %v4332 = vand.u32 2147483647, %v4316
        %v4333 = vand.u32 2147483647, %v4317
        %v4334 = vand.u32 2147483647, %v4318
        %v4335 = vsub.f32 0.0, %v4331
        %v4336 = vsub.f32 0.0, %v4332
        %v4337 = vsub.f32 0.0, %v4333
        %v4338 = vsub.f32 0.0, %v4334
        %v4339 = vmul.f32 %v4335, 1.442695
        %v4340 = vpow.pop %v4339
        %v4341 = vmul.f32 %v4336, 1.442695
        %v4342 = vpow.pop %v4341
        %v4343 = vmul.f32 %v4337, 1.442695
        %v4344 = vpow.pop %v4343
        %v4345 = vmul.f32 %v4338, 1.442695
        %v4346 = vpow.pop %v4345
        %v4347 = vadd.f32 %v4340, 1.0
        %v4348 = vlog2.pop %v4347
        %v4349 = vmul.f32 %v4348, 0.6931472
        %v4350 = vmul.f32 -0.5, %v4340
        %v4351 = vadd.f32 %v4350, 1.0
        %v4352 = vmul.f32 %v4351, %v4340
        %v4353 = vand.u32 2147483647, %v4340
        %vm4354 = vcmp.lt.f32.partialorder %v4353, 0.0004427343
        %v4355 = vsel %vm4354, %v4352, %v4349
        %v4356 = vadd.f32 %v4342, 1.0
        %v4357 = vlog2.pop %v4356
        %v4358 = vmul.f32 %v4357, 0.6931472
        %v4359 = vmul.f32 -0.5, %v4342
        %v4360 = vadd.f32 %v4359, 1.0
        %v4361 = vmul.f32 %v4360, %v4342
        %v4362 = vand.u32 2147483647, %v4342
        %vm4363 = vcmp.lt.f32.partialorder %v4362, 0.0004427343
        %v4364 = vsel %vm4363, %v4361, %v4358
        %v4365 = vadd.f32 %v4344, 1.0
        %v4366 = vlog2.pop %v4365
        %v4367 = vmul.f32 %v4366, 0.6931472
        %v4368 = vmul.f32 -0.5, %v4344
        %v4369 = vadd.f32 %v4368, 1.0
        %v4370 = vmul.f32 %v4369, %v4344
        %v4371 = vand.u32 2147483647, %v4344
        %vm4372 = vcmp.lt.f32.partialorder %v4371, 0.0004427343
        %v4373 = vsel %vm4372, %v4370, %v4367
        %v4374 = vadd.f32 %v4346, 1.0
        %v4375 = vlog2.pop %v4374
        %v4376 = vmul.f32 %v4375, 0.6931472
        %v4377 = vmul.f32 -0.5, %v4346
        %v4378 = vadd.f32 %v4377, 1.0
        %v4379 = vmul.f32 %v4378, %v4346
        %v4380 = vand.u32 2147483647, %v4346
        %vm4381 = vcmp.lt.f32.partialorder %v4380, 0.0004427343
        %v4382 = vsel %vm4381, %v4379, %v4376
        %v4383 = vadd.f32 %v4319, %v4355
        %v4384 = vadd.f32 %v4320, %v4364
        %v4385 = vadd.f32 %v4321, %v4373
        %v4386 = vadd.f32 %v4322, %v4382
        %v4387 = vsel %vm4323, %v4327, %v4383
        %v4388 = vsel %vm4324, %v4328, %v4384
        %v4389 = vsel %vm4325, %v4329, %v4385
        %v4390 = vsel %vm4326, %v4330, %v4386
        %v4391 = vsub.f32 %v4297, %v4387
        %v4392 = vsub.f32 %v4297, %v4388
        %v4393 = vsub.f32 %v4297, %v4389
        %v4394 = vsub.f32 %v4297, %v4390
        %v4396 = vperm.slane %v4295, 0
        %v4398 = vsub.f32 %v4391, %v4396
        %v4399 = vsub.f32 %v4392, %v4396
        %v4400 = vsub.f32 %v4393, %v4396
        %v4401 = vsub.f32 %v4394, %v4396
        %v4402 = vmax.f32 %v4398, 0.0
        %v4403 = vmax.f32 %v4399, 0.0
        %v4404 = vmax.f32 %v4400, 0.0
        %v4405 = vmax.f32 %v4401, 0.0
        %vm4406 = vcmp.ne.f32.partialorder %v4398, %v4398
        %vm4407 = vcmp.ne.f32.partialorder %v4399, %v4399
        %vm4408 = vcmp.ne.f32.partialorder %v4400, %v4400
        %vm4409 = vcmp.ne.f32.partialorder %v4401, %v4401
        %v4410 = vadd.f32 %v4398, 0.0
        %v4411 = vadd.f32 %v4399, 0.0
        %v4412 = vadd.f32 %v4400, 0.0
        %v4413 = vadd.f32 %v4401, 0.0
        %v4414 = vand.u32 2147483647, %v4398
        %v4415 = vand.u32 2147483647, %v4399
        %v4416 = vand.u32 2147483647, %v4400
        %v4417 = vand.u32 2147483647, %v4401
        %v4418 = vsub.f32 0.0, %v4414
        %v4419 = vsub.f32 0.0, %v4415
        %v4420 = vsub.f32 0.0, %v4416
        %v4421 = vsub.f32 0.0, %v4417
        %v4422 = vmul.f32 %v4418, 1.442695
        %v4423 = vpow.pop %v4422
        %v4424 = vmul.f32 %v4419, 1.442695
        %v4425 = vpow.pop %v4424
        %v4426 = vmul.f32 %v4420, 1.442695
        %v4427 = vpow.pop %v4426
        %v4428 = vmul.f32 %v4421, 1.442695
        %v4429 = vpow.pop %v4428
        %v4430 = vadd.f32 %v4423, 1.0
        %v4431 = vlog2.pop %v4430
        %v4432 = vmul.f32 %v4431, 0.6931472
        %v4433 = vmul.f32 -0.5, %v4423
        %v4434 = vadd.f32 %v4433, 1.0
        %v4435 = vmul.f32 %v4434, %v4423
        %v4436 = vand.u32 2147483647, %v4423
        %vm4437 = vcmp.lt.f32.partialorder %v4436, 0.0004427343
        %v4438 = vsel %vm4437, %v4435, %v4432
        %v4439 = vadd.f32 %v4425, 1.0
        %v4440 = vlog2.pop %v4439
        %v4441 = vmul.f32 %v4440, 0.6931472
        %v4442 = vmul.f32 -0.5, %v4425
        %v4443 = vadd.f32 %v4442, 1.0
        %v4444 = vmul.f32 %v4443, %v4425
        %v4445 = vand.u32 2147483647, %v4425
        %vm4446 = vcmp.lt.f32.partialorder %v4445, 0.0004427343
        %v4447 = vsel %vm4446, %v4444, %v4441
        %v4448 = vadd.f32 %v4427, 1.0
        %v4449 = vlog2.pop %v4448
        %v4450 = vmul.f32 %v4449, 0.6931472
        %v4451 = vmul.f32 -0.5, %v4427
        %v4452 = vadd.f32 %v4451, 1.0
        %v4453 = vmul.f32 %v4452, %v4427
        %v4454 = vand.u32 2147483647, %v4427
        %vm4455 = vcmp.lt.f32.partialorder %v4454, 0.0004427343
        %v4456 = vsel %vm4455, %v4453, %v4450
        %v4457 = vadd.f32 %v4429, 1.0
        %v4458 = vlog2.pop %v4457
        %v4459 = vmul.f32 %v4458, 0.6931472
        %v4460 = vmul.f32 -0.5, %v4429
        %v4461 = vadd.f32 %v4460, 1.0
        %v4462 = vmul.f32 %v4461, %v4429
        %v4463 = vand.u32 2147483647, %v4429
        %vm4464 = vcmp.lt.f32.partialorder %v4463, 0.0004427343
        %v4465 = vsel %vm4464, %v4462, %v4459
        %v4466 = vadd.f32 %v4402, %v4438
        %v4467 = vadd.f32 %v4403, %v4447
        %v4468 = vadd.f32 %v4404, %v4456
        %v4469 = vadd.f32 %v4405, %v4465
        %v4470 = vsel %vm4406, %v4410, %v4466
        %v4471 = vsel %vm4407, %v4411, %v4467
        %v4472 = vsel %vm4408, %v4412, %v4468
        %v4473 = vsel %vm4409, %v4413, %v4469
        %v4474 = vadd.f32 %v4396, %v4470
        %v4475 = vadd.f32 %v4396, %v4471
        %v4476 = vadd.f32 %v4396, %v4472
        %v4477 = vadd.f32 %v4396, %v4473
        %v4478 = vmul.f32 %v4474, 1.442695
        %v4479 = vpow.pop %v4478
        %v4480 = vmul.f32 %v4475, 1.442695
        %v4481 = vpow.pop %v4480
        %v4482 = vmul.f32 %v4476, 1.442695
        %v4483 = vpow.pop %v4482
        %v4484 = vmul.f32 %v4477, 1.442695
        %v4485 = vpow.pop %v4484
        %4490 = vrot.lane.b32.xlu0 %v4479, 4
        %v4491 = vpop.permute.xlu0 %4490
        %4492 = vrot.lane.b32.xlu0 %v4481, 4
        %v4493 = vpop.permute.xlu0 %4492
        %4494 = vrot.lane.b32.xlu0 %v4483, 4
        %v4495 = vpop.permute.xlu0 %4494
        %4496 = vrot.lane.b32.xlu0 %v4485, 4
        %v4497 = vpop.permute.xlu0 %4496
        %vm4502 = vcmask 31744
        %v4503 = vsel %vm4502, %v4285, %v4491
        %v4504 = vsel %vm4502, %v4287, %v4493
        %v4505 = vsel %vm4502, %v4290, %v4495
        %v4506 = vsel %vm4502, %v4292, %v4497
        %vm4507 = vcmask 64512
        %4508 = vst.msk [vmem:[%s667] sm:$0xff] %vm4507, %v4503
        %4509 = vst.msk [vmem:[%s667 + $0x8] sm:$0xff] %vm4507, %v4504
        %4510 = vst.msk [vmem:[%s667 + $0x10] sm:$0xff] %vm4507, %v4505
        %4511 = vst.msk [vmem:[%s667 + $0x18] sm:$0xff] %vm4507, %v4506
        %s4512 = smul.u32 4, %s35
        %p4513 = scmp.lt.s32.totalorder %s34, 1
        %s4514 = scalar_select %p4513, %s34, 1
        %p4515 = scmp.lt.s32.totalorder %s4512, 3
        %s4516 = scalar_select %p4515, %s4512, 3
        %s4517 = smul.addr %s4514, 4
        %s4518 = sadd.s32 %s4516, %s4517
        %s4519 = smul.addr %s4518, 8
        %s4520 = scalar_lea.vmem %s13, %s4519
        // Predicated region
        $region81: #{tpu_custom_call.1} parent=71 // pred_check
          %p4521 = pneg %p382
        $region82: #{tpu_custom_call.1} parent=71 // pred_check_branch
          %4523 = sbr.rel (%p4521) target = $region84
        $region83: #{tpu_custom_call.1} parent=71 // pred_region
          %s4524 = smul.u32 4, %s35
        $region84: #{tpu_custom_call.1} parent=71 // pred_fallthru
          _
      $region72: #{tpu_custom_call.1} parent=5 // pred_fallthru
        _
      %p4525 = scmp.le.s32.totalorder 2, %s25
      // Predicated region
      $region85: #{tpu_custom_call.1} parent=5 // pred_check
        %p4526 = pneg %p4525
      $region86: #{tpu_custom_call.1} parent=5 // pred_check_branch
        %4528 = sbr.rel (%p4526) target = $region88
      $region87: #{tpu_custom_call.1} parent=5 // pred_region
        %s4529 = ssub.s32 %s25, 2
        // Predicated region
        $region89: #{tpu_custom_call.1} parent=87 // pred_check
          %p4530 = pneg %p388
        $region90: #{tpu_custom_call.1} parent=87 // pred_check_branch
          %4532 = sbr.rel (%p4530) target = $region92
        $region91: #{tpu_custom_call.1} parent=87 // pred_region
          %s4533 = smul.u32 4, %s37
          %p4534 = scmp.lt.s32.totalorder %s36, 1
          %s4535 = scalar_select %p4534, %s36, 1
          %p4536 = scmp.lt.s32.totalorder %s4533, 3
          %s4537 = scalar_select %p4536, %s4533, 3
          %s4538 = smul.addr %s4535, 4
          %s4539 = sadd.s32 %s4537, %s4538
          %s4540 = smul.addr %s4539, 8
          %s4541 = scalar_lea.vmem %s13, %s4540
        $region92: #{tpu_custom_call.1} parent=87 // pred_fallthru
          _
      $region88: #{tpu_custom_call.1} parent=5 // pred_fallthru
        _
    $region6: #{tpu_custom_call.1} parent=1 // loop_footer
      %s29 = sadd.s32 1, %s25
    $region7: #{tpu_custom_call.1} parent=1 // loop_footer_branch
      %24 = sbr.rel target = $region3
    $region8: #{tpu_custom_call.1} parent=1 // loop_exit
      _
    %4542 = vsyncpa [#allocation3], 1
    %s4543 = scalar_lea.sflag [#allocation3], 1
    %4544 = vsyncpa %s4543, 1
    %4545 = vsyncpa [#allocation5], 1
    %s4546 = scalar_lea.sflag [#allocation5], 1
    %4547 = vsyncpa %s4546, 1

</llo_original>
